<compile_context>
chip_gen: v7x
topology: tpu7x:2x2x1
jax: 0.10.0
libtpu: 0.0.40
codegen_flags: <defaults>
</compile_context>

<pallas_src>
import jax
import jax.numpy as jnp
from jax.experimental import pallas as pl
from jax.experimental.pallas import tpu as pltpu


# -----------------------------------------------------------------------------
# Static per-layer bookkeeping.  Layer 0 is space-to-depth'd by its stride.
# -----------------------------------------------------------------------------
def _layer_metas(h, c0, kernel_sizes, strides, paddings, channels):
    metas = []
    k0, s0, p0 = kernel_sizes[0], strides[0], paddings[0]
    h_out0 = (h + 2 * p0 - k0) // s0 + 1
    keff0 = 1 + (k0 - 1) // s0          # taps after space-to-depth
    g0 = h_out0 + keff0 - 1             # row-groups staged for layer 0
    metas.append(dict(taps=keff0, cin=s0 * c0, cout=channels[1], stride=1,
                      h_out=h_out0, pad=0, h_pad=g0))
    h = h_out0
    for l in range(1, len(kernel_sizes)):
        k, s, p = kernel_sizes[l], strides[l], paddings[l]
        h_pad = h + 2 * p
        h_out = (h_pad - k) // s + 1
        metas.append(dict(taps=k, cin=channels[l], cout=channels[l + 1],
                          stride=s, h_out=h_out, pad=p, h_pad=h_pad))
        h = h_out
    return metas


# -----------------------------------------------------------------------------
# Fused Pallas kernel: the whole SubMPD conv stack for a block of TN items
# -----------------------------------------------------------------------------
def _make_fused_kernel(tn, metas, im2col):
    L = len(metas)

    def kernel(*refs):
        x_ref = refs[0]
        w_refs = [refs[1 + 2 * l] for l in range(L)]
        b_refs = [refs[2 + 2 * l] for l in range(L)]
        o_refs = refs[1 + 2 * L: 1 + 3 * L]
        s_refs = refs[1 + 3 * L:]            # padded inputs of layers 1..L-1

        for l, m in enumerate(metas):
            taps, cin, cout = m["taps"], m["cin"], m["cout"]
            stride, h_out = m["stride"], m["h_out"]
            last = l == L - 1
            src = x_ref if l == 0 else s_refs[l - 1]

            def tap(k, _src=src, _h=h_out, _s=stride):
                if _s == 1:
                    return _src[:, k:k + _h, :]
                # only used if an inner layer has stride > 1 (not in the toy)
                return _src[:, pl.ds(k, _h, stride=_s), :]

            if im2col:
                # one MXU matmul per layer, contraction depth taps*cin
                patch = jnp.concatenate([tap(k) for k in range(taps)], axis=-1)
                acc = jnp.dot(
                    patch.reshape(tn * h_out, taps * cin).astype(jnp.bfloat16),
                    w_refs[l][...].reshape(taps * cin, cout),
                    preferred_element_type=jnp.float32)
            else:
                # fallback: `taps` small bf16 matmuls accumulated in f32
                acc = jnp.zeros((tn * h_out, cout), jnp.float32)
                for k in range(taps):
                    acc = acc + jnp.dot(
                        tap(k).reshape(tn * h_out, cin).astype(jnp.bfloat16),
                        w_refs[l][k],
                        preferred_element_type=jnp.float32)

            acc = acc + b_refs[l][...]                     # (1, cout) broadcast
            if not last:
                acc = jnp.where(acc >= 0, acc, 0.1 * acc)  # leaky_relu(0.1)

            y = acc.reshape(tn, h_out, cout)
            o_refs[l][...] = y.astype(o_refs[l].dtype)     # bf16 except last

            if not last:                      # feed next layer's padded scratch
                nxt = metas[l + 1]
                pad, h_pad = nxt["pad"], nxt["h_pad"]
                dst = s_refs[l]
                # pad rows are re-zeroed every step: cheap, and safe under
                # megacore sharding of the parallel grid axis.
                if pad > 0:
                    dst[:, :pad, :] = jnp.zeros((tn, pad, cout), dst.dtype)
                    dst[:, pad + h_out:, :] = jnp.zeros(
                        (tn, h_pad - pad - h_out, cout), dst.dtype)
                dst[:, pad:pad + h_out, :] = y.astype(dst.dtype)

    return kernel


def _call(x_items, weights, biases, metas, tn, n_pad, im2col,
          single_buffer_weights):
    L = len(metas)
    g0, ceff0 = metas[0]["h_pad"], metas[0]["cin"]

    def const_spec(shape):
        idx = lambda i, _r=len(shape): (0,) * _r
        if single_buffer_weights:
            # constant-index blocks: no need for a 2-deep revolving buffer
            return pl.BlockSpec(shape, idx, pipeline_mode=pl.Buffered(1))
        return pl.BlockSpec(shape, idx)

    in_specs = [pl.BlockSpec((tn, g0, ceff0), lambda i: (i, 0, 0))]
    operands = [x_items]
    for l in range(L):
        in_specs.append(const_spec(weights[l].shape))
        in_specs.append(const_spec(biases[l].shape))
        operands += [weights[l], biases[l]]

    out_shapes, out_specs, scratch = [], [], []
    for l, m in enumerate(metas):
        dt = jnp.float32 if l == L - 1 else jnp.bfloat16
        out_shapes.append(
            jax.ShapeDtypeStruct((n_pad, m["h_out"], m["cout"]), dt))
        out_specs.append(
            pl.BlockSpec((tn, m["h_out"], m["cout"]), lambda i: (i, 0, 0)))
    for l in range(1, L):
        # f32 scratch keeps the (proven) unaligned sublane stores in 32-bit;
        # activations are cast to bf16 at matmul time.
        scratch.append(
            pltpu.VMEM((tn, metas[l]["h_pad"], metas[l]["cin"]), jnp.float32))

    outs = pl.pallas_call(
        _make_fused_kernel(tn, metas, im2col),
        grid=(n_pad // tn,),
        in_specs=in_specs,
        out_specs=out_specs,
        out_shape=out_shapes,
        scratch_shapes=scratch,
        compiler_params=pltpu.CompilerParams(
            dimension_semantics=("parallel",)),
    )(*operands)
    return [jax.block_until_ready(o) for o in outs]


# -----------------------------------------------------------------------------
# SubMPD forward (Pallas path)
# -----------------------------------------------------------------------------
def sub_mpd_forward(x, params_oihw, period, strides, paddings, *, tn=None):
    """x: (B, C, T) f32; params_oihw: [(w (Cout,Cin,K,1), b (Cout,))] f32.

    Returns (flat, feature_map) exactly like the torch module (f32, NCHW).
    """
    B, C, T = x.shape
    if T % period != 0:
        pad_amt = period - T % period
        if pad_amt >= T:
            raise ValueError("reflect padding requires period - T % period < T")
        x = jnp.pad(x, ((0, 0), (0, 0), (0, pad_amt)), mode="reflect")
        T += pad_amt
    H = T // period
    N = B * period

    kernel_sizes = [int(w.shape[2]) for (w, _) in params_oihw]
    channels = [int(C)] + [int(w.shape[0]) for (w, _) in params_oihw]
    L = len(params_oihw)
    metas = _layer_metas(H, C, kernel_sizes, strides, paddings, channels)

    # one (H, C) row-block per (batch, period-column) item
    x_items = jnp.transpose(x.reshape(B, C, H, period),
                            (0, 3, 2, 1)).reshape(N, H, C)

    # layer-0 zero padding + space-to-depth: the stride-s0 conv becomes a
    # stride-1 conv over s0*C channels.  Pure layout plumbing, done once here.
    s0, p0, k0 = strides[0], paddings[0], kernel_sizes[0]
    rows = metas[0]["h_pad"] * s0
    x_items = jnp.pad(
        x_items, ((0, 0), (p0, max(0, rows - p0 - H)), (0, 0)))[:, :rows, :]
    x_items = x_items.reshape(N, metas[0]["h_pad"], s0 * C)

    # TN items per grid step: ~512 matmul rows / step, but keep >=2 parallel
    # steps so 2-TensorCore chips get work on both cores.
    if tn is None:
        min_h_out = max(1, min(m["h_out"] for m in metas))
        want = -(-512 // min_h_out)
        cap = max(1, -(-N // 2))
        tn = max(8, ((min(want, cap) + 7) // 8) * 8)
    n_pad = -(-N // tn) * tn
    if n_pad != N:
        x_items = jnp.pad(x_items, ((0, n_pad - N), (0, 0), (0, 0)))

    # host-side weight prep: bf16, layer 0 folded into the s2d layout
    weights, biases = [], []
    for l, (w, b) in enumerate(params_oihw):
        w_kic = jnp.transpose(w[..., 0], (2, 1, 0))        # (K, Cin, Cout)
        if l == 0:
            keff0 = metas[0]["taps"]
            w_eff = jnp.zeros((keff0, s0, channels[0], channels[1]),
                              jnp.float32)
            for k in range(k0):
                t, off = divmod(k, s0)
                w_eff = w_eff.at[t, off].set(w_kic[k])
            w_kic = w_eff.reshape(keff0, s0 * channels[0], channels[1])
        weights.append(w_kic.astype(jnp.bfloat16))
        biases.append(b.reshape(1, -1).astype(jnp.float32))

    # optimized path first (im2col + single-buffered weights); fall back to the
    # previously-validated per-tap-matmul variant if Mosaic rejects it.
    try:
        acts = _call(x_items, weights, biases, metas, tn, n_pad,
                     im2col=True, single_buffer_weights=True)
    except Exception:
        acts = _call(x_items, weights, biases, metas, tn, n_pad,
                     im2col=False, single_buffer_weights=False)

    # torch-facing NCHW / f32 feature maps
    feature_map = []
    for a in acts:
        a = a[:N]
        h_out, c_out = a.shape[1], a.shape[2]
        feature_map.append(
            jnp.transpose(a.reshape(B, period, h_out, c_out),
                          (0, 3, 2, 1)).astype(jnp.float32))
    flat = feature_map[-1].reshape(B, -1)    # == torch.flatten(x, 1, -1)
    return flat, feature_map


# -----------------------------------------------------------------------------
# Deterministic params (mirrors weight_norm(nn.Conv2d(...)) effective weights)
# -----------------------------------------------------------------------------
def init_params(key, channels, kernel_sizes):
    params = []
    for cin, cout, k in zip(channels[:-1], channels[1:], kernel_sizes):
        key, k1, k2, k3 = jax.random.split(key, 4)
        v = jax.random.normal(k1, (cout, cin, k, 1), jnp.float32) * 0.2
        g = jax.random.uniform(k2, (cout, 1, 1, 1), jnp.float32,
                               minval=0.5, maxval=1.5)
        bias = jax.random.normal(k3, (cout,), jnp.float32) * 0.1
        norm = jnp.sqrt(jnp.sum(v * v, axis=(1, 2, 3), keepdims=True))
        params.append((g * v / norm, bias))    # weight_norm: w = g * v/||v||
    return params


# -----------------------------------------------------------------------------
# Pure-JAX reference mirroring the kernel's dtype policy (bf16 matmul operands,
# f32 accumulation / bias / leaky, f32 carried between layers).
# -----------------------------------------------------------------------------
def ref_forward(x, params_oihw, period, strides, paddings):
    B, C, T = x.shape
    if T % period != 0:
        pad_amt = period - T % period
        x = jnp.pad(x, ((0, 0), (0, 0), (0, pad_amt)), mode="reflect")
        T += pad_amt
    h = x.reshape(B, C, T // period, period)
    feats = []
    n = len(params_oihw)
    for i, (w, b) in enumerate(params_oihw):
        y = jax.lax.conv_general_dilated(
            h.astype(jnp.bfloat16), w.astype(jnp.bfloat16),
            window_strides=(strides[i], 1),
            padding=((paddings[i], paddings[i]), (0, 0)),
            dimension_numbers=("NCHW", "OIHW", "NCHW"),
            preferred_element_type=jnp.float32)
        y = y + b.reshape(1, -1, 1, 1)
        if i != n - 1:
            y = jnp.where(y >= 0, y, 0.1 * y)
        feats.append(y)
        h = y
    return feats[-1].reshape(B, -1), feats


if __name__ == "__main__":
    # SubMPD(period, channels, kernel_sizes, strides, paddings) config
    period = 3
    channels = [4, 8, 16, 4]
    kernel_sizes = [5, 5, 3]
    strides = [3, 1, 1]
    paddings = [2, 2, 1]

    key = jax.random.PRNGKey(0)
    kx, kp = jax.random.split(key)
    # T % period != 0 exercises the reflect pad; H = 22 -> every layer's
    # H_out = 8.  B = 4 -> N = 12 items, padded to 16 -> 2 "parallel" steps.
    B, C, T = 4, channels[0], 65
    x = jax.random.normal(kx, (B, C, T), jnp.float32)
    params_oihw = init_params(kp, channels, kernel_sizes)

    flat, feats = sub_mpd_forward(x, params_oihw, period, strides, paddings)
    flat = jax.block_until_ready(flat)
    feats = [jax.block_until_ready(f) for f in feats]

    # correctness vs a reference with the same bf16-operand / f32-accumulation
    # policy; tolerances account for bf16 rounding of the stored feature maps.
    flat_ref, feats_ref = ref_forward(x, params_oihw, period, strides, paddings)
    assert flat.shape == flat_ref.shape, (flat.shape, flat_ref.shape)
    assert jnp.allclose(flat, flat_ref, rtol=2e-2, atol=2e-2), \
        ("flat mismatch", float(jnp.max(jnp.abs(flat - flat_ref))))
    for f, fr in zip(feats, feats_ref):
        assert f.shape == fr.shape, (f.shape, fr.shape)
        assert jnp.allclose(f, fr, rtol=2e-2, atol=2e-2), \
            ("feature map mismatch", float(jnp.max(jnp.abs(f - fr))))

    print("KERNEL_OK")
</pallas_src>

<mosaic_0001>
module attributes {stable_mosaic.version = 11 : i64} {
  func.func @kernel(%arg0: i32, %arg1: memref<8x9x12xf32, #tpu.memory_space<vmem>>, %arg2: memref<2x12x8xbf16, #tpu.memory_space<vmem>>, %arg3: memref<1x8xf32, #tpu.memory_space<vmem>>, %arg4: memref<5x8x16xbf16, #tpu.memory_space<vmem>>, %arg5: memref<1x16xf32, #tpu.memory_space<vmem>>, %arg6: memref<3x16x4xbf16, #tpu.memory_space<vmem>>, %arg7: memref<1x4xf32, #tpu.memory_space<vmem>>, %arg8: memref<8x8x8xbf16, #tpu.memory_space<vmem>>, %arg9: memref<8x8x16xbf16, #tpu.memory_space<vmem>>, %arg10: memref<8x8x4xf32, #tpu.memory_space<vmem>>, %arg11: memref<8x12x8xf32, #tpu.memory_space<vmem>>, %arg12: memref<8x10x16xf32, #tpu.memory_space<vmem>>) attributes {dimension_semantics = [#tpu.dimension_semantics<parallel>], iteration_bounds = array<i64: 2>, scalar_prefetch = 0 : i64, scratch_operands = 2 : i64, tpu.core_type = #tpu.core_type<tc>, window_params = [{transform_indices = @transform_0, window_bounds = array<i64: 8, 9, 12>}, {pipeline_mode = #tpu.pipeline_mode<synchronous>, transform_indices = @transform_1, window_bounds = array<i64: 2, 12, 8>}, {pipeline_mode = #tpu.pipeline_mode<synchronous>, transform_indices = @transform_2, window_bounds = array<i64: 1, 8>}, {pipeline_mode = #tpu.pipeline_mode<synchronous>, transform_indices = @transform_3, window_bounds = array<i64: 5, 8, 16>}, {pipeline_mode = #tpu.pipeline_mode<synchronous>, transform_indices = @transform_4, window_bounds = array<i64: 1, 16>}, {pipeline_mode = #tpu.pipeline_mode<synchronous>, transform_indices = @transform_5, window_bounds = array<i64: 3, 16, 4>}, {pipeline_mode = #tpu.pipeline_mode<synchronous>, transform_indices = @transform_6, window_bounds = array<i64: 1, 4>}, {transform_indices = @transform_7, window_bounds = array<i64: 8, 8, 8>}, {transform_indices = @transform_8, window_bounds = array<i64: 8, 8, 16>}, {transform_indices = @transform_9, window_bounds = array<i64: 8, 8, 4>}]} {
    %c0 = arith.constant 0 : index
    %c0_0 = arith.constant 0 : index
    %c0_1 = arith.constant 0 : index
    %0 = vector.load %arg1[%c0, %c0_0, %c0_1] : memref<8x9x12xf32, #tpu.memory_space<vmem>>, vector<8x8x12xf32>
    %c0_2 = arith.constant 0 : index
    %c1 = arith.constant 1 : index
    %c0_3 = arith.constant 0 : index
    %1 = vector.load %arg1[%c0_2, %c1, %c0_3] : memref<8x9x12xf32, #tpu.memory_space<vmem>>, vector<8x8x12xf32>
    %2 = tpu.concatenate %0, %1 in 2 : vector<8x8x12xf32>, vector<8x8x12xf32> -> vector<8x8x24xf32>
    %3 = vector.shape_cast %2 : vector<8x8x24xf32> to vector<64x24xf32>
    %4 = arith.truncf %3 : vector<64x24xf32> to vector<64x24xbf16>
    %c0_4 = arith.constant 0 : index
    %c0_5 = arith.constant 0 : index
    %c0_6 = arith.constant 0 : index
    %5 = vector.load %arg2[%c0_4, %c0_5, %c0_6] : memref<2x12x8xbf16, #tpu.memory_space<vmem>>, vector<2x12x8xbf16>
    %6 = vector.shape_cast %5 : vector<2x12x8xbf16> to vector<24x8xbf16>
    %cst = arith.constant dense<0.000000e+00> : vector<64x8xf32>
    %7 = tpu.matmul %4, %6, %cst {dimension_numbers = #tpu.dot_dimension_numbers<[1], [0], [0], [1], [0, 0, 1, 1], [], []>} : vector<64x24xbf16>, vector<24x8xbf16>, vector<64x8xf32> -> vector<64x8xf32>
    %c0_7 = arith.constant 0 : index
    %c0_8 = arith.constant 0 : index
    %8 = vector.load %arg3[%c0_7, %c0_8] : memref<1x8xf32, #tpu.memory_space<vmem>>, vector<1x8xf32>
    %9 = vector.broadcast %8 : vector<1x8xf32> to vector<64x8xf32>
    %10 = arith.addf %7, %9 : vector<64x8xf32>
    %cst_9 = arith.constant 0.000000e+00 : f32
    %11 = vector.broadcast %cst_9 : f32 to vector<64x8xf32>
    %12 = arith.cmpf oge, %10, %11 : vector<64x8xf32>
    %cst_10 = arith.constant 1.000000e-01 : f32
    %13 = vector.broadcast %cst_10 : f32 to vector<64x8xf32>
    %14 = arith.mulf %13, %10 : vector<64x8xf32>
    %15 = arith.select %12, %10, %14 : vector<64x8xi1>, vector<64x8xf32>
    %16 = vector.shape_cast %15 : vector<64x8xf32> to vector<8x8x8xf32>
    %17 = arith.truncf %16 : vector<8x8x8xf32> to vector<8x8x8xbf16>
    %c0_11 = arith.constant 0 : index
    %c0_12 = arith.constant 0 : index
    %c0_13 = arith.constant 0 : index
    %18 = vector.load %arg8[%c0_11, %c0_12, %c0_13] : memref<8x8x8xbf16, #tpu.memory_space<vmem>>, vector<8x8x8xbf16>
    tpu.vector_store %arg8[%c0_11, %c0_12, %c0_13], %17 {strides = array<i32>} : memref<8x8x8xbf16, #tpu.memory_space<vmem>>, vector<8x8x8xbf16>,
    %cst_14 = arith.constant 0.000000e+00 : f32
    %19 = vector.broadcast %cst_14 : f32 to vector<8x2x8xf32>
    %c0_15 = arith.constant 0 : index
    %c0_16 = arith.constant 0 : index
    %c0_17 = arith.constant 0 : index
    %20 = vector.load %arg11[%c0_15, %c0_16, %c0_17] : memref<8x12x8xf32, #tpu.memory_space<vmem>>, vector<8x2x8xf32>
    tpu.vector_store %arg11[%c0_15, %c0_16, %c0_17], %19 {strides = array<i32>} : memref<8x12x8xf32, #tpu.memory_space<vmem>>, vector<8x2x8xf32>,
    %cst_18 = arith.constant 0.000000e+00 : f32
    %21 = vector.broadcast %cst_18 : f32 to vector<8x2x8xf32>
    %c0_19 = arith.constant 0 : index
    %c10 = arith.constant 10 : index
    %c0_20 = arith.constant 0 : index
    %22 = vector.load %arg11[%c0_19, %c10, %c0_20] : memref<8x12x8xf32, #tpu.memory_space<vmem>>, vector<8x2x8xf32>
    tpu.vector_store %arg11[%c0_19, %c10, %c0_20], %21 {strides = array<i32>} : memref<8x12x8xf32, #tpu.memory_space<vmem>>, vector<8x2x8xf32>,
    %c0_21 = arith.constant 0 : index
    %c2 = arith.constant 2 : index
    %c0_22 = arith.constant 0 : index
    %23 = vector.load %arg11[%c0_21, %c2, %c0_22] : memref<8x12x8xf32, #tpu.memory_space<vmem>>, vector<8x8x8xf32>
    tpu.vector_store %arg11[%c0_21, %c2, %c0_22], %16 {strides = array<i32>} : memref<8x12x8xf32, #tpu.memory_space<vmem>>, vector<8x8x8xf32>,
    %c0_23 = arith.constant 0 : index
    %c0_24 = arith.constant 0 : index
    %c0_25 = arith.constant 0 : index
    %24 = vector.load %arg11[%c0_23, %c0_24, %c0_25] : memref<8x12x8xf32, #tpu.memory_space<vmem>>, vector<8x8x8xf32>
    %c0_26 = arith.constant 0 : index
    %c1_27 = arith.constant 1 : index
    %c0_28 = arith.constant 0 : index
    %25 = vector.load %arg11[%c0_26, %c1_27, %c0_28] : memref<8x12x8xf32, #tpu.memory_space<vmem>>, vector<8x8x8xf32>
    %c0_29 = arith.constant 0 : index
    %c2_30 = arith.constant 2 : index
    %c0_31 = arith.constant 0 : index
    %26 = vector.load %arg11[%c0_29, %c2_30, %c0_31] : memref<8x12x8xf32, #tpu.memory_space<vmem>>, vector<8x8x8xf32>
    %c0_32 = arith.constant 0 : index
    %c3 = arith.constant 3 : index
    %c0_33 = arith.constant 0 : index
    %27 = vector.load %arg11[%c0_32, %c3, %c0_33] : memref<8x12x8xf32, #tpu.memory_space<vmem>>, vector<8x8x8xf32>
    %c0_34 = arith.constant 0 : index
    %c4 = arith.constant 4 : index
    %c0_35 = arith.constant 0 : index
    %28 = vector.load %arg11[%c0_34, %c4, %c0_35] : memref<8x12x8xf32, #tpu.memory_space<vmem>>, vector<8x8x8xf32>
    %29 = tpu.concatenate %24, %25, %26, %27, %28 in 2 : vector<8x8x8xf32>, vector<8x8x8xf32>, vector<8x8x8xf32>, vector<8x8x8xf32>, vector<8x8x8xf32> -> vector<8x8x40xf32>
    %30 = vector.shape_cast %29 : vector<8x8x40xf32> to vector<64x40xf32>
    %31 = arith.truncf %30 : vector<64x40xf32> to vector<64x40xbf16>
    %c0_36 = arith.constant 0 : index
    %c0_37 = arith.constant 0 : index
    %c0_38 = arith.constant 0 : index
    %32 = vector.load %arg4[%c0_36, %c0_37, %c0_38] : memref<5x8x16xbf16, #tpu.memory_space<vmem>>, vector<5x8x16xbf16>
    %33 = vector.shape_cast %32 : vector<5x8x16xbf16> to vector<40x16xbf16>
    %cst_39 = arith.constant dense<0.000000e+00> : vector<64x16xf32>
    %34 = tpu.matmul %31, %33, %cst_39 {dimension_numbers = #tpu.dot_dimension_numbers<[1], [0], [0], [1], [0, 0, 1, 1], [], []>} : vector<64x40xbf16>, vector<40x16xbf16>, vector<64x16xf32> -> vector<64x16xf32>
    %c0_40 = arith.constant 0 : index
    %c0_41 = arith.constant 0 : index
    %35 = vector.load %arg5[%c0_40, %c0_41] : memref<1x16xf32, #tpu.memory_space<vmem>>, vector<1x16xf32>
    %36 = vector.broadcast %35 : vector<1x16xf32> to vector<64x16xf32>
    %37 = arith.addf %34, %36 : vector<64x16xf32>
    %cst_42 = arith.constant 0.000000e+00 : f32
    %38 = vector.broadcast %cst_42 : f32 to vector<64x16xf32>
    %39 = arith.cmpf oge, %37, %38 : vector<64x16xf32>
    %cst_43 = arith.constant 1.000000e-01 : f32
    %40 = vector.broadcast %cst_43 : f32 to vector<64x16xf32>
    %41 = arith.mulf %40, %37 : vector<64x16xf32>
    %42 = arith.select %39, %37, %41 : vector<64x16xi1>, vector<64x16xf32>
    %43 = vector.shape_cast %42 : vector<64x16xf32> to vector<8x8x16xf32>
    %44 = arith.truncf %43 : vector<8x8x16xf32> to vector<8x8x16xbf16>
    %c0_44 = arith.constant 0 : index
    %c0_45 = arith.constant 0 : index
    %c0_46 = arith.constant 0 : index
    %45 = vector.load %arg9[%c0_44, %c0_45, %c0_46] : memref<8x8x16xbf16, #tpu.memory_space<vmem>>, vector<8x8x16xbf16>
    tpu.vector_store %arg9[%c0_44, %c0_45, %c0_46], %44 {strides = array<i32>} : memref<8x8x16xbf16, #tpu.memory_space<vmem>>, vector<8x8x16xbf16>,
    %cst_47 = arith.constant 0.000000e+00 : f32
    %46 = vector.broadcast %cst_47 : f32 to vector<8x1x16xf32>
    %c0_48 = arith.constant 0 : index
    %c0_49 = arith.constant 0 : index
    %c0_50 = arith.constant 0 : index
    %47 = vector.load %arg12[%c0_48, %c0_49, %c0_50] : memref<8x10x16xf32, #tpu.memory_space<vmem>>, vector<8x1x16xf32>
    tpu.vector_store %arg12[%c0_48, %c0_49, %c0_50], %46 {strides = array<i32>} : memref<8x10x16xf32, #tpu.memory_space<vmem>>, vector<8x1x16xf32>,
    %cst_51 = arith.constant 0.000000e+00 : f32
    %48 = vector.broadcast %cst_51 : f32 to vector<8x1x16xf32>
    %c0_52 = arith.constant 0 : index
    %c9 = arith.constant 9 : index
    %c0_53 = arith.constant 0 : index
    %49 = vector.load %arg12[%c0_52, %c9, %c0_53] : memref<8x10x16xf32, #tpu.memory_space<vmem>>, vector<8x1x16xf32>
    tpu.vector_store %arg12[%c0_52, %c9, %c0_53], %48 {strides = array<i32>} : memref<8x10x16xf32, #tpu.memory_space<vmem>>, vector<8x1x16xf32>,
    %c0_54 = arith.constant 0 : index
    %c1_55 = arith.constant 1 : index
    %c0_56 = arith.constant 0 : index
    %50 = vector.load %arg12[%c0_54, %c1_55, %c0_56] : memref<8x10x16xf32, #tpu.memory_space<vmem>>, vector<8x8x16xf32>
    tpu.vector_store %arg12[%c0_54, %c1_55, %c0_56], %43 {strides = array<i32>} : memref<8x10x16xf32, #tpu.memory_space<vmem>>, vector<8x8x16xf32>,
    %c0_57 = arith.constant 0 : index
    %c0_58 = arith.constant 0 : index
    %c0_59 = arith.constant 0 : index
    %51 = vector.load %arg12[%c0_57, %c0_58, %c0_59] : memref<8x10x16xf32, #tpu.memory_space<vmem>>, vector<8x8x16xf32>
    %c0_60 = arith.constant 0 : index
    %c1_61 = arith.constant 1 : index
    %c0_62 = arith.constant 0 : index
    %52 = vector.load %arg12[%c0_60, %c1_61, %c0_62] : memref<8x10x16xf32, #tpu.memory_space<vmem>>, vector<8x8x16xf32>
    %c0_63 = arith.constant 0 : index
    %c2_64 = arith.constant 2 : index
    %c0_65 = arith.constant 0 : index
    %53 = vector.load %arg12[%c0_63, %c2_64, %c0_65] : memref<8x10x16xf32, #tpu.memory_space<vmem>>, vector<8x8x16xf32>
    %54 = tpu.concatenate %51, %52, %53 in 2 : vector<8x8x16xf32>, vector<8x8x16xf32>, vector<8x8x16xf32> -> vector<8x8x48xf32>
    %55 = vector.shape_cast %54 : vector<8x8x48xf32> to vector<64x48xf32>
    %56 = arith.truncf %55 : vector<64x48xf32> to vector<64x48xbf16>
    %c0_66 = arith.constant 0 : index
    %c0_67 = arith.constant 0 : index
    %c0_68 = arith.constant 0 : index
    %57 = vector.load %arg6[%c0_66, %c0_67, %c0_68] : memref<3x16x4xbf16, #tpu.memory_space<vmem>>, vector<3x16x4xbf16>
    %58 = vector.shape_cast %57 : vector<3x16x4xbf16> to vector<48x4xbf16>
    %cst_69 = arith.constant dense<0.000000e+00> : vector<64x4xf32>
    %59 = tpu.matmul %56, %58, %cst_69 {dimension_numbers = #tpu.dot_dimension_numbers<[1], [0], [0], [1], [0, 0, 1, 1], [], []>} : vector<64x48xbf16>, vector<48x4xbf16>, vector<64x4xf32> -> vector<64x4xf32>
    %c0_70 = arith.constant 0 : index
    %c0_71 = arith.constant 0 : index
    %60 = vector.load %arg7[%c0_70, %c0_71] : memref<1x4xf32, #tpu.memory_space<vmem>>, vector<1x4xf32>
    %61 = vector.broadcast %60 : vector<1x4xf32> to vector<64x4xf32>
    %62 = arith.addf %59, %61 : vector<64x4xf32>
    %63 = vector.shape_cast %62 : vector<64x4xf32> to vector<8x8x4xf32>
    %c0_72 = arith.constant 0 : index
    %c0_73 = arith.constant 0 : index
    %c0_74 = arith.constant 0 : index
    %64 = vector.load %arg10[%c0_72, %c0_73, %c0_74] : memref<8x8x4xf32, #tpu.memory_space<vmem>>, vector<8x8x4xf32>
    tpu.vector_store %arg10[%c0_72, %c0_73, %c0_74], %63 {strides = array<i32>} : memref<8x8x4xf32, #tpu.memory_space<vmem>>, vector<8x8x4xf32>,
    return
  }
  func.func @transform_0(%arg0: i32) -> (i32, i32, i32) {
    %c0_i32 = arith.constant 0 : i32
    %c0_i32_0 = arith.constant 0 : i32
    %c0_i32_1 = arith.constant 0 : i32
    return %arg0, %c0_i32, %c0_i32_0 : i32, i32, i32
  }
  func.func @transform_1(%arg0: i32) -> (i32, i32, i32) {
    %c0_i32 = arith.constant 0 : i32
    %c0_i32_0 = arith.constant 0 : i32
    %c0_i32_1 = arith.constant 0 : i32
    %c0_i32_2 = arith.constant 0 : i32
    return %c0_i32, %c0_i32_0, %c0_i32_1 : i32, i32, i32
  }
  func.func @transform_2(%arg0: i32) -> (i32, i32) {
    %c0_i32 = arith.constant 0 : i32
    %c0_i32_0 = arith.constant 0 : i32
    %c0_i32_1 = arith.constant 0 : i32
    return %c0_i32, %c0_i32_0 : i32, i32
  }
  func.func @transform_3(%arg0: i32) -> (i32, i32, i32) {
    %c0_i32 = arith.constant 0 : i32
    %c0_i32_0 = arith.constant 0 : i32
    %c0_i32_1 = arith.constant 0 : i32
    %c0_i32_2 = arith.constant 0 : i32
    return %c0_i32, %c0_i32_0, %c0_i32_1 : i32, i32, i32
  }
  func.func @transform_4(%arg0: i32) -> (i32, i32) {
    %c0_i32 = arith.constant 0 : i32
    %c0_i32_0 = arith.constant 0 : i32
    %c0_i32_1 = arith.constant 0 : i32
    return %c0_i32, %c0_i32_0 : i32, i32
  }
  func.func @transform_5(%arg0: i32) -> (i32, i32, i32) {
    %c0_i32 = arith.constant 0 : i32
    %c0_i32_0 = arith.constant 0 : i32
    %c0_i32_1 = arith.constant 0 : i32
    %c0_i32_2 = arith.constant 0 : i32
    return %c0_i32, %c0_i32_0, %c0_i32_1 : i32, i32, i32
  }
  func.func @transform_6(%arg0: i32) -> (i32, i32) {
    %c0_i32 = arith.constant 0 : i32
    %c0_i32_0 = arith.constant 0 : i32
    %c0_i32_1 = arith.constant 0 : i32
    return %c0_i32, %c0_i32_0 : i32, i32
  }
  func.func @transform_7(%arg0: i32) -> (i32, i32, i32) {
    %c0_i32 = arith.constant 0 : i32
    %c0_i32_0 = arith.constant 0 : i32
    %c0_i32_1 = arith.constant 0 : i32
    return %arg0, %c0_i32, %c0_i32_0 : i32, i32, i32
  }
  func.func @transform_8(%arg0: i32) -> (i32, i32, i32) {
    %c0_i32 = arith.constant 0 : i32
    %c0_i32_0 = arith.constant 0 : i32
    %c0_i32_1 = arith.constant 0 : i32
    return %arg0, %c0_i32, %c0_i32_0 : i32, i32, i32
  }
  func.func @transform_9(%arg0: i32) -> (i32, i32, i32) {
    %c0_i32 = arith.constant 0 : i32
    %c0_i32_0 = arith.constant 0 : i32
    %c0_i32_1 = arith.constant 0 : i32
    return %arg0, %c0_i32, %c0_i32_0 : i32, i32, i32
  }
}

module attributes {stable_mosaic.version = 11 : i64} {
  func.func @kernel(%arg0: i32, %arg1: memref<8x9x12xf32, #tpu.memory_space<vmem>>, %arg2: memref<2x12x8xbf16, #tpu.memory_space<vmem>>, %arg3: memref<1x8xf32, #tpu.memory_space<vmem>>, %arg4: memref<5x8x16xbf16, #tpu.memory_space<vmem>>, %arg5: memref<1x16xf32, #tpu.memory_space<vmem>>, %arg6: memref<3x16x4xbf16, #tpu.memory_space<vmem>>, %arg7: memref<1x4xf32, #tpu.memory_space<vmem>>, %arg8: memref<8x8x8xbf16, #tpu.memory_space<vmem>>, %arg9: memref<8x8x16xbf16, #tpu.memory_space<vmem>>, %arg10: memref<8x8x4xf32, #tpu.memory_space<vmem>>, %arg11: memref<8x12x8xf32, #tpu.memory_space<vmem>>, %arg12: memref<8x10x16xf32, #tpu.memory_space<vmem>>) attributes {dimension_semantics = [#tpu.dimension_semantics<parallel>], iteration_bounds = array<i64: 2>, scalar_prefetch = 0 : i64, scratch_operands = 2 : i64, tpu.core_type = #tpu.core_type<tc>, window_params = [{transform_indices = @transform_0, window_bounds = array<i64: 8, 9, 12>}, {pipeline_mode = #tpu.pipeline_mode<synchronous>, transform_indices = @transform_1, window_bounds = array<i64: 2, 12, 8>}, {pipeline_mode = #tpu.pipeline_mode<synchronous>, transform_indices = @transform_2, window_bounds = array<i64: 1, 8>}, {pipeline_mode = #tpu.pipeline_mode<synchronous>, transform_indices = @transform_3, window_bounds = array<i64: 5, 8, 16>}, {pipeline_mode = #tpu.pipeline_mode<synchronous>, transform_indices = @transform_4, window_bounds = array<i64: 1, 16>}, {pipeline_mode = #tpu.pipeline_mode<synchronous>, transform_indices = @transform_5, window_bounds = array<i64: 3, 16, 4>}, {pipeline_mode = #tpu.pipeline_mode<synchronous>, transform_indices = @transform_6, window_bounds = array<i64: 1, 4>}, {transform_indices = @transform_7, window_bounds = array<i64: 8, 8, 8>}, {transform_indices = @transform_8, window_bounds = array<i64: 8, 8, 16>}, {transform_indices = @transform_9, window_bounds = array<i64: 8, 8, 4>}]} {
    %cst = arith.constant 0.000000e+00 : f32
    %0 = vector.broadcast %cst : f32 to vector<64x8xf32>
    %c0 = arith.constant 0 : index
    %c0_0 = arith.constant 0 : index
    %c0_1 = arith.constant 0 : index
    %1 = vector.load %arg1[%c0, %c0_0, %c0_1] : memref<8x9x12xf32, #tpu.memory_space<vmem>>, vector<8x8x12xf32>
    %2 = vector.shape_cast %1 : vector<8x8x12xf32> to vector<64x12xf32>
    %3 = arith.truncf %2 : vector<64x12xf32> to vector<64x12xbf16>
    %c0_2 = arith.constant 0 : index
    %c0_3 = arith.constant 0 : index
    %c0_4 = arith.constant 0 : index
    %4 = vector.load %arg2[%c0_2, %c0_3, %c0_4] : memref<2x12x8xbf16, #tpu.memory_space<vmem>>, vector<1x12x8xbf16>
    %5 = vector.shape_cast %4 : vector<1x12x8xbf16> to vector<12x8xbf16>
    %cst_5 = arith.constant dense<0.000000e+00> : vector<64x8xf32>
    %6 = tpu.matmul %3, %5, %cst_5 {dimension_numbers = #tpu.dot_dimension_numbers<[1], [0], [0], [1], [0, 0, 1, 1], [], []>} : vector<64x12xbf16>, vector<12x8xbf16>, vector<64x8xf32> -> vector<64x8xf32>
    %7 = arith.addf %0, %6 : vector<64x8xf32>
    %c0_6 = arith.constant 0 : index
    %c1 = arith.constant 1 : index
    %c0_7 = arith.constant 0 : index
    %8 = vector.load %arg1[%c0_6, %c1, %c0_7] : memref<8x9x12xf32, #tpu.memory_space<vmem>>, vector<8x8x12xf32>
    %9 = vector.shape_cast %8 : vector<8x8x12xf32> to vector<64x12xf32>
    %10 = arith.truncf %9 : vector<64x12xf32> to vector<64x12xbf16>
    %c1_8 = arith.constant 1 : index
    %c0_9 = arith.constant 0 : index
    %c0_10 = arith.constant 0 : index
    %11 = vector.load %arg2[%c1_8, %c0_9, %c0_10] : memref<2x12x8xbf16, #tpu.memory_space<vmem>>, vector<1x12x8xbf16>
    %12 = vector.shape_cast %11 : vector<1x12x8xbf16> to vector<12x8xbf16>
    %cst_11 = arith.constant dense<0.000000e+00> : vector<64x8xf32>
    %13 = tpu.matmul %10, %12, %cst_11 {dimension_numbers = #tpu.dot_dimension_numbers<[1], [0], [0], [1], [0, 0, 1, 1], [], []>} : vector<64x12xbf16>, vector<12x8xbf16>, vector<64x8xf32> -> vector<64x8xf32>
    %14 = arith.addf %7, %13 : vector<64x8xf32>
    %c0_12 = arith.constant 0 : index
    %c0_13 = arith.constant 0 : index
    %15 = vector.load %arg3[%c0_12, %c0_13] : memref<1x8xf32, #tpu.memory_space<vmem>>, vector<1x8xf32>
    %16 = vector.broadcast %15 : vector<1x8xf32> to vector<64x8xf32>
    %17 = arith.addf %14, %16 : vector<64x8xf32>
    %cst_14 = arith.constant 0.000000e+00 : f32
    %18 = vector.broadcast %cst_14 : f32 to vector<64x8xf32>
    %19 = arith.cmpf oge, %17, %18 : vector<64x8xf32>
    %cst_15 = arith.constant 1.000000e-01 : f32
    %20 = vector.broadcast %cst_15 : f32 to vector<64x8xf32>
    %21 = arith.mulf %20, %17 : vector<64x8xf32>
    %22 = arith.select %19, %17, %21 : vector<64x8xi1>, vector<64x8xf32>
    %23 = vector.shape_cast %22 : vector<64x8xf32> to vector<8x8x8xf32>
    %24 = arith.truncf %23 : vector<8x8x8xf32> to vector<8x8x8xbf16>
    %c0_16 = arith.constant 0 : index
    %c0_17 = arith.constant 0 : index
    %c0_18 = arith.constant 0 : index
    %25 = vector.load %arg8[%c0_16, %c0_17, %c0_18] : memref<8x8x8xbf16, #tpu.memory_space<vmem>>, vector<8x8x8xbf16>
    tpu.vector_store %arg8[%c0_16, %c0_17, %c0_18], %24 {strides = array<i32>} : memref<8x8x8xbf16, #tpu.memory_space<vmem>>, vector<8x8x8xbf16>,
    %cst_19 = arith.constant 0.000000e+00 : f32
    %26 = vector.broadcast %cst_19 : f32 to vector<8x2x8xf32>
    %c0_20 = arith.constant 0 : index
    %c0_21 = arith.constant 0 : index
    %c0_22 = arith.constant 0 : index
    %27 = vector.load %arg11[%c0_20, %c0_21, %c0_22] : memref<8x12x8xf32, #tpu.memory_space<vmem>>, vector<8x2x8xf32>
    tpu.vector_store %arg11[%c0_20, %c0_21, %c0_22], %26 {strides = array<i32>} : memref<8x12x8xf32, #tpu.memory_space<vmem>>, vector<8x2x8xf32>,
    %cst_23 = arith.constant 0.000000e+00 : f32
    %28 = vector.broadcast %cst_23 : f32 to vector<8x2x8xf32>
    %c0_24 = arith.constant 0 : index
    %c10 = arith.constant 10 : index
    %c0_25 = arith.constant 0 : index
    %29 = vector.load %arg11[%c0_24, %c10, %c0_25] : memref<8x12x8xf32, #tpu.memory_space<vmem>>, vector<8x2x8xf32>
    tpu.vector_store %arg11[%c0_24, %c10, %c0_25], %28 {strides = array<i32>} : memref<8x12x8xf32, #tpu.memory_space<vmem>>, vector<8x2x8xf32>,
    %c0_26 = arith.constant 0 : index
    %c2 = arith.constant 2 : index
    %c0_27 = arith.constant 0 : index
    %30 = vector.load %arg11[%c0_26, %c2, %c0_27] : memref<8x12x8xf32, #tpu.memory_space<vmem>>, vector<8x8x8xf32>
    tpu.vector_store %arg11[%c0_26, %c2, %c0_27], %23 {strides = array<i32>} : memref<8x12x8xf32, #tpu.memory_space<vmem>>, vector<8x8x8xf32>,
    %cst_28 = arith.constant 0.000000e+00 : f32
    %31 = vector.broadcast %cst_28 : f32 to vector<64x16xf32>
    %c0_29 = arith.constant 0 : index
    %c0_30 = arith.constant 0 : index
    %c0_31 = arith.constant 0 : index
    %32 = vector.load %arg11[%c0_29, %c0_30, %c0_31] : memref<8x12x8xf32, #tpu.memory_space<vmem>>, vector<8x8x8xf32>
    %33 = vector.shape_cast %32 : vector<8x8x8xf32> to vector<64x8xf32>
    %34 = arith.truncf %33 : vector<64x8xf32> to vector<64x8xbf16>
    %c0_32 = arith.constant 0 : index
    %c0_33 = arith.constant 0 : index
    %c0_34 = arith.constant 0 : index
    %35 = vector.load %arg4[%c0_32, %c0_33, %c0_34] : memref<5x8x16xbf16, #tpu.memory_space<vmem>>, vector<1x8x16xbf16>
    %36 = vector.shape_cast %35 : vector<1x8x16xbf16> to vector<8x16xbf16>
    %cst_35 = arith.constant dense<0.000000e+00> : vector<64x16xf32>
    %37 = tpu.matmul %34, %36, %cst_35 {dimension_numbers = #tpu.dot_dimension_numbers<[1], [0], [0], [1], [0, 0, 1, 1], [], []>} : vector<64x8xbf16>, vector<8x16xbf16>, vector<64x16xf32> -> vector<64x16xf32>
    %38 = arith.addf %31, %37 : vector<64x16xf32>
    %c0_36 = arith.constant 0 : index
    %c1_37 = arith.constant 1 : index
    %c0_38 = arith.constant 0 : index
    %39 = vector.load %arg11[%c0_36, %c1_37, %c0_38] : memref<8x12x8xf32, #tpu.memory_space<vmem>>, vector<8x8x8xf32>
    %40 = vector.shape_cast %39 : vector<8x8x8xf32> to vector<64x8xf32>
    %41 = arith.truncf %40 : vector<64x8xf32> to vector<64x8xbf16>
    %c1_39 = arith.constant 1 : index
    %c0_40 = arith.constant 0 : index
    %c0_41 = arith.constant 0 : index
    %42 = vector.load %arg4[%c1_39, %c0_40, %c0_41] : memref<5x8x16xbf16, #tpu.memory_space<vmem>>, vector<1x8x16xbf16>
    %43 = vector.shape_cast %42 : vector<1x8x16xbf16> to vector<8x16xbf16>
    %cst_42 = arith.constant dense<0.000000e+00> : vector<64x16xf32>
    %44 = tpu.matmul %41, %43, %cst_42 {dimension_numbers = #tpu.dot_dimension_numbers<[1], [0], [0], [1], [0, 0, 1, 1], [], []>} : vector<64x8xbf16>, vector<8x16xbf16>, vector<64x16xf32> -> vector<64x16xf32>
    %45 = arith.addf %38, %44 : vector<64x16xf32>
    %c0_43 = arith.constant 0 : index
    %c2_44 = arith.constant 2 : index
    %c0_45 = arith.constant 0 : index
    %46 = vector.load %arg11[%c0_43, %c2_44, %c0_45] : memref<8x12x8xf32, #tpu.memory_space<vmem>>, vector<8x8x8xf32>
    %47 = vector.shape_cast %46 : vector<8x8x8xf32> to vector<64x8xf32>
    %48 = arith.truncf %47 : vector<64x8xf32> to vector<64x8xbf16>
    %c2_46 = arith.constant 2 : index
    %c0_47 = arith.constant 0 : index
    %c0_48 = arith.constant 0 : index
    %49 = vector.load %arg4[%c2_46, %c0_47, %c0_48] : memref<5x8x16xbf16, #tpu.memory_space<vmem>>, vector<1x8x16xbf16>
    %50 = vector.shape_cast %49 : vector<1x8x16xbf16> to vector<8x16xbf16>
    %cst_49 = arith.constant dense<0.000000e+00> : vector<64x16xf32>
    %51 = tpu.matmul %48, %50, %cst_49 {dimension_numbers = #tpu.dot_dimension_numbers<[1], [0], [0], [1], [0, 0, 1, 1], [], []>} : vector<64x8xbf16>, vector<8x16xbf16>, vector<64x16xf32> -> vector<64x16xf32>
    %52 = arith.addf %45, %51 : vector<64x16xf32>
    %c0_50 = arith.constant 0 : index
    %c3 = arith.constant 3 : index
    %c0_51 = arith.constant 0 : index
    %53 = vector.load %arg11[%c0_50, %c3, %c0_51] : memref<8x12x8xf32, #tpu.memory_space<vmem>>, vector<8x8x8xf32>
    %54 = vector.shape_cast %53 : vector<8x8x8xf32> to vector<64x8xf32>
    %55 = arith.truncf %54 : vector<64x8xf32> to vector<64x8xbf16>
    %c3_52 = arith.constant 3 : index
    %c0_53 = arith.constant 0 : index
    %c0_54 = arith.constant 0 : index
    %56 = vector.load %arg4[%c3_52, %c0_53, %c0_54] : memref<5x8x16xbf16, #tpu.memory_space<vmem>>, vector<1x8x16xbf16>
    %57 = vector.shape_cast %56 : vector<1x8x16xbf16> to vector<8x16xbf16>
    %cst_55 = arith.constant dense<0.000000e+00> : vector<64x16xf32>
    %58 = tpu.matmul %55, %57, %cst_55 {dimension_numbers = #tpu.dot_dimension_numbers<[1], [0], [0], [1], [0, 0, 1, 1], [], []>} : vector<64x8xbf16>, vector<8x16xbf16>, vector<64x16xf32> -> vector<64x16xf32>
    %59 = arith.addf %52, %58 : vector<64x16xf32>
    %c0_56 = arith.constant 0 : index
    %c4 = arith.constant 4 : index
    %c0_57 = arith.constant 0 : index
    %60 = vector.load %arg11[%c0_56, %c4, %c0_57] : memref<8x12x8xf32, #tpu.memory_space<vmem>>, vector<8x8x8xf32>
    %61 = vector.shape_cast %60 : vector<8x8x8xf32> to vector<64x8xf32>
    %62 = arith.truncf %61 : vector<64x8xf32> to vector<64x8xbf16>
    %c4_58 = arith.constant 4 : index
    %c0_59 = arith.constant 0 : index
    %c0_60 = arith.constant 0 : index
    %63 = vector.load %arg4[%c4_58, %c0_59, %c0_60] : memref<5x8x16xbf16, #tpu.memory_space<vmem>>, vector<1x8x16xbf16>
    %64 = vector.shape_cast %63 : vector<1x8x16xbf16> to vector<8x16xbf16>
    %cst_61 = arith.constant dense<0.000000e+00> : vector<64x16xf32>
    %65 = tpu.matmul %62, %64, %cst_61 {dimension_numbers = #tpu.dot_dimension_numbers<[1], [0], [0], [1], [0, 0, 1, 1], [], []>} : vector<64x8xbf16>, vector<8x16xbf16>, vector<64x16xf32> -> vector<64x16xf32>
    %66 = arith.addf %59, %65 : vector<64x16xf32>
    %c0_62 = arith.constant 0 : index
    %c0_63 = arith.constant 0 : index
    %67 = vector.load %arg5[%c0_62, %c0_63] : memref<1x16xf32, #tpu.memory_space<vmem>>, vector<1x16xf32>
    %68 = vector.broadcast %67 : vector<1x16xf32> to vector<64x16xf32>
    %69 = arith.addf %66, %68 : vector<64x16xf32>
    %cst_64 = arith.constant 0.000000e+00 : f32
    %70 = vector.broadcast %cst_64 : f32 to vector<64x16xf32>
    %71 = arith.cmpf oge, %69, %70 : vector<64x16xf32>
    %cst_65 = arith.constant 1.000000e-01 : f32
    %72 = vector.broadcast %cst_65 : f32 to vector<64x16xf32>
    %73 = arith.mulf %72, %69 : vector<64x16xf32>
    %74 = arith.select %71, %69, %73 : vector<64x16xi1>, vector<64x16xf32>
    %75 = vector.shape_cast %74 : vector<64x16xf32> to vector<8x8x16xf32>
    %76 = arith.truncf %75 : vector<8x8x16xf32> to vector<8x8x16xbf16>
    %c0_66 = arith.constant 0 : index
    %c0_67 = arith.constant 0 : index
    %c0_68 = arith.constant 0 : index
    %77 = vector.load %arg9[%c0_66, %c0_67, %c0_68] : memref<8x8x16xbf16, #tpu.memory_space<vmem>>, vector<8x8x16xbf16>
    tpu.vector_store %arg9[%c0_66, %c0_67, %c0_68], %76 {strides = array<i32>} : memref<8x8x16xbf16, #tpu.memory_space<vmem>>, vector<8x8x16xbf16>,
    %cst_69 = arith.constant 0.000000e+00 : f32
    %78 = vector.broadcast %cst_69 : f32 to vector<8x1x16xf32>
    %c0_70 = arith.constant 0 : index
    %c0_71 = arith.constant 0 : index
    %c0_72 = arith.constant 0 : index
    %79 = vector.load %arg12[%c0_70, %c0_71, %c0_72] : memref<8x10x16xf32, #tpu.memory_space<vmem>>, vector<8x1x16xf32>
    tpu.vector_store %arg12[%c0_70, %c0_71, %c0_72], %78 {strides = array<i32>} : memref<8x10x16xf32, #tpu.memory_space<vmem>>, vector<8x1x16xf32>,
    %cst_73 = arith.constant 0.000000e+00 : f32
    %80 = vector.broadcast %cst_73 : f32 to vector<8x1x16xf32>
    %c0_74 = arith.constant 0 : index
    %c9 = arith.constant 9 : index
    %c0_75 = arith.constant 0 : index
    %81 = vector.load %arg12[%c0_74, %c9, %c0_75] : memref<8x10x16xf32, #tpu.memory_space<vmem>>, vector<8x1x16xf32>
    tpu.vector_store %arg12[%c0_74, %c9, %c0_75], %80 {strides = array<i32>} : memref<8x10x16xf32, #tpu.memory_space<vmem>>, vector<8x1x16xf32>,
    %c0_76 = arith.constant 0 : index
    %c1_77 = arith.constant 1 : index
    %c0_78 = arith.constant 0 : index
    %82 = vector.load %arg12[%c0_76, %c1_77, %c0_78] : memref<8x10x16xf32, #tpu.memory_space<vmem>>, vector<8x8x16xf32>
    tpu.vector_store %arg12[%c0_76, %c1_77, %c0_78], %75 {strides = array<i32>} : memref<8x10x16xf32, #tpu.memory_space<vmem>>, vector<8x8x16xf32>,
    %cst_79 = arith.constant 0.000000e+00 : f32
    %83 = vector.broadcast %cst_79 : f32 to vector<64x4xf32>
    %c0_80 = arith.constant 0 : index
    %c0_81 = arith.constant 0 : index
    %c0_82 = arith.constant 0 : index
    %84 = vector.load %arg12[%c0_80, %c0_81, %c0_82] : memref<8x10x16xf32, #tpu.memory_space<vmem>>, vector<8x8x16xf32>
    %85 = vector.shape_cast %84 : vector<8x8x16xf32> to vector<64x16xf32>
    %86 = arith.truncf %85 : vector<64x16xf32> to vector<64x16xbf16>
    %c0_83 = arith.constant 0 : index
    %c0_84 = arith.constant 0 : index
    %c0_85 = arith.constant 0 : index
    %87 = vector.load %arg6[%c0_83, %c0_84, %c0_85] : memref<3x16x4xbf16, #tpu.memory_space<vmem>>, vector<1x16x4xbf16>
    %88 = vector.shape_cast %87 : vector<1x16x4xbf16> to vector<16x4xbf16>
    %cst_86 = arith.constant dense<0.000000e+00> : vector<64x4xf32>
    %89 = tpu.matmul %86, %88, %cst_86 {dimension_numbers = #tpu.dot_dimension_numbers<[1], [0], [0], [1], [0, 0, 1, 1], [], []>} : vector<64x16xbf16>, vector<16x4xbf16>, vector<64x4xf32> -> vector<64x4xf32>
    %90 = arith.addf %83, %89 : vector<64x4xf32>
    %c0_87 = arith.constant 0 : index
    %c1_88 = arith.constant 1 : index
    %c0_89 = arith.constant 0 : index
    %91 = vector.load %arg12[%c0_87, %c1_88, %c0_89] : memref<8x10x16xf32, #tpu.memory_space<vmem>>, vector<8x8x16xf32>
    %92 = vector.shape_cast %91 : vector<8x8x16xf32> to vector<64x16xf32>
    %93 = arith.truncf %92 : vector<64x16xf32> to vector<64x16xbf16>
    %c1_90 = arith.constant 1 : index
    %c0_91 = arith.constant 0 : index
    %c0_92 = arith.constant 0 : index
    %94 = vector.load %arg6[%c1_90, %c0_91, %c0_92] : memref<3x16x4xbf16, #tpu.memory_space<vmem>>, vector<1x16x4xbf16>
    %95 = vector.shape_cast %94 : vector<1x16x4xbf16> to vector<16x4xbf16>
    %cst_93 = arith.constant dense<0.000000e+00> : vector<64x4xf32>
    %96 = tpu.matmul %93, %95, %cst_93 {dimension_numbers = #tpu.dot_dimension_numbers<[1], [0], [0], [1], [0, 0, 1, 1], [], []>} : vector<64x16xbf16>, vector<16x4xbf16>, vector<64x4xf32> -> vector<64x4xf32>
    %97 = arith.addf %90, %96 : vector<64x4xf32>
    %c0_94 = arith.constant 0 : index
    %c2_95 = arith.constant 2 : index
    %c0_96 = arith.constant 0 : index
    %98 = vector.load %arg12[%c0_94, %c2_95, %c0_96] : memref<8x10x16xf32, #tpu.memory_space<vmem>>, vector<8x8x16xf32>
    %99 = vector.shape_cast %98 : vector<8x8x16xf32> to vector<64x16xf32>
    %100 = arith.truncf %99 : vector<64x16xf32> to vector<64x16xbf16>
    %c2_97 = arith.constant 2 : index
    %c0_98 = arith.constant 0 : index
    %c0_99 = arith.constant 0 : index
    %101 = vector.load %arg6[%c2_97, %c0_98, %c0_99] : memref<3x16x4xbf16, #tpu.memory_space<vmem>>, vector<1x16x4xbf16>
    %102 = vector.shape_cast %101 : vector<1x16x4xbf16> to vector<16x4xbf16>
    %cst_100 = arith.constant dense<0.000000e+00> : vector<64x4xf32>
    %103 = tpu.matmul %100, %102, %cst_100 {dimension_numbers = #tpu.dot_dimension_numbers<[1], [0], [0], [1], [0, 0, 1, 1], [], []>} : vector<64x16xbf16>, vector<16x4xbf16>, vector<64x4xf32> -> vector<64x4xf32>
    %104 = arith.addf %97, %103 : vector<64x4xf32>
    %c0_101 = arith.constant 0 : index
    %c0_102 = arith.constant 0 : index
    %105 = vector.load %arg7[%c0_101, %c0_102] : memref<1x4xf32, #tpu.memory_space<vmem>>, vector<1x4xf32>
    %106 = vector.broadcast %105 : vector<1x4xf32> to vector<64x4xf32>
    %107 = arith.addf %104, %106 : vector<64x4xf32>
    %108 = vector.shape_cast %107 : vector<64x4xf32> to vector<8x8x4xf32>
    %c0_103 = arith.constant 0 : index
    %c0_104 = arith.constant 0 : index
    %c0_105 = arith.constant 0 : index
    %109 = vector.load %arg10[%c0_103, %c0_104, %c0_105] : memref<8x8x4xf32, #tpu.memory_space<vmem>>, vector<8x8x4xf32>
    tpu.vector_store %arg10[%c0_103, %c0_104, %c0_105], %108 {strides = array<i32>} : memref<8x8x4xf32, #tpu.memory_space<vmem>>, vector<8x8x4xf32>,
    return
  }
  func.func @transform_0(%arg0: i32) -> (i32, i32, i32) {
    %c0_i32 = arith.constant 0 : i32
    %c0_i32_0 = arith.constant 0 : i32
    %c0_i32_1 = arith.constant 0 : i32
    return %arg0, %c0_i32, %c0_i32_0 : i32, i32, i32
  }
  func.func @transform_1(%arg0: i32) -> (i32, i32, i32) {
    %c0_i32 = arith.constant 0 : i32
    %c0_i32_0 = arith.constant 0 : i32
    %c0_i32_1 = arith.constant 0 : i32
    %c0_i32_2 = arith.constant 0 : i32
    return %c0_i32, %c0_i32_0, %c0_i32_1 : i32, i32, i32
  }
  func.func @transform_2(%arg0: i32) -> (i32, i32) {
    %c0_i32 = arith.constant 0 : i32
    %c0_i32_0 = arith.constant 0 : i32
    %c0_i32_1 = arith.constant 0 : i32
    return %c0_i32, %c0_i32_0 : i32, i32
  }
  func.func @transform_3(%arg0: i32) -> (i32, i32, i32) {
    %c0_i32 = arith.constant 0 : i32
    %c0_i32_0 = arith.constant 0 : i32
    %c0_i32_1 = arith.constant 0 : i32
    %c0_i32_2 = arith.constant 0 : i32
    return %c0_i32, %c0_i32_0, %c0_i32_1 : i32, i32, i32
  }
  func.func @transform_4(%arg0: i32) -> (i32, i32) {
    %c0_i32 = arith.constant 0 : i32
    %c0_i32_0 = arith.constant 0 : i32
    %c0_i32_1 = arith.constant 0 : i32
    return %c0_i32, %c0_i32_0 : i32, i32
  }
  func.func @transform_5(%arg0: i32) -> (i32, i32, i32) {
    %c0_i32 = arith.constant 0 : i32
    %c0_i32_0 = arith.constant 0 : i32
    %c0_i32_1 = arith.constant 0 : i32
    %c0_i32_2 = arith.constant 0 : i32
    return %c0_i32, %c0_i32_0, %c0_i32_1 : i32, i32, i32
  }
  func.func @transform_6(%arg0: i32) -> (i32, i32) {
    %c0_i32 = arith.constant 0 : i32
    %c0_i32_0 = arith.constant 0 : i32
    %c0_i32_1 = arith.constant 0 : i32
    return %c0_i32, %c0_i32_0 : i32, i32
  }
  func.func @transform_7(%arg0: i32) -> (i32, i32, i32) {
    %c0_i32 = arith.constant 0 : i32
    %c0_i32_0 = arith.constant 0 : i32
    %c0_i32_1 = arith.constant 0 : i32
    return %arg0, %c0_i32, %c0_i32_0 : i32, i32, i32
  }
  func.func @transform_8(%arg0: i32) -> (i32, i32, i32) {
    %c0_i32 = arith.constant 0 : i32
    %c0_i32_0 = arith.constant 0 : i32
    %c0_i32_1 = arith.constant 0 : i32
    return %arg0, %c0_i32, %c0_i32_0 : i32, i32, i32
  }
  func.func @transform_9(%arg0: i32) -> (i32, i32, i32) {
    %c0_i32 = arith.constant 0 : i32
    %c0_i32_0 = arith.constant 0 : i32
    %c0_i32_1 = arith.constant 0 : i32
    return %arg0, %c0_i32, %c0_i32_0 : i32, i32, i32
  }
}

</mosaic_0001>

<llo_original>
// kernel: tpu_custom_call.1
$region0: #{tpu_custom_call.1}
  #allocation0 [shape = 'u32[]', space=smem, size = 0x4, offset = 0x4, fixed_abs, tag = 'smem constant byte address 0x4 - core index']
  #allocation1 [shape = 'u32[144,128]{1,0:T(1,128)}', space=vmem, size = 0x12000, scoped, tag = 'internal scratch']
  #allocation2 [shape = 'f32[8,12,8]{2,1,0:T(8,128)}', space=vmem, size = 0x10000, scoped, tag = 'scratch operand']
  #allocation3 [shape = 'f32[8,10,16]{2,1,0:T(8,128)}', space=vmem, size = 0x10000, scoped, tag = 'scratch operand']
  %s0 = inlined_call_operand.vmem [shape: f32[16,9,12], index: 0, kind: input, shape index: {}]
  %s1 = inlined_call_operand.vmem [shape: bf16[2,12,8], index: 1, kind: input, shape index: {}]
  %s2 = inlined_call_operand.vmem [shape: f32[1,8], index: 2, kind: input, shape index: {}]
  %s3 = inlined_call_operand.vmem [shape: bf16[5,8,16], index: 3, kind: input, shape index: {}]
  %s4 = inlined_call_operand.vmem [shape: f32[1,16], index: 4, kind: input, shape index: {}]
  %s5 = inlined_call_operand.vmem [shape: bf16[3,16,4], index: 5, kind: input, shape index: {}]
  %s6 = inlined_call_operand.vmem [shape: f32[1,4], index: 6, kind: input, shape index: {}]
  %s7 = inlined_call_operand.vmem [shape: bf16[16,8,8], index: 7, kind: output, shape index: {0}]
  %s8 = inlined_call_operand.hbm [shape: bf16[16,8,16], index: 8, kind: output, shape index: {1}]
  %s9 = inlined_call_operand.vmem [shape: f32[16,8,4], index: 9, kind: output, shape index: {2}]
  %10 = xla_tuple %s7, %s8, %s9
  %s11 = sld [smem:[#allocation0]]
  $region77: #{tpu_custom_call.1} parent=0
    _
  %s13 = ssub.s32 1, %s11
  %s14 = scalar_select 0, %s13, %s11
  $region1: #{tpu_custom_call.1} parent=0
    #allocation4 [shape = 'u8[32768]{0}', space=vmem, size = 0x8000, scoped, tag = 'output window, operand 1']
    #allocation5 [shape = 's32[2]{0}', space=sflag, size = 0x8, scoped, tag = 'scoped memory for tpu_custom_call.1']
    %15 = vsyncpa [#allocation5], 0
    %s16 = scalar_lea.sflag [#allocation5], 1
    %17 = vsyncpa %s16, 0
    loop: start=0, step=1, limit=4
    $region2: #{tpu_custom_call.1} parent=1 // loop_pre_header
      _
    $region3: #{tpu_custom_call.1} parent=1 // loop_header
      %s19 = sphi 0, %s23
      %p20 = scmp.ge.s32.totalorder %s19, 4
      %s29 = sphi 0, %s31
      %s32 = sphi 0, %s29
      %s33 = sphi 0, %s32
      %s49 = sphi 0, %s33
      %s53 = sphi 0, %s53
      %s55 = sphi 0, %s53
      %s56 = sphi 0, %s55
      %s70 = sphi 0, %s56
      %s74 = sphi 0, %s74
      %s76 = sphi 0, %s74
      %s77 = sphi 0, %s76
      %s91 = sphi 0, %s77
      %s95 = sphi 0, %s95
      %s97 = sphi 0, %s95
      %s98 = sphi 0, %s97
      %s112 = sphi 0, %s98
      %s116 = sphi 0, %s116
      %s118 = sphi 0, %s116
      %s119 = sphi 0, %s118
      %s133 = sphi 0, %s119
      %s137 = sphi 0, %s137
      %s139 = sphi 0, %s137
      %s140 = sphi 0, %s139
      %s154 = sphi 0, %s140
      %s158 = sphi 0, %s158
      %s160 = sphi 0, %s158
      %s161 = sphi 0, %s160
      %s175 = sphi 0, %s161
      %s181 = sphi 0, %s183
      %s184 = sphi 0, %s181
      %s185 = sphi 0, %s184
      %s201 = sphi 0, %s185
      %s207 = sphi 0, %s209
      %s210 = sphi 0, %s207
      %s211 = sphi 0, %s210
      %s227 = sphi 0, %s211
      %s233 = sphi 0, %s235
      %s236 = sphi 0, %s233
      %s237 = sphi 0, %s236
      %s253 = sphi 0, %s237
    $region4: #{tpu_custom_call.1} parent=1 // loop_header_branch
      %22 = sbr.rel (%p20) target = $region8
    $region5: #{tpu_custom_call.1} parent=1 // loop_body
      %s24 = ssub.s32 %s19, 1
      %s25 = ssub.s32 %s19, 2
      %s26 = sadd.s32 %s19, 1
      %s27 = ssub.s32 %s19, %s26
      %p28 = scmp.eq.s32.totalorder %s27, 0
      %s30 = sadd.s32 %s29, 1
      %s31 = scalar_select %p28, %s29, %s30
      %p34 = pneg %p28
      %p35 = scmp.eq.s32.totalorder %s19, 1
      %p36 = por %p34, %p35
      %p37 = scmp.ne.s32.totalorder %s29, %s32
      %p38 = scmp.eq.s32.totalorder %s19, 0
      %p39 = por %p37, %p38
      %p40 = scmp.ne.s32.totalorder %s29, %s32
      %p41 = scmp.eq.s32.totalorder %s24, 1
      %p42 = por %p40, %p41
      %p43 = scmp.ne.s32.totalorder %s32, %s33
      %p44 = scmp.eq.s32.totalorder %s24, 0
      %p45 = por %p43, %p44
      %p46 = scmp.ne.s32.totalorder %s32, %s33
      %p47 = scmp.eq.s32.totalorder %s25, 1
      %p48 = por %p46, %p47
      %p50 = scmp.ne.s32.totalorder %s33, %s49
      %p51 = scmp.eq.s32.totalorder %s25, 0
      %p52 = por %p50, %p51
      %s54 = sadd.s32 %s53, 1
      %p57 = scmp.eq.s32.totalorder %s19, 1
      %p58 = scmp.ne.s32.totalorder %s53, %s55
      %p59 = scmp.eq.s32.totalorder %s19, 0
      %p60 = por %p58, %p59
      %p61 = scmp.ne.s32.totalorder %s53, %s55
      %p62 = scmp.eq.s32.totalorder %s24, 1
      %p63 = por %p61, %p62
      %p64 = scmp.ne.s32.totalorder %s55, %s56
      %p65 = scmp.eq.s32.totalorder %s24, 0
      %p66 = por %p64, %p65
      %p67 = scmp.ne.s32.totalorder %s55, %s56
      %p68 = scmp.eq.s32.totalorder %s25, 1
      %p69 = por %p67, %p68
      %p71 = scmp.ne.s32.totalorder %s56, %s70
      %p72 = scmp.eq.s32.totalorder %s25, 0
      %p73 = por %p71, %p72
      %s75 = sadd.s32 %s74, 1
      %p78 = scmp.eq.s32.totalorder %s19, 1
      %p79 = scmp.ne.s32.totalorder %s74, %s76
      %p80 = scmp.eq.s32.totalorder %s19, 0
      %p81 = por %p79, %p80
      %p82 = scmp.ne.s32.totalorder %s74, %s76
      %p83 = scmp.eq.s32.totalorder %s24, 1
      %p84 = por %p82, %p83
      %p85 = scmp.ne.s32.totalorder %s76, %s77
      %p86 = scmp.eq.s32.totalorder %s24, 0
      %p87 = por %p85, %p86
      %p88 = scmp.ne.s32.totalorder %s76, %s77
      %p89 = scmp.eq.s32.totalorder %s25, 1
      %p90 = por %p88, %p89
      %p92 = scmp.ne.s32.totalorder %s77, %s91
      %p93 = scmp.eq.s32.totalorder %s25, 0
      %p94 = por %p92, %p93
      %s96 = sadd.s32 %s95, 1
      %p99 = scmp.eq.s32.totalorder %s19, 1
      %p100 = scmp.ne.s32.totalorder %s95, %s97
      %p101 = scmp.eq.s32.totalorder %s19, 0
      %p102 = por %p100, %p101
      %p103 = scmp.ne.s32.totalorder %s95, %s97
      %p104 = scmp.eq.s32.totalorder %s24, 1
      %p105 = por %p103, %p104
      %p106 = scmp.ne.s32.totalorder %s97, %s98
      %p107 = scmp.eq.s32.totalorder %s24, 0
      %p108 = por %p106, %p107
      %p109 = scmp.ne.s32.totalorder %s97, %s98
      %p110 = scmp.eq.s32.totalorder %s25, 1
      %p111 = por %p109, %p110
      %p113 = scmp.ne.s32.totalorder %s98, %s112
      %p114 = scmp.eq.s32.totalorder %s25, 0
      %p115 = por %p113, %p114
      %s117 = sadd.s32 %s116, 1
      %p120 = scmp.eq.s32.totalorder %s19, 1
      %p121 = scmp.ne.s32.totalorder %s116, %s118
      %p122 = scmp.eq.s32.totalorder %s19, 0
      %p123 = por %p121, %p122
      %p124 = scmp.ne.s32.totalorder %s116, %s118
      %p125 = scmp.eq.s32.totalorder %s24, 1
      %p126 = por %p124, %p125
      %p127 = scmp.ne.s32.totalorder %s118, %s119
      %p128 = scmp.eq.s32.totalorder %s24, 0
      %p129 = por %p127, %p128
      %p130 = scmp.ne.s32.totalorder %s118, %s119
      %p131 = scmp.eq.s32.totalorder %s25, 1
      %p132 = por %p130, %p131
      %p134 = scmp.ne.s32.totalorder %s119, %s133
      %p135 = scmp.eq.s32.totalorder %s25, 0
      %p136 = por %p134, %p135
      %s138 = sadd.s32 %s137, 1
      %p141 = scmp.eq.s32.totalorder %s19, 1
      %p142 = scmp.ne.s32.totalorder %s137, %s139
      %p143 = scmp.eq.s32.totalorder %s19, 0
      %p144 = por %p142, %p143
      %p145 = scmp.ne.s32.totalorder %s137, %s139
      %p146 = scmp.eq.s32.totalorder %s24, 1
      %p147 = por %p145, %p146
      %p148 = scmp.ne.s32.totalorder %s139, %s140
      %p149 = scmp.eq.s32.totalorder %s24, 0
      %p150 = por %p148, %p149
      %p151 = scmp.ne.s32.totalorder %s139, %s140
      %p152 = scmp.eq.s32.totalorder %s25, 1
      %p153 = por %p151, %p152
      %p155 = scmp.ne.s32.totalorder %s140, %s154
      %p156 = scmp.eq.s32.totalorder %s25, 0
      %p157 = por %p155, %p156
      %s159 = sadd.s32 %s158, 1
      %p162 = scmp.eq.s32.totalorder %s19, 1
      %p163 = scmp.ne.s32.totalorder %s158, %s160
      %p164 = scmp.eq.s32.totalorder %s19, 0
      %p165 = por %p163, %p164
      %p166 = scmp.ne.s32.totalorder %s158, %s160
      %p167 = scmp.eq.s32.totalorder %s24, 1
      %p168 = por %p166, %p167
      %p169 = scmp.ne.s32.totalorder %s160, %s161
      %p170 = scmp.eq.s32.totalorder %s24, 0
      %p171 = por %p169, %p170
      %p172 = scmp.ne.s32.totalorder %s160, %s161
      %p173 = scmp.eq.s32.totalorder %s25, 1
      %p174 = por %p172, %p173
      %p176 = scmp.ne.s32.totalorder %s161, %s175
      %p177 = scmp.eq.s32.totalorder %s25, 0
      %p178 = por %p176, %p177
      %s179 = ssub.s32 %s19, %s26
      %p180 = scmp.eq.s32.totalorder %s179, 0
      %s182 = sadd.s32 %s181, 1
      %s183 = scalar_select %p180, %s181, %s182
      %p186 = pneg %p180
      %p187 = scmp.eq.s32.totalorder %s19, 1
      %p188 = por %p186, %p187
      %p189 = scmp.ne.s32.totalorder %s181, %s184
      %p190 = scmp.eq.s32.totalorder %s19, 0
      %p191 = por %p189, %p190
      %p192 = scmp.ne.s32.totalorder %s181, %s184
      %p193 = scmp.eq.s32.totalorder %s24, 1
      %p194 = por %p192, %p193
      %p195 = scmp.ne.s32.totalorder %s184, %s185
      %p196 = scmp.eq.s32.totalorder %s24, 0
      %p197 = por %p195, %p196
      %p198 = scmp.ne.s32.totalorder %s184, %s185
      %p199 = scmp.eq.s32.totalorder %s25, 1
      %p200 = por %p198, %p199
      %p202 = scmp.ne.s32.totalorder %s185, %s201
      %p203 = scmp.eq.s32.totalorder %s25, 0
      %p204 = por %p202, %p203
      %s205 = ssub.s32 %s19, %s26
      %p206 = scmp.eq.s32.totalorder %s205, 0
      %s208 = sadd.s32 %s207, 1
      %s209 = scalar_select %p206, %s207, %s208
      %p212 = pneg %p206
      %p213 = scmp.eq.s32.totalorder %s19, 1
      %p214 = por %p212, %p213
      %p215 = scmp.ne.s32.totalorder %s207, %s210
      %p216 = scmp.eq.s32.totalorder %s19, 0
      %p217 = por %p215, %p216
      %p218 = scmp.ne.s32.totalorder %s207, %s210
      %p219 = scmp.eq.s32.totalorder %s24, 1
      %p220 = por %p218, %p219
      %p221 = scmp.ne.s32.totalorder %s210, %s211
      %p222 = scmp.eq.s32.totalorder %s24, 0
      %p223 = por %p221, %p222
      %p224 = scmp.ne.s32.totalorder %s210, %s211
      %p225 = scmp.eq.s32.totalorder %s25, 1
      %p226 = por %p224, %p225
      %p228 = scmp.ne.s32.totalorder %s211, %s227
      %p229 = scmp.eq.s32.totalorder %s25, 0
      %p230 = por %p228, %p229
      %s231 = ssub.s32 %s19, %s26
      %p232 = scmp.eq.s32.totalorder %s231, 0
      %s234 = sadd.s32 %s233, 1
      %s235 = scalar_select %p232, %s233, %s234
      %p238 = pneg %p232
      %p239 = scmp.eq.s32.totalorder %s19, 1
      %p240 = por %p238, %p239
      %p241 = scmp.ne.s32.totalorder %s233, %s236
      %p242 = scmp.eq.s32.totalorder %s19, 0
      %p243 = por %p241, %p242
      %p244 = scmp.ne.s32.totalorder %s233, %s236
      %p245 = scmp.eq.s32.totalorder %s24, 1
      %p246 = por %p244, %p245
      %p247 = scmp.ne.s32.totalorder %s236, %s237
      %p248 = scmp.eq.s32.totalorder %s24, 0
      %p249 = por %p247, %p248
      %p250 = scmp.ne.s32.totalorder %s236, %s237
      %p251 = scmp.eq.s32.totalorder %s25, 1
      %p252 = por %p250, %p251
      %p254 = scmp.ne.s32.totalorder %s237, %s253
      %p255 = scmp.eq.s32.totalorder %s25, 0
      %p256 = por %p254, %p255
      %p257 = scmp.le.s32.totalorder 1, %s19
      %p258 = scmp.lt.s32.totalorder %s19, 3
      %p259 = pnand %p257, %p258
      %p260 = pneg %p259
      // Predicated region
      $region9: #{tpu_custom_call.1} parent=5 // pred_check
        _
      $region10: #{tpu_custom_call.1} parent=5 // pred_check_branch
        %262 = sbr.rel (%p259) target = $region12
      $region11: #{tpu_custom_call.1} parent=5 // pred_region
        %s263 = ssub.s32 %s19, 1
        // Predicated region
        $region13: #{tpu_custom_call.1} parent=11 // pred_check
          %p264 = pneg %p66
        $region14: #{tpu_custom_call.1} parent=11 // pred_check_branch
          %266 = sbr.rel (%p264) target = $region16
        $region15: #{tpu_custom_call.1} parent=11 // pred_region
          _
        $region16: #{tpu_custom_call.1} parent=11 // pred_fallthru
          _
        // Predicated region
        $region17: #{tpu_custom_call.1} parent=11 // pred_check
          %p267 = pneg %p87
        $region18: #{tpu_custom_call.1} parent=11 // pred_check_branch
          %269 = sbr.rel (%p267) target = $region20
        $region19: #{tpu_custom_call.1} parent=11 // pred_region
          _
        $region20: #{tpu_custom_call.1} parent=11 // pred_fallthru
          _
        // Predicated region
        $region21: #{tpu_custom_call.1} parent=11 // pred_check
          %p270 = pneg %p108
        $region22: #{tpu_custom_call.1} parent=11 // pred_check_branch
          %272 = sbr.rel (%p270) target = $region24
        $region23: #{tpu_custom_call.1} parent=11 // pred_region
          _
        $region24: #{tpu_custom_call.1} parent=11 // pred_fallthru
          _
        // Predicated region
        $region25: #{tpu_custom_call.1} parent=11 // pred_check
          %p273 = pneg %p129
        $region26: #{tpu_custom_call.1} parent=11 // pred_check_branch
          %275 = sbr.rel (%p273) target = $region28
        $region27: #{tpu_custom_call.1} parent=11 // pred_region
          _
        $region28: #{tpu_custom_call.1} parent=11 // pred_fallthru
          _
        // Predicated region
        $region29: #{tpu_custom_call.1} parent=11 // pred_check
          %p276 = pneg %p150
        $region30: #{tpu_custom_call.1} parent=11 // pred_check_branch
          %278 = sbr.rel (%p276) target = $region32
        $region31: #{tpu_custom_call.1} parent=11 // pred_region
          _
        $region32: #{tpu_custom_call.1} parent=11 // pred_fallthru
          _
        // Predicated region
        $region33: #{tpu_custom_call.1} parent=11 // pred_check
          %p279 = pneg %p171
        $region34: #{tpu_custom_call.1} parent=11 // pred_check_branch
          %281 = sbr.rel (%p279) target = $region36
        $region35: #{tpu_custom_call.1} parent=11 // pred_region
          _
        $region36: #{tpu_custom_call.1} parent=11 // pred_fallthru
          _
      $region12: #{tpu_custom_call.1} parent=5 // pred_fallthru
        _
      %p282 = scmp.lt.s32.totalorder %s19, 2
      // Predicated region
      $region37: #{tpu_custom_call.1} parent=5 // pred_check
        %p283 = pneg %p282
      $region38: #{tpu_custom_call.1} parent=5 // pred_check_branch
        %285 = sbr.rel (%p283) target = $region40
      $region39: #{tpu_custom_call.1} parent=5 // pred_region
        // Predicated region
        $region41: #{tpu_custom_call.1} parent=39 // pred_check
          %p286 = pneg %p39
        $region42: #{tpu_custom_call.1} parent=39 // pred_check_branch
          %288 = sbr.rel (%p286) target = $region44
        $region43: #{tpu_custom_call.1} parent=39 // pred_region
          %s289 = smul.u32 8, %s19
          %p290 = scmp.lt.s32.totalorder %s289, 15
          %s291 = scalar_select %p290, %s289, 15
          %s292 = smul.addr %s291, 2
          %s293 = smul.addr %s292, 8
          %s294 = scalar_lea.vmem %s0, %s293
          %s295 = smul.u32 8, %s19
        $region44: #{tpu_custom_call.1} parent=39 // pred_fallthru
          _
      $region40: #{tpu_custom_call.1} parent=5 // pred_fallthru
        _
      %p296 = scmp.le.s32.totalorder 1, %s19
      %p297 = scmp.lt.s32.totalorder %s19, 3
      %p298 = pnand %p296, %p297
      %p299 = pneg %p298
      // Predicated region
      $region45: #{tpu_custom_call.1} parent=5 // pred_check
        _
      $region46: #{tpu_custom_call.1} parent=5 // pred_check_branch
        %301 = sbr.rel (%p298) target = $region48
      $region47: #{tpu_custom_call.1} parent=5 // pred_region
        %s302 = ssub.s32 %s19, 1
        %s303 = smul.u32 8, %s24
        %p304 = scmp.lt.s32.totalorder %s303, 15
        %s305 = scalar_select %p304, %s303, 15
        %s306 = smul.addr %s305, 2
        %s307 = smul.addr %s306, 8
        %s308 = scalar_lea.vmem %s0, %s307
        %p309 = pneg %p45
        %p310 = pneg %p42
        %p311 = pneg %p66
        %p312 = pneg %p63
        %p313 = pneg %p87
        %p314 = pneg %p84
        %p315 = pneg %p108
        %p316 = pneg %p105
        %p317 = pneg %p129
        %p318 = pneg %p126
        %p319 = pneg %p150
        %p320 = pneg %p147
        %p321 = pneg %p171
        %p322 = pneg %p168
        %p323 = pneg %p197
        %p324 = pneg %p194
        %s325 = smul.u32 8, %s24
        %p326 = scmp.lt.s32.totalorder %s325, 15
        %s327 = scalar_select %p326, %s325, 15
        %s328 = smul.addr %s327, 4
        %s329 = scalar_lea.vmem %s7, %s328
        %p330 = pneg %p223
        %p331 = pneg %p220
        %s332 = sand.u32 %s210, 1
        %s333 = scalar_lea.sflag [#allocation5], %s332
        %s334 = sand.u32 %s210, 1
        %s335 = smul.addr %s334, 32
        %s336 = scalar_lea.vmem [#allocation4], %s335
        %p337 = pneg %p249
        %p338 = pneg %p246
        %s339 = smul.u32 8, %s24
        %p340 = scmp.lt.s32.totalorder %s339, 15
        %s341 = scalar_select %p340, %s339, 15
        %s342 = smul.addr %s341, 8
        %s343 = scalar_lea.vmem %s9, %s342
        %s344 = smul.u32 8, %s24
        %p345 = scmp.lt.s32.totalorder %s344, 15
        %s346 = scalar_select %p345, %s344, 15
        %s347 = smul.addr %s346, 2
        %s348 = smul.addr %s347, 8
        %s349 = scalar_lea.vmem %s0, %s348
        %s350 = smul.u32 8, %s24
        %s351 = smul.u32 8, %s24
        %p352 = scmp.lt.s32.totalorder %s351, 15
        %s353 = scalar_select %p352, %s351, 15
        %s354 = smul.addr %s353, 4
        %s355 = scalar_lea.vmem %s7, %s354
        %s356 = smul.u32 8, %s24
        %s357 = smul.u32 8, %s24
        %s358 = smul.u32 8, %s24
        %p359 = scmp.lt.s32.totalorder %s358, 15
        %s360 = scalar_select %p359, %s358, 15
        %s361 = smul.addr %s360, 8
        %s362 = scalar_lea.vmem %s9, %s361
        %s363 = smul.u32 8, %s24
        %v365 = vld [vmem:[%s349] sm:$0xff]
        %v366 = vld [vmem:[%s349 + $0x10] sm:$0xff]
        %v367 = vld [vmem:[%s349 + $0x20] sm:$0xff]
        %v368 = vld [vmem:[%s349 + $0x30] sm:$0xff]
        %v369 = vld [vmem:[%s349 + $0x40] sm:$0xff]
        %v370 = vld [vmem:[%s349 + $0x50] sm:$0xff]
        %v371 = vld [vmem:[%s349 + $0x60] sm:$0xff]
        %v372 = vld [vmem:[%s349 + $0x70] sm:$0xff]
        %v373 = vld [vmem:[%s349 + $0x1] sm:$0xff]
        %v374 = vld [vmem:[%s349 + $0x11] sm:$0xff]
        %v375 = vld [vmem:[%s349 + $0x21] sm:$0xff]
        %v376 = vld [vmem:[%s349 + $0x31] sm:$0xff]
        %v377 = vld [vmem:[%s349 + $0x41] sm:$0xff]
        %v378 = vld [vmem:[%s349 + $0x51] sm:$0xff]
        %v379 = vld [vmem:[%s349 + $0x61] sm:$0xff]
        %v380 = vld [vmem:[%s349 + $0x71] sm:$0xff]
        %389 = vrot.lane.b32.xlu0 %v373, 12
        %v390 = vpop.permute.xlu0 %389
        %391 = vrot.lane.b32.xlu0 %v374, 12
        %v392 = vpop.permute.xlu0 %391
        %393 = vrot.lane.b32.xlu0 %v375, 12
        %v394 = vpop.permute.xlu0 %393
        %395 = vrot.lane.b32.xlu0 %v376, 12
        %v396 = vpop.permute.xlu0 %395
        %397 = vrot.lane.b32.xlu0 %v377, 12
        %v398 = vpop.permute.xlu0 %397
        %399 = vrot.lane.b32.xlu0 %v378, 12
        %v400 = vpop.permute.xlu0 %399
        %401 = vrot.lane.b32.xlu0 %v379, 12
        %v402 = vpop.permute.xlu0 %401
        %403 = vrot.lane.b32.xlu0 %v380, 12
        %v404 = vpop.permute.xlu0 %403
        %vm413 = vcmask 97280
        %v414 = vsel %vm413, %v365, %v390
        %v415 = vsel %vm413, %v366, %v392
        %v416 = vsel %vm413, %v367, %v394
        %v417 = vsel %vm413, %v368, %v396
        %v418 = vsel %vm413, %v369, %v398
        %v419 = vsel %vm413, %v370, %v400
        %v420 = vsel %vm413, %v371, %v402
        %v421 = vsel %vm413, %v372, %v404
        %v422 = vpack.c.bf16 %v415, %v414
        %v423 = vpack.c.bf16 %v417, %v416
        %v424 = vpack.c.bf16 %v419, %v418
        %v425 = vpack.c.bf16 %v421, %v420
        %v426 = vld [vmem:[%s1] sm:$0xf]
        %v427 = vld [vmem:[%s1 + $0x4] sm:$0x3]
        %v428 = vld [vmem:[%s1 + $0x8] sm:$0xf]
        %v429 = vld [vmem:[%s1 + $0xc] sm:$0x3]
        %v435 = vunpack.c.l.s4 1983009808
        %v436 = vunpack.c.0.s8 %v435
        %v437 = vlaneseq
        %v438 = vshrl.u32 %v437, 7
        %v439 = vsub.s32 %v436, %v438
        %v440 = vrot.slane %v426, %v439
        %v441 = vcombine.high %v440, %v440
        %v443 = vunpack.c.l.s4 1983009808
        %v444 = vunpack.c.0.s8 %v443
        %v445 = vlaneseq
        %v446 = vshrl.u32 %v445, 7
        %v447 = vsub.s32 %v444, %v446
        %v448 = vrot.slane %v427, %v447
        %v450 = vunpack.c.l.s4 1983009808
        %v451 = vunpack.c.0.s8 %v450
        %v452 = vlaneseq
        %v453 = vshrl.u32 %v452, 7
        %v454 = vsub.s32 %v451, %v453
        %v455 = vrot.slane %v428, %v454
        %v456 = vcombine.high %v455, %v455
        %v458 = vunpack.c.l.s4 1983009808
        %v459 = vunpack.c.0.s8 %v458
        %v460 = vlaneseq
        %v461 = vshrl.u32 %v460, 7
        %v462 = vsub.s32 %v459, %v461
        %v463 = vrot.slane %v429, %v462
        %v464 = vld [vmem:[%s2] sm:$0x1]
        %v466 = vlaneseq
        %v467 = vshrl.u32 %v466, 7
        %v468 = vsub.s32 0, %v467
        %v469 = vrot.slane %v464, %v468
        %v471 = vcombine.low %v440, %v441
        %v472 = vcombine.low %v448, %v455
        %v474 = vunpack.c.l.s4 1983009808
        %v475 = vunpack.c.0.s8 %v474
        %v476 = vlaneseq
        %v477 = vshrl.u32 %v476, 7
        %v478 = vsub.s32 %v475, %v477
        %v479 = vrot.slane %v471, %v478
        %v481 = vunpack.c.l.s4 1983009808
        %v482 = vunpack.c.0.s8 %v481
        %v483 = vlaneseq
        %v484 = vshrl.u32 %v483, 7
        %v485 = vsub.s32 %v482, %v484
        %v486 = vrot.slane %v472, %v485
        %v487 = vcombine.low %v479, %v486
        %v488 = vcombine.low %v456, %v463
        %v490 = vunpack.c.l.s4 1983009808
        %v491 = vunpack.c.0.s8 %v490
        %v492 = vlaneseq
        %v493 = vshrl.u32 %v492, 7
        %v494 = vsub.s32 %v491, %v493
        %v495 = vrot.slane %v488, %v494
        %vm497 = vcmask 195584
        %v499 = vsel %vm497, %v422, 0
        %v502 = vsel %vm497, %v423, 0
        %v505 = vsel %vm497, %v424, 0
        %v508 = vsel %vm497, %v425, 0
        %vm510 = vcmask 1043456
        %v512 = vsel %vm510, %v495, 0
        %514 = vmatprep.subr.bf16.mxu0 0
        %515 = vmatpush1.bf16.msra.mxu0 %v487
        %516 = vmatprep.subr.bf16.mxu0 0
        %517 = vmatpush1.bf16.msra.mxu0 %v512
        %518 = vmatprep.subr.bf16.mxu0 0
        %519 = vmatpush1.bf16.msra.mxu0 0
        %520 = vmatprep.subr.bf16.mxu0 0
        %521 = vmatpush1.bf16.msra.mxu0 0
        %522 = vmatprep.subr.bf16.mxu0 0
        %523 = vmatpush1.bf16.msra.mxu0 0
        %524 = vmatprep.subr.bf16.mxu0 0
        %525 = vmatpush1.bf16.msra.mxu0 0
        %526 = vmatprep.subr.bf16.mxu0 0
        %527 = vmatpush1.bf16.msra.mxu0 0
        %528 = vmatprep.subr.bf16.mxu0 0
        %529 = vmatpush1.bf16.msra.mxu0 0
        %530 = vmatprep.subr.bf16.mxu0 0
        %531 = vmatpush1.bf16.msra.mxu0 0
        %532 = vmatprep.subr.bf16.mxu0 0
        %533 = vmatpush1.bf16.msra.mxu0 0
        %534 = vmatprep.subr.bf16.mxu0 0
        %535 = vmatpush1.bf16.msra.mxu0 0
        %536 = vmatprep.subr.bf16.mxu0 0
        %537 = vmatpush1.bf16.msra.mxu0 0
        %538 = vmatprep.subr.bf16.mxu0 0
        %539 = vmatpush1.bf16.msra.mxu0 0
        %540 = vmatprep.subr.bf16.mxu0 0
        %541 = vmatpush1.bf16.msra.mxu0 0
        %542 = vmatprep.subr.bf16.mxu0 0
        %543 = vmatpush1.bf16.msra.mxu0 0
        %544 = vmatprep.subr.bf16.mxu0 0
        %545 = vmatpush1.bf16.msra.mxu0 0
        %546 = vmatprep.mubr.bf16.mxu0 0
        %547 = vmatmul.mubr.bf16.gmra.mrb[0].mxu0 %v499
        %v548 = vpop.f32.mrb[0].mxu0
        %v549 = vadd.f32 %v469, %v548
        %v550 = vpop.f32.mrb[0].mxu0
        %v551 = vpop.f32.mrb[0].mxu0
        %v552 = vadd.f32 %v469, %v551
        %v553 = vpop.f32.mrb[0].mxu0
        %554 = vmatprep.mubr.bf16.mxu0 0
        %555 = vmatmul.mubr.bf16.gmra.mrb[0].mxu0 %v502
        %v556 = vpop.f32.mrb[0].mxu0
        %v557 = vadd.f32 %v469, %v556
        %v558 = vpop.f32.mrb[0].mxu0
        %v559 = vpop.f32.mrb[0].mxu0
        %v560 = vadd.f32 %v469, %v559
        %v561 = vpop.f32.mrb[0].mxu0
        %562 = vmatprep.mubr.bf16.mxu0 0
        %563 = vmatmul.mubr.bf16.gmra.mrb[0].mxu0 %v505
        %v564 = vpop.f32.mrb[0].mxu0
        %v565 = vadd.f32 %v469, %v564
        %v566 = vpop.f32.mrb[0].mxu0
        %v567 = vpop.f32.mrb[0].mxu0
        %v568 = vadd.f32 %v469, %v567
        %v569 = vpop.f32.mrb[0].mxu0
        %570 = vmatprep.mubr.bf16.mxu0 0
        %571 = vmatmul.mubr.bf16.gmra.mrb[0].mxu0 %v508
        %v572 = vpop.f32.mrb[0].mxu0
        %v573 = vadd.f32 %v469, %v572
        %v574 = vpop.f32.mrb[0].mxu0
        %v575 = vpop.f32.mrb[0].mxu0
        %v576 = vadd.f32 %v469, %v575
        %v577 = vpop.f32.mrb[0].mxu0
        %578 = vdwg.mxu0
        %vm579 = vcmp.ge.f32.partialorder %v549, 0.0
        %vm580 = vcmp.ge.f32.partialorder %v552, 0.0
        %vm581 = vcmp.ge.f32.partialorder %v557, 0.0
        %vm582 = vcmp.ge.f32.partialorder %v560, 0.0
        %vm583 = vcmp.ge.f32.partialorder %v565, 0.0
        %vm584 = vcmp.ge.f32.partialorder %v568, 0.0
        %vm585 = vcmp.ge.f32.partialorder %v573, 0.0
        %vm586 = vcmp.ge.f32.partialorder %v576, 0.0
        %v587 = vmul.f32 %v549, 0.1
        %v588 = vmul.f32 %v552, 0.1
        %v589 = vmul.f32 %v557, 0.1
        %v590 = vmul.f32 %v560, 0.1
        %v591 = vmul.f32 %v565, 0.1
        %v592 = vmul.f32 %v568, 0.1
        %v593 = vmul.f32 %v573, 0.1
        %v594 = vmul.f32 %v576, 0.1
        %v595 = vsel %vm579, %v549, %v587
        %v596 = vsel %vm580, %v552, %v588
        %v597 = vsel %vm581, %v557, %v589
        %v598 = vsel %vm582, %v560, %v590
        %v599 = vsel %vm583, %v565, %v591
        %v600 = vsel %vm584, %v568, %v592
        %v601 = vsel %vm585, %v573, %v593
        %v602 = vsel %vm586, %v576, %v594
        %v603 = vpack.c.bf16 %v595, %v595
        %v604 = vpack.c.bf16 %v596, %v596
        %v605 = vpack.c.bf16 %v597, %v597
        %v606 = vpack.c.bf16 %v598, %v598
        %v607 = vpack.c.bf16 %v599, %v599
        %v608 = vpack.c.bf16 %v600, %v600
        %v609 = vpack.c.bf16 %v601, %v601
        %v610 = vpack.c.bf16 %v602, %v602
        %vm611 = vcmask 60416
        %612 = vst.msk [vmem:[%s355] sm:$0xf] %vm611, %v603
        %613 = vst.msk [vmem:[%s355 + $0x4] sm:$0xf] %vm611, %v604
        %614 = vst.msk [vmem:[%s355 + $0x8] sm:$0xf] %vm611, %v605
        %615 = vst.msk [vmem:[%s355 + $0xc] sm:$0xf] %vm611, %v606
        %616 = vst.msk [vmem:[%s355 + $0x10] sm:$0xf] %vm611, %v607
        %617 = vst.msk [vmem:[%s355 + $0x14] sm:$0xf] %vm611, %v608
        %618 = vst.msk [vmem:[%s355 + $0x18] sm:$0xf] %vm611, %v609
        %619 = vst.msk [vmem:[%s355 + $0x1c] sm:$0xf] %vm611, %v610
        %vm620 = vcmask 58368
        %621 = vst.msk [vmem:[#allocation2] sm:$0x3] %vm620, 0.0
        %622 = vst.msk [vmem:[#allocation2 + $0x10] sm:$0x3] %vm620, 0.0
        %623 = vst.msk [vmem:[#allocation2 + $0x20] sm:$0x3] %vm620, 0.0
        %624 = vst.msk [vmem:[#allocation2 + $0x30] sm:$0x3] %vm620, 0.0
        %625 = vst.msk [vmem:[#allocation2 + $0x40] sm:$0x3] %vm620, 0.0
        %626 = vst.msk [vmem:[#allocation2 + $0x50] sm:$0x3] %vm620, 0.0
        %627 = vst.msk [vmem:[#allocation2 + $0x60] sm:$0x3] %vm620, 0.0
        %628 = vst.msk [vmem:[#allocation2 + $0x70] sm:$0x3] %vm620, 0.0
        %629 = vst.msk [vmem:[#allocation2 + $0xa] sm:$0x3] %vm620, 0.0
        %630 = vst.msk [vmem:[#allocation2 + $0x1a] sm:$0x3] %vm620, 0.0
        %631 = vst.msk [vmem:[#allocation2 + $0x2a] sm:$0x3] %vm620, 0.0
        %632 = vst.msk [vmem:[#allocation2 + $0x3a] sm:$0x3] %vm620, 0.0
        %633 = vst.msk [vmem:[#allocation2 + $0x4a] sm:$0x3] %vm620, 0.0
        %634 = vst.msk [vmem:[#allocation2 + $0x5a] sm:$0x3] %vm620, 0.0
        %635 = vst.msk [vmem:[#allocation2 + $0x6a] sm:$0x3] %vm620, 0.0
        %636 = vst.msk [vmem:[#allocation2 + $0x7a] sm:$0x3] %vm620, 0.0
        %vm637 = vcmask 64512
        %638 = vst.msk [vmem:[#allocation2 + $0x2] sm:$0xff] %vm637, %v595
        %639 = vst.msk [vmem:[#allocation2 + $0x12] sm:$0xff] %vm637, %v596
        %640 = vst.msk [vmem:[#allocation2 + $0x22] sm:$0xff] %vm637, %v597
        %641 = vst.msk [vmem:[#allocation2 + $0x32] sm:$0xff] %vm637, %v598
        %642 = vst.msk [vmem:[#allocation2 + $0x42] sm:$0xff] %vm637, %v599
        %643 = vst.msk [vmem:[#allocation2 + $0x52] sm:$0xff] %vm637, %v600
        %644 = vst.msk [vmem:[#allocation2 + $0x62] sm:$0xff] %vm637, %v601
        %645 = vst.msk [vmem:[#allocation2 + $0x72] sm:$0xff] %vm637, %v602
        %v646 = vld [vmem:[#allocation2] sm:$0xff]
        %v647 = vld [vmem:[#allocation2 + $0x10] sm:$0xff]
        %v648 = vld [vmem:[#allocation2 + $0x20] sm:$0xff]
        %v649 = vld [vmem:[#allocation2 + $0x30] sm:$0xff]
        %v650 = vld [vmem:[#allocation2 + $0x40] sm:$0xff]
        %v651 = vld [vmem:[#allocation2 + $0x50] sm:$0xff]
        %v652 = vld [vmem:[#allocation2 + $0x60] sm:$0xff]
        %v653 = vld [vmem:[#allocation2 + $0x70] sm:$0xff]
        %v654 = vld [vmem:[#allocation2 + $0x1] sm:$0xff]
        %v655 = vld [vmem:[#allocation2 + $0x11] sm:$0xff]
        %v656 = vld [vmem:[#allocation2 + $0x21] sm:$0xff]
        %v657 = vld [vmem:[#allocation2 + $0x31] sm:$0xff]
        %v658 = vld [vmem:[#allocation2 + $0x41] sm:$0xff]
        %v659 = vld [vmem:[#allocation2 + $0x51] sm:$0xff]
        %v660 = vld [vmem:[#allocation2 + $0x61] sm:$0xff]
        %v661 = vld [vmem:[#allocation2 + $0x71] sm:$0xff]
        %v662 = vld [vmem:[#allocation2 + $0x2] sm:$0xff]
        %v663 = vld [vmem:[#allocation2 + $0x12] sm:$0xff]
        %v664 = vld [vmem:[#allocation2 + $0x22] sm:$0xff]
        %v665 = vld [vmem:[#allocation2 + $0x32] sm:$0xff]
        %v666 = vld [vmem:[#allocation2 + $0x42] sm:$0xff]
        %v667 = vld [vmem:[#allocation2 + $0x52] sm:$0xff]
        %v668 = vld [vmem:[#allocation2 + $0x62] sm:$0xff]
        %v669 = vld [vmem:[#allocation2 + $0x72] sm:$0xff]
        %v670 = vld [vmem:[#allocation2 + $0x3] sm:$0xff]
        %v671 = vld [vmem:[#allocation2 + $0x13] sm:$0xff]
        %v672 = vld [vmem:[#allocation2 + $0x23] sm:$0xff]
        %v673 = vld [vmem:[#allocation2 + $0x33] sm:$0xff]
        %v674 = vld [vmem:[#allocation2 + $0x43] sm:$0xff]
        %v675 = vld [vmem:[#allocation2 + $0x53] sm:$0xff]
        %v676 = vld [vmem:[#allocation2 + $0x63] sm:$0xff]
        %v677 = vld [vmem:[#allocation2 + $0x73] sm:$0xff]
        %v678 = vld [vmem:[#allocation2 + $0x4] sm:$0xff]
        %v679 = vld [vmem:[#allocation2 + $0x14] sm:$0xff]
        %v680 = vld [vmem:[#allocation2 + $0x24] sm:$0xff]
        %v681 = vld [vmem:[#allocation2 + $0x34] sm:$0xff]
        %v682 = vld [vmem:[#allocation2 + $0x44] sm:$0xff]
        %v683 = vld [vmem:[#allocation2 + $0x54] sm:$0xff]
        %v684 = vld [vmem:[#allocation2 + $0x64] sm:$0xff]
        %v685 = vld [vmem:[#allocation2 + $0x74] sm:$0xff]
        %694 = vrot.lane.b32.xlu0 %v654, 8
        %v695 = vpop.permute.xlu0 %694
        %696 = vrot.lane.b32.xlu0 %v655, 8
        %v697 = vpop.permute.xlu0 %696
        %698 = vrot.lane.b32.xlu0 %v656, 8
        %v699 = vpop.permute.xlu0 %698
        %700 = vrot.lane.b32.xlu0 %v657, 8
        %v701 = vpop.permute.xlu0 %700
        %702 = vrot.lane.b32.xlu0 %v658, 8
        %v703 = vpop.permute.xlu0 %702
        %704 = vrot.lane.b32.xlu0 %v659, 8
        %v705 = vpop.permute.xlu0 %704
        %706 = vrot.lane.b32.xlu0 %v660, 8
        %v707 = vpop.permute.xlu0 %706
        %708 = vrot.lane.b32.xlu0 %v661, 8
        %v709 = vpop.permute.xlu0 %708
        %726 = vrot.lane.b32.xlu0 %v662, 16
        %v727 = vpop.permute.xlu0 %726
        %728 = vrot.lane.b32.xlu0 %v663, 16
        %v729 = vpop.permute.xlu0 %728
        %730 = vrot.lane.b32.xlu0 %v664, 16
        %v731 = vpop.permute.xlu0 %730
        %732 = vrot.lane.b32.xlu0 %v665, 16
        %v733 = vpop.permute.xlu0 %732
        %734 = vrot.lane.b32.xlu0 %v666, 16
        %v735 = vpop.permute.xlu0 %734
        %736 = vrot.lane.b32.xlu0 %v667, 16
        %v737 = vpop.permute.xlu0 %736
        %738 = vrot.lane.b32.xlu0 %v668, 16
        %v739 = vpop.permute.xlu0 %738
        %740 = vrot.lane.b32.xlu0 %v669, 16
        %v741 = vpop.permute.xlu0 %740
        %758 = vrot.lane.b32.xlu0 %v670, 24
        %v759 = vpop.permute.xlu0 %758
        %760 = vrot.lane.b32.xlu0 %v671, 24
        %v761 = vpop.permute.xlu0 %760
        %762 = vrot.lane.b32.xlu0 %v672, 24
        %v763 = vpop.permute.xlu0 %762
        %764 = vrot.lane.b32.xlu0 %v673, 24
        %v765 = vpop.permute.xlu0 %764
        %766 = vrot.lane.b32.xlu0 %v674, 24
        %v767 = vpop.permute.xlu0 %766
        %768 = vrot.lane.b32.xlu0 %v675, 24
        %v769 = vpop.permute.xlu0 %768
        %770 = vrot.lane.b32.xlu0 %v676, 24
        %v771 = vpop.permute.xlu0 %770
        %772 = vrot.lane.b32.xlu0 %v677, 24
        %v773 = vpop.permute.xlu0 %772
        %790 = vrot.lane.b32.xlu0 %v678, 32
        %v791 = vpop.permute.xlu0 %790
        %792 = vrot.lane.b32.xlu0 %v679, 32
        %v793 = vpop.permute.xlu0 %792
        %794 = vrot.lane.b32.xlu0 %v680, 32
        %v795 = vpop.permute.xlu0 %794
        %796 = vrot.lane.b32.xlu0 %v681, 32
        %v797 = vpop.permute.xlu0 %796
        %798 = vrot.lane.b32.xlu0 %v682, 32
        %v799 = vpop.permute.xlu0 %798
        %800 = vrot.lane.b32.xlu0 %v683, 32
        %v801 = vpop.permute.xlu0 %800
        %802 = vrot.lane.b32.xlu0 %v684, 32
        %v803 = vpop.permute.xlu0 %802
        %804 = vrot.lane.b32.xlu0 %v685, 32
        %v805 = vpop.permute.xlu0 %804
        %v814 = vsel %vm637, %v646, %v695
        %v815 = vsel %vm637, %v647, %v697
        %v816 = vsel %vm637, %v648, %v699
        %v817 = vsel %vm637, %v649, %v701
        %v818 = vsel %vm637, %v650, %v703
        %v819 = vsel %vm637, %v651, %v705
        %v820 = vsel %vm637, %v652, %v707
        %v821 = vsel %vm637, %v653, %v709
        %vm822 = vcmask 130048
        %v823 = vsel %vm822, %v814, %v727
        %v824 = vsel %vm822, %v815, %v729
        %v825 = vsel %vm822, %v816, %v731
        %v826 = vsel %vm822, %v817, %v733
        %v827 = vsel %vm822, %v818, %v735
        %v828 = vsel %vm822, %v819, %v737
        %v829 = vsel %vm822, %v820, %v739
        %v830 = vsel %vm822, %v821, %v741
        %v831 = vsel %vm497, %v823, %v759
        %v832 = vsel %vm497, %v824, %v761
        %v833 = vsel %vm497, %v825, %v763
        %v834 = vsel %vm497, %v826, %v765
        %v835 = vsel %vm497, %v827, %v767
        %v836 = vsel %vm497, %v828, %v769
        %v837 = vsel %vm497, %v829, %v771
        %v838 = vsel %vm497, %v830, %v773
        %vm839 = vcmask 261120
        %v840 = vsel %vm839, %v831, %v791
        %v841 = vsel %vm839, %v832, %v793
        %v842 = vsel %vm839, %v833, %v795
        %v843 = vsel %vm839, %v834, %v797
        %v844 = vsel %vm839, %v835, %v799
        %v845 = vsel %vm839, %v836, %v801
        %v846 = vsel %vm839, %v837, %v803
        %v847 = vsel %vm839, %v838, %v805
        %v848 = vpack.c.bf16 %v841, %v840
        %v849 = vpack.c.bf16 %v843, %v842
        %v850 = vpack.c.bf16 %v845, %v844
        %v851 = vpack.c.bf16 %v847, %v846
        %v852 = vld [vmem:[%s3] sm:$0xf]
        %v853 = vld [vmem:[%s3 + $0x4] sm:$0xf]
        %v854 = vld [vmem:[%s3 + $0x8] sm:$0xf]
        %v855 = vld [vmem:[%s3 + $0xc] sm:$0xf]
        %v856 = vld [vmem:[%s3 + $0x10] sm:$0xf]
        %v857 = vld [vmem:[%s4] sm:$0x1]
        %v859 = vlaneseq
        %v860 = vshrl.u32 %v859, 7
        %v861 = vsub.s32 0, %v860
        %v862 = vrot.slane %v857, %v861
        %v869 = vunpack.c.l.b16 %v852
        %v870 = vunpack.c.l.b16 %v853
        %v871 = vunpack.c.l.b16 %v854
        %v872 = vunpack.c.l.b16 %v855
        %v873 = vunpack.c.l.b16 %v856
        %v874 = vpack.c.b16 %v870, %v869
        %v875 = vpack.c.b16 %v872, %v871
        %v876 = vpack.c.b16 %v873, %v873
        %vm879 = vcmask 326656
        %v881 = vsel %vm879, %v848, 0
        %v884 = vsel %vm879, %v849, 0
        %v887 = vsel %vm879, %v850, 0
        %v890 = vsel %vm879, %v851, 0
        %v893 = vsel %vm510, %v876, 0
        %895 = vmatprep.subr.bf16.mxu0 0
        %896 = vmatpush1.bf16.msra.mxu0 %v874
        %897 = vmatprep.subr.bf16.mxu0 0
        %898 = vmatpush1.bf16.msra.mxu0 %v875
        %899 = vmatprep.subr.bf16.mxu0 0
        %900 = vmatpush1.bf16.msra.mxu0 %v893
        %901 = vmatprep.subr.bf16.mxu0 0
        %902 = vmatpush1.bf16.msra.mxu0 0
        %903 = vmatprep.subr.bf16.mxu0 0
        %904 = vmatpush1.bf16.msra.mxu0 0
        %905 = vmatprep.subr.bf16.mxu0 0
        %906 = vmatpush1.bf16.msra.mxu0 0
        %907 = vmatprep.subr.bf16.mxu0 0
        %908 = vmatpush1.bf16.msra.mxu0 0
        %909 = vmatprep.subr.bf16.mxu0 0
        %910 = vmatpush1.bf16.msra.mxu0 0
        %911 = vmatprep.subr.bf16.mxu0 0
        %912 = vmatpush1.bf16.msra.mxu0 0
        %913 = vmatprep.subr.bf16.mxu0 0
        %914 = vmatpush1.bf16.msra.mxu0 0
        %915 = vmatprep.subr.bf16.mxu0 0
        %916 = vmatpush1.bf16.msra.mxu0 0
        %917 = vmatprep.subr.bf16.mxu0 0
        %918 = vmatpush1.bf16.msra.mxu0 0
        %919 = vmatprep.subr.bf16.mxu0 0
        %920 = vmatpush1.bf16.msra.mxu0 0
        %921 = vmatprep.subr.bf16.mxu0 0
        %922 = vmatpush1.bf16.msra.mxu0 0
        %923 = vmatprep.subr.bf16.mxu0 0
        %924 = vmatpush1.bf16.msra.mxu0 0
        %925 = vmatprep.subr.bf16.mxu0 0
        %926 = vmatpush1.bf16.msra.mxu0 0
        %927 = vmatprep.mubr.bf16.mxu0 0
        %928 = vmatmul.mubr.bf16.gmra.mrb[0].mxu0 %v881
        %v929 = vpop.f32.mrb[0].mxu0
        %v930 = vadd.f32 %v862, %v929
        %v931 = vpop.f32.mrb[0].mxu0
        %v932 = vpop.f32.mrb[0].mxu0
        %v933 = vadd.f32 %v862, %v932
        %v934 = vpop.f32.mrb[0].mxu0
        %935 = vmatprep.mubr.bf16.mxu0 0
        %936 = vmatmul.mubr.bf16.gmra.mrb[0].mxu0 %v884
        %v937 = vpop.f32.mrb[0].mxu0
        %v938 = vadd.f32 %v862, %v937
        %v939 = vpop.f32.mrb[0].mxu0
        %v940 = vpop.f32.mrb[0].mxu0
        %v941 = vadd.f32 %v862, %v940
        %v942 = vpop.f32.mrb[0].mxu0
        %943 = vmatprep.mubr.bf16.mxu0 0
        %944 = vmatmul.mubr.bf16.gmra.mrb[0].mxu0 %v887
        %v945 = vpop.f32.mrb[0].mxu0
        %v946 = vadd.f32 %v862, %v945
        %v947 = vpop.f32.mrb[0].mxu0
        %v948 = vpop.f32.mrb[0].mxu0
        %v949 = vadd.f32 %v862, %v948
        %v950 = vpop.f32.mrb[0].mxu0
        %951 = vmatprep.mubr.bf16.mxu0 0
        %952 = vmatmul.mubr.bf16.gmra.mrb[0].mxu0 %v890
        %v953 = vpop.f32.mrb[0].mxu0
        %v954 = vadd.f32 %v862, %v953
        %v955 = vpop.f32.mrb[0].mxu0
        %v956 = vpop.f32.mrb[0].mxu0
        %v957 = vadd.f32 %v862, %v956
        %v958 = vpop.f32.mrb[0].mxu0
        %959 = vdwg.mxu0
        %vm960 = vcmp.ge.f32.partialorder %v930, 0.0
        %vm961 = vcmp.ge.f32.partialorder %v933, 0.0
        %vm962 = vcmp.ge.f32.partialorder %v938, 0.0
        %vm963 = vcmp.ge.f32.partialorder %v941, 0.0
        %vm964 = vcmp.ge.f32.partialorder %v946, 0.0
        %vm965 = vcmp.ge.f32.partialorder %v949, 0.0
        %vm966 = vcmp.ge.f32.partialorder %v954, 0.0
        %vm967 = vcmp.ge.f32.partialorder %v957, 0.0
        %v968 = vmul.f32 %v930, 0.1
        %v969 = vmul.f32 %v933, 0.1
        %v970 = vmul.f32 %v938, 0.1
        %v971 = vmul.f32 %v941, 0.1
        %v972 = vmul.f32 %v946, 0.1
        %v973 = vmul.f32 %v949, 0.1
        %v974 = vmul.f32 %v954, 0.1
        %v975 = vmul.f32 %v957, 0.1
        %v976 = vsel %vm960, %v930, %v968
        %v977 = vsel %vm961, %v933, %v969
        %v978 = vsel %vm962, %v938, %v970
        %v979 = vsel %vm963, %v941, %v971
        %v980 = vsel %vm964, %v946, %v972
        %v981 = vsel %vm965, %v949, %v973
        %v982 = vsel %vm966, %v954, %v974
        %v983 = vsel %vm967, %v957, %v975
        %v984 = vpack.c.bf16 %v976, %v976
        %v985 = vpack.c.bf16 %v977, %v977
        %v986 = vpack.c.bf16 %v978, %v978
        %v987 = vpack.c.bf16 %v979, %v979
        %v988 = vpack.c.bf16 %v980, %v980
        %v989 = vpack.c.bf16 %v981, %v981
        %v990 = vpack.c.bf16 %v982, %v982
        %v991 = vpack.c.bf16 %v983, %v983
        %vm992 = vcmask 125952
        %993 = vst.msk [vmem:[%s336] sm:$0xf] %vm992, %v984
        %994 = vst.msk [vmem:[%s336 + $0x4] sm:$0xf] %vm992, %v985
        %995 = vst.msk [vmem:[%s336 + $0x8] sm:$0xf] %vm992, %v986
        %996 = vst.msk [vmem:[%s336 + $0xc] sm:$0xf] %vm992, %v987
        %997 = vst.msk [vmem:[%s336 + $0x10] sm:$0xf] %vm992, %v988
        %998 = vst.msk [vmem:[%s336 + $0x14] sm:$0xf] %vm992, %v989
        %999 = vst.msk [vmem:[%s336 + $0x18] sm:$0xf] %vm992, %v990
        %1000 = vst.msk [vmem:[%s336 + $0x1c] sm:$0xf] %vm992, %v991
        %vm1001 = vcmask 122880
        %1002 = vst.msk [vmem:[#allocation3] sm:$0x1] %vm1001, 0.0
        %1003 = vst.msk [vmem:[#allocation3 + $0x10] sm:$0x1] %vm1001, 0.0
        %1004 = vst.msk [vmem:[#allocation3 + $0x20] sm:$0x1] %vm1001, 0.0
        %1005 = vst.msk [vmem:[#allocation3 + $0x30] sm:$0x1] %vm1001, 0.0
        %1006 = vst.msk [vmem:[#allocation3 + $0x40] sm:$0x1] %vm1001, 0.0
        %1007 = vst.msk [vmem:[#allocation3 + $0x50] sm:$0x1] %vm1001, 0.0
        %1008 = vst.msk [vmem:[#allocation3 + $0x60] sm:$0x1] %vm1001, 0.0
        %1009 = vst.msk [vmem:[#allocation3 + $0x70] sm:$0x1] %vm1001, 0.0
        %1010 = vst.msk [vmem:[#allocation3 + $0x9] sm:$0x1] %vm1001, 0.0
        %1011 = vst.msk [vmem:[#allocation3 + $0x19] sm:$0x1] %vm1001, 0.0
        %1012 = vst.msk [vmem:[#allocation3 + $0x29] sm:$0x1] %vm1001, 0.0
        %1013 = vst.msk [vmem:[#allocation3 + $0x39] sm:$0x1] %vm1001, 0.0
        %1014 = vst.msk [vmem:[#allocation3 + $0x49] sm:$0x1] %vm1001, 0.0
        %1015 = vst.msk [vmem:[#allocation3 + $0x59] sm:$0x1] %vm1001, 0.0
        %1016 = vst.msk [vmem:[#allocation3 + $0x69] sm:$0x1] %vm1001, 0.0
        %1017 = vst.msk [vmem:[#allocation3 + $0x79] sm:$0x1] %vm1001, 0.0
        %1018 = vst.msk [vmem:[#allocation3 + $0x1] sm:$0xff] %vm822, %v976
        %1019 = vst.msk [vmem:[#allocation3 + $0x11] sm:$0xff] %vm822, %v977
        %1020 = vst.msk [vmem:[#allocation3 + $0x21] sm:$0xff] %vm822, %v978
        %1021 = vst.msk [vmem:[#allocation3 + $0x31] sm:$0xff] %vm822, %v979
        %1022 = vst.msk [vmem:[#allocation3 + $0x41] sm:$0xff] %vm822, %v980
        %1023 = vst.msk [vmem:[#allocation3 + $0x51] sm:$0xff] %vm822, %v981
        %1024 = vst.msk [vmem:[#allocation3 + $0x61] sm:$0xff] %vm822, %v982
        %1025 = vst.msk [vmem:[#allocation3 + $0x71] sm:$0xff] %vm822, %v983
        %v1026 = vld [vmem:[#allocation3] sm:$0xff]
        %v1027 = vld [vmem:[#allocation3 + $0x10] sm:$0xff]
        %v1028 = vld [vmem:[#allocation3 + $0x20] sm:$0xff]
        %v1029 = vld [vmem:[#allocation3 + $0x30] sm:$0xff]
        %v1030 = vld [vmem:[#allocation3 + $0x40] sm:$0xff]
        %v1031 = vld [vmem:[#allocation3 + $0x50] sm:$0xff]
        %v1032 = vld [vmem:[#allocation3 + $0x60] sm:$0xff]
        %v1033 = vld [vmem:[#allocation3 + $0x70] sm:$0xff]
        %v1034 = vld [vmem:[#allocation3 + $0x1] sm:$0xff]
        %v1035 = vld [vmem:[#allocation3 + $0x11] sm:$0xff]
        %v1036 = vld [vmem:[#allocation3 + $0x21] sm:$0xff]
        %v1037 = vld [vmem:[#allocation3 + $0x31] sm:$0xff]
        %v1038 = vld [vmem:[#allocation3 + $0x41] sm:$0xff]
        %v1039 = vld [vmem:[#allocation3 + $0x51] sm:$0xff]
        %v1040 = vld [vmem:[#allocation3 + $0x61] sm:$0xff]
        %v1041 = vld [vmem:[#allocation3 + $0x71] sm:$0xff]
        %v1042 = vld [vmem:[#allocation3 + $0x2] sm:$0xff]
        %v1043 = vld [vmem:[#allocation3 + $0x12] sm:$0xff]
        %v1044 = vld [vmem:[#allocation3 + $0x22] sm:$0xff]
        %v1045 = vld [vmem:[#allocation3 + $0x32] sm:$0xff]
        %v1046 = vld [vmem:[#allocation3 + $0x42] sm:$0xff]
        %v1047 = vld [vmem:[#allocation3 + $0x52] sm:$0xff]
        %v1048 = vld [vmem:[#allocation3 + $0x62] sm:$0xff]
        %v1049 = vld [vmem:[#allocation3 + $0x72] sm:$0xff]
        %1058 = vrot.lane.b32.xlu0 %v1034, 16
        %v1059 = vpop.permute.xlu0 %1058
        %1060 = vrot.lane.b32.xlu0 %v1035, 16
        %v1061 = vpop.permute.xlu0 %1060
        %1062 = vrot.lane.b32.xlu0 %v1036, 16
        %v1063 = vpop.permute.xlu0 %1062
        %1064 = vrot.lane.b32.xlu0 %v1037, 16
        %v1065 = vpop.permute.xlu0 %1064
        %1066 = vrot.lane.b32.xlu0 %v1038, 16
        %v1067 = vpop.permute.xlu0 %1066
        %1068 = vrot.lane.b32.xlu0 %v1039, 16
        %v1069 = vpop.permute.xlu0 %1068
        %1070 = vrot.lane.b32.xlu0 %v1040, 16
        %v1071 = vpop.permute.xlu0 %1070
        %1072 = vrot.lane.b32.xlu0 %v1041, 16
        %v1073 = vpop.permute.xlu0 %1072
        %1090 = vrot.lane.b32.xlu0 %v1042, 32
        %v1091 = vpop.permute.xlu0 %1090
        %1092 = vrot.lane.b32.xlu0 %v1043, 32
        %v1093 = vpop.permute.xlu0 %1092
        %1094 = vrot.lane.b32.xlu0 %v1044, 32
        %v1095 = vpop.permute.xlu0 %1094
        %1096 = vrot.lane.b32.xlu0 %v1045, 32
        %v1097 = vpop.permute.xlu0 %1096
        %1098 = vrot.lane.b32.xlu0 %v1046, 32
        %v1099 = vpop.permute.xlu0 %1098
        %1100 = vrot.lane.b32.xlu0 %v1047, 32
        %v1101 = vpop.permute.xlu0 %1100
        %1102 = vrot.lane.b32.xlu0 %v1048, 32
        %v1103 = vpop.permute.xlu0 %1102
        %1104 = vrot.lane.b32.xlu0 %v1049, 32
        %v1105 = vpop.permute.xlu0 %1104
        %v1114 = vsel %vm822, %v1026, %v1059
        %v1115 = vsel %vm822, %v1027, %v1061
        %v1116 = vsel %vm822, %v1028, %v1063
        %v1117 = vsel %vm822, %v1029, %v1065
        %v1118 = vsel %vm822, %v1030, %v1067
        %v1119 = vsel %vm822, %v1031, %v1069
        %v1120 = vsel %vm822, %v1032, %v1071
        %v1121 = vsel %vm822, %v1033, %v1073
        %v1122 = vsel %vm839, %v1114, %v1091
        %v1123 = vsel %vm839, %v1115, %v1093
        %v1124 = vsel %vm839, %v1116, %v1095
        %v1125 = vsel %vm839, %v1117, %v1097
        %v1126 = vsel %vm839, %v1118, %v1099
        %v1127 = vsel %vm839, %v1119, %v1101
        %v1128 = vsel %vm839, %v1120, %v1103
        %v1129 = vsel %vm839, %v1121, %v1105
        %v1130 = vpack.c.bf16 %v1123, %v1122
        %v1131 = vpack.c.bf16 %v1125, %v1124
        %v1132 = vpack.c.bf16 %v1127, %v1126
        %v1133 = vpack.c.bf16 %v1129, %v1128
        %v1134 = vld [vmem:[%s5] sm:$0xf]
        %v1135 = vld [vmem:[%s5 + $0x4] sm:$0xf]
        %v1136 = vld [vmem:[%s5 + $0x8] sm:$0xf]
        %v1137 = vld [vmem:[%s5 + $0xc] sm:$0xf]
        %v1138 = vld [vmem:[%s5 + $0x10] sm:$0xf]
        %v1139 = vld [vmem:[%s5 + $0x14] sm:$0xf]
        %v1140 = vld [vmem:[%s6] sm:$0x1]
        %v1142 = vlaneseq
        %v1143 = vshrl.u32 %v1142, 7
        %v1144 = vsub.s32 0, %v1143
        %v1145 = vrot.slane %v1140, %v1144
        %v1153 = vunpack.c.l.b16 %v1134
        %v1154 = vunpack.c.l.b16 %v1135
        %v1155 = vunpack.c.l.b16 %v1136
        %v1156 = vunpack.c.l.b16 %v1137
        %v1157 = vunpack.c.l.b16 %v1138
        %v1158 = vunpack.c.l.b16 %v1139
        %v1159 = vpack.c.b16 %v1154, %v1153
        %v1160 = vpack.c.b16 %v1156, %v1155
        %v1161 = vpack.c.b16 %v1158, %v1157
        %vm1165 = vcmask 392192
        %v1167 = vsel %vm1165, %v1130, 0
        %v1170 = vsel %vm1165, %v1131, 0
        %v1173 = vsel %vm1165, %v1132, 0
        %v1176 = vsel %vm1165, %v1133, 0
        %1178 = vmatprep.subr.bf16.mxu0 0
        %1179 = vmatpush1.bf16.msra.mxu0 %v1159
        %1180 = vmatprep.subr.bf16.mxu0 0
        %1181 = vmatpush1.bf16.msra.mxu0 %v1160
        %1182 = vmatprep.subr.bf16.mxu0 0
        %1183 = vmatpush1.bf16.msra.mxu0 %v1161
        %1184 = vmatprep.subr.bf16.mxu0 0
        %1185 = vmatpush1.bf16.msra.mxu0 0
        %1186 = vmatprep.subr.bf16.mxu0 0
        %1187 = vmatpush1.bf16.msra.mxu0 0
        %1188 = vmatprep.subr.bf16.mxu0 0
        %1189 = vmatpush1.bf16.msra.mxu0 0
        %1190 = vmatprep.subr.bf16.mxu0 0
        %1191 = vmatpush1.bf16.msra.mxu0 0
        %1192 = vmatprep.subr.bf16.mxu0 0
        %1193 = vmatpush1.bf16.msra.mxu0 0
        %1194 = vmatprep.subr.bf16.mxu0 0
        %1195 = vmatpush1.bf16.msra.mxu0 0
        %1196 = vmatprep.subr.bf16.mxu0 0
        %1197 = vmatpush1.bf16.msra.mxu0 0
        %1198 = vmatprep.subr.bf16.mxu0 0
        %1199 = vmatpush1.bf16.msra.mxu0 0
        %1200 = vmatprep.subr.bf16.mxu0 0
        %1201 = vmatpush1.bf16.msra.mxu0 0
        %1202 = vmatprep.subr.bf16.mxu0 0
        %1203 = vmatpush1.bf16.msra.mxu0 0
        %1204 = vmatprep.subr.bf16.mxu0 0
        %1205 = vmatpush1.bf16.msra.mxu0 0
        %1206 = vmatprep.subr.bf16.mxu0 0
        %1207 = vmatpush1.bf16.msra.mxu0 0
        %1208 = vmatprep.subr.bf16.mxu0 0
        %1209 = vmatpush1.bf16.msra.mxu0 0
        %1210 = vmatprep.mubr.bf16.mxu0 0
        %1211 = vmatmul.mubr.bf16.gmra.mrb[0].mxu0 %v1167
        %v1212 = vpop.f32.mrb[0].mxu0
        %v1213 = vadd.f32 %v1145, %v1212
        %v1214 = vpop.f32.mrb[0].mxu0
        %v1215 = vpop.f32.mrb[0].mxu0
        %v1216 = vadd.f32 %v1145, %v1215
        %v1217 = vpop.f32.mrb[0].mxu0
        %1218 = vmatprep.mubr.bf16.mxu0 0
        %1219 = vmatmul.mubr.bf16.gmra.mrb[0].mxu0 %v1170
        %v1220 = vpop.f32.mrb[0].mxu0
        %v1221 = vadd.f32 %v1145, %v1220
        %v1222 = vpop.f32.mrb[0].mxu0
        %v1223 = vpop.f32.mrb[0].mxu0
        %v1224 = vadd.f32 %v1145, %v1223
        %v1225 = vpop.f32.mrb[0].mxu0
        %1226 = vmatprep.mubr.bf16.mxu0 0
        %1227 = vmatmul.mubr.bf16.gmra.mrb[0].mxu0 %v1173
        %v1228 = vpop.f32.mrb[0].mxu0
        %v1229 = vadd.f32 %v1145, %v1228
        %v1230 = vpop.f32.mrb[0].mxu0
        %v1231 = vpop.f32.mrb[0].mxu0
        %v1232 = vadd.f32 %v1145, %v1231
        %v1233 = vpop.f32.mrb[0].mxu0
        %1234 = vmatprep.mubr.bf16.mxu0 0
        %1235 = vmatmul.mubr.bf16.gmra.mrb[0].mxu0 %v1176
        %v1236 = vpop.f32.mrb[0].mxu0
        %v1237 = vadd.f32 %v1145, %v1236
        %v1238 = vpop.f32.mrb[0].mxu0
        %v1239 = vpop.f32.mrb[0].mxu0
        %v1240 = vadd.f32 %v1145, %v1239
        %v1241 = vpop.f32.mrb[0].mxu0
        %1242 = vdwg.mxu0
        %vm1243 = vcmask 31744
        %1244 = vst.msk [vmem:[%s362] sm:$0xff] %vm1243, %v1213
        %1245 = vst.msk [vmem:[%s362 + $0x8] sm:$0xff] %vm1243, %v1216
        %1246 = vst.msk [vmem:[%s362 + $0x10] sm:$0xff] %vm1243, %v1221
        %1247 = vst.msk [vmem:[%s362 + $0x18] sm:$0xff] %vm1243, %v1224
        %1248 = vst.msk [vmem:[%s362 + $0x20] sm:$0xff] %vm1243, %v1229
        %1249 = vst.msk [vmem:[%s362 + $0x28] sm:$0xff] %vm1243, %v1232
        %1250 = vst.msk [vmem:[%s362 + $0x30] sm:$0xff] %vm1243, %v1237
        %1251 = vst.msk [vmem:[%s362 + $0x38] sm:$0xff] %vm1243, %v1240
        %s1252 = smul.u32 8, %s24
        %p1253 = scmp.lt.s32.totalorder %s1252, 15
        %s1254 = scalar_select %p1253, %s1252, 15
        %s1255 = smul.addr %s1254, 4
        %s1256 = scalar_lea.vmem %s7, %s1255
        %s1257 = sand.u32 %s210, 1
        %s1258 = scalar_lea.sflag [#allocation5], %s1257
        %s1259 = sand.u32 %s210, 1
        %s1260 = smul.addr %s1259, 32
        %s1261 = scalar_lea.vmem [#allocation4], %s1260
        %s1262 = smul.u32 8, %s24
        %p1263 = scmp.lt.s32.totalorder %s1262, 15
        %s1264 = scalar_select %p1263, %s1262, 15
        %s1265 = smul.addr %s1264, 8
        %s1266 = scalar_lea.vmem %s9, %s1265
        // Predicated region
        $region49: #{tpu_custom_call.1} parent=47 // pred_check
          %p1267 = pneg %p194
        $region50: #{tpu_custom_call.1} parent=47 // pred_check_branch
          %1269 = sbr.rel (%p1267) target = $region52
        $region51: #{tpu_custom_call.1} parent=47 // pred_region
          %s1270 = smul.u32 8, %s24
        $region52: #{tpu_custom_call.1} parent=47 // pred_fallthru
          _
        // Predicated region
        $region53: #{tpu_custom_call.1} parent=47 // pred_check
          %p1271 = pneg %p220
        $region54: #{tpu_custom_call.1} parent=47 // pred_check_branch
          %1273 = sbr.rel (%p1271) target = $region56
        $region55: #{tpu_custom_call.1} parent=47 // pred_region
          %s1274 = smul.u32 8, %s24
          %s1276 = ssub.s32 512, 512
          %1277 = vsyncadd %s1258, %s1276
          %s1278 = smul.addr %s1274, 64
          %s1279 = scalar_lea.hbm %s8, %s1278
          %s1280 = sshll.u32 %s1261, 4
          %s1281 = int_to_ptr.vmem [resolvable:$true] %s1280
          %1286 = dma.vmem_to_hbm [thread:$0]  %s1281, 512, %s1279, %s1258, 64, 64, 4
        $region56: #{tpu_custom_call.1} parent=47 // pred_fallthru
          _
        // Predicated region
        $region57: #{tpu_custom_call.1} parent=47 // pred_check
          %p1287 = pneg %p246
        $region58: #{tpu_custom_call.1} parent=47 // pred_check_branch
          %1289 = sbr.rel (%p1287) target = $region60
        $region59: #{tpu_custom_call.1} parent=47 // pred_region
          %s1290 = smul.u32 8, %s24
        $region60: #{tpu_custom_call.1} parent=47 // pred_fallthru
          _
      $region48: #{tpu_custom_call.1} parent=5 // pred_fallthru
        _
      %p1291 = scmp.le.s32.totalorder 2, %s19
      // Predicated region
      $region61: #{tpu_custom_call.1} parent=5 // pred_check
        %p1292 = pneg %p1291
      $region62: #{tpu_custom_call.1} parent=5 // pred_check_branch
        %1294 = sbr.rel (%p1292) target = $region64
      $region63: #{tpu_custom_call.1} parent=5 // pred_region
        %s1295 = ssub.s32 %s19, 2
        // Predicated region
        $region65: #{tpu_custom_call.1} parent=63 // pred_check
          %p1296 = pneg %p200
        $region66: #{tpu_custom_call.1} parent=63 // pred_check_branch
          %1298 = sbr.rel (%p1296) target = $region68
        $region67: #{tpu_custom_call.1} parent=63 // pred_region
          %s1299 = smul.u32 8, %s25
          %p1300 = scmp.lt.s32.totalorder %s1299, 15
          %s1301 = scalar_select %p1300, %s1299, 15
          %s1302 = smul.addr %s1301, 4
          %s1303 = scalar_lea.vmem %s7, %s1302
        $region68: #{tpu_custom_call.1} parent=63 // pred_fallthru
          _
        // Predicated region
        $region69: #{tpu_custom_call.1} parent=63 // pred_check
          %p1304 = pneg %p226
        $region70: #{tpu_custom_call.1} parent=63 // pred_check_branch
          %1306 = sbr.rel (%p1304) target = $region72
        $region71: #{tpu_custom_call.1} parent=63 // pred_region
          %s1307 = sand.u32 %s211, 1
          %s1308 = scalar_lea.sflag [#allocation5], %s1307
          %s1309 = sand.u32 %s211, 1
          %s1310 = smul.addr %s1309, 32
          %s1311 = scalar_lea.vmem [#allocation4], %s1310
          %1312 = dma.done %s1308, 512
        $region72: #{tpu_custom_call.1} parent=63 // pred_fallthru
          _
        // Predicated region
        $region73: #{tpu_custom_call.1} parent=63 // pred_check
          %p1313 = pneg %p252
        $region74: #{tpu_custom_call.1} parent=63 // pred_check_branch
          %1315 = sbr.rel (%p1313) target = $region76
        $region75: #{tpu_custom_call.1} parent=63 // pred_region
          %s1316 = smul.u32 8, %s25
          %p1317 = scmp.lt.s32.totalorder %s1316, 15
          %s1318 = scalar_select %p1317, %s1316, 15
          %s1319 = smul.addr %s1318, 8
          %s1320 = scalar_lea.vmem %s9, %s1319
        $region76: #{tpu_custom_call.1} parent=63 // pred_fallthru
          _
      $region64: #{tpu_custom_call.1} parent=5 // pred_fallthru
        _
    $region6: #{tpu_custom_call.1} parent=1 // loop_footer
      %s23 = sadd.s32 1, %s19
    $region7: #{tpu_custom_call.1} parent=1 // loop_footer_branch
      %18 = sbr.rel target = $region3
    $region8: #{tpu_custom_call.1} parent=1 // loop_exit
      _
    %1321 = vsyncpa [#allocation5], 1
    %s1322 = scalar_lea.sflag [#allocation5], 1
    %1323 = vsyncpa %s1322, 1

// kernel: tpu_custom_call.1
$region0: #{tpu_custom_call.1}
  #allocation0 [shape = 'u32[]', space=smem, size = 0x4, offset = 0x4, fixed_abs, tag = 'smem constant byte address 0x4 - core index']
  #allocation1 [shape = 'u32[144,128]{1,0:T(1,128)}', space=vmem, size = 0x12000, scoped, tag = 'internal scratch']
  #allocation2 [shape = 'f32[8,12,8]{2,1,0:T(8,128)}', space=vmem, size = 0x10000, scoped, tag = 'scratch operand']
  #allocation3 [shape = 'f32[8,10,16]{2,1,0:T(8,128)}', space=vmem, size = 0x10000, scoped, tag = 'scratch operand']
  %s0 = inlined_call_operand.vmem [shape: f32[16,9,12], index: 0, kind: input, shape index: {}]
  %s1 = inlined_call_operand.vmem [shape: bf16[2,12,8], index: 1, kind: input, shape index: {}]
  %s2 = inlined_call_operand.vmem [shape: f32[1,8], index: 2, kind: input, shape index: {}]
  %s3 = inlined_call_operand.vmem [shape: bf16[5,8,16], index: 3, kind: input, shape index: {}]
  %s4 = inlined_call_operand.vmem [shape: f32[1,16], index: 4, kind: input, shape index: {}]
  %s5 = inlined_call_operand.vmem [shape: bf16[3,16,4], index: 5, kind: input, shape index: {}]
  %s6 = inlined_call_operand.vmem [shape: f32[1,4], index: 6, kind: input, shape index: {}]
  %s7 = inlined_call_operand.vmem [shape: bf16[16,8,8], index: 7, kind: output, shape index: {0}]
  %s8 = inlined_call_operand.hbm [shape: bf16[16,8,16], index: 8, kind: output, shape index: {1}]
  %s9 = inlined_call_operand.vmem [shape: f32[16,8,4], index: 9, kind: output, shape index: {2}]
  %10 = xla_tuple %s7, %s8, %s9
  %s11 = sld [smem:[#allocation0]]
  $region77: #{tpu_custom_call.1} parent=0
    _
  %s13 = ssub.s32 1, %s11
  %s14 = scalar_select 0, %s13, %s11
  $region1: #{tpu_custom_call.1} parent=0
    #allocation4 [shape = 'u8[32768]{0}', space=vmem, size = 0x8000, scoped, tag = 'output window, operand 1']
    #allocation5 [shape = 's32[2]{0}', space=sflag, size = 0x8, scoped, tag = 'scoped memory for tpu_custom_call.1']
    %15 = vsyncpa [#allocation5], 0
    %s16 = scalar_lea.sflag [#allocation5], 1
    %17 = vsyncpa %s16, 0
    loop: start=0, step=1, limit=4
    $region2: #{tpu_custom_call.1} parent=1 // loop_pre_header
      _
    $region3: #{tpu_custom_call.1} parent=1 // loop_header
      %s19 = sphi 0, %s23
      %p20 = scmp.ge.s32.totalorder %s19, 4
      %s29 = sphi 0, %s31
      %s32 = sphi 0, %s29
      %s33 = sphi 0, %s32
      %s49 = sphi 0, %s33
      %s53 = sphi 0, %s53
      %s55 = sphi 0, %s53
      %s56 = sphi 0, %s55
      %s70 = sphi 0, %s56
      %s74 = sphi 0, %s74
      %s76 = sphi 0, %s74
      %s77 = sphi 0, %s76
      %s91 = sphi 0, %s77
      %s95 = sphi 0, %s95
      %s97 = sphi 0, %s95
      %s98 = sphi 0, %s97
      %s112 = sphi 0, %s98
      %s116 = sphi 0, %s116
      %s118 = sphi 0, %s116
      %s119 = sphi 0, %s118
      %s133 = sphi 0, %s119
      %s137 = sphi 0, %s137
      %s139 = sphi 0, %s137
      %s140 = sphi 0, %s139
      %s154 = sphi 0, %s140
      %s158 = sphi 0, %s158
      %s160 = sphi 0, %s158
      %s161 = sphi 0, %s160
      %s175 = sphi 0, %s161
      %s181 = sphi 0, %s183
      %s184 = sphi 0, %s181
      %s185 = sphi 0, %s184
      %s201 = sphi 0, %s185
      %s207 = sphi 0, %s209
      %s210 = sphi 0, %s207
      %s211 = sphi 0, %s210
      %s227 = sphi 0, %s211
      %s233 = sphi 0, %s235
      %s236 = sphi 0, %s233
      %s237 = sphi 0, %s236
      %s253 = sphi 0, %s237
    $region4: #{tpu_custom_call.1} parent=1 // loop_header_branch
      %22 = sbr.rel (%p20) target = $region8
    $region5: #{tpu_custom_call.1} parent=1 // loop_body
      %s24 = ssub.s32 %s19, 1
      %s25 = ssub.s32 %s19, 2
      %s26 = sadd.s32 %s19, 1
      %s27 = ssub.s32 %s19, %s26
      %p28 = scmp.eq.s32.totalorder %s27, 0
      %s30 = sadd.s32 %s29, 1
      %s31 = scalar_select %p28, %s29, %s30
      %p34 = pneg %p28
      %p35 = scmp.eq.s32.totalorder %s19, 1
      %p36 = por %p34, %p35
      %p37 = scmp.ne.s32.totalorder %s29, %s32
      %p38 = scmp.eq.s32.totalorder %s19, 0
      %p39 = por %p37, %p38
      %p40 = scmp.ne.s32.totalorder %s29, %s32
      %p41 = scmp.eq.s32.totalorder %s24, 1
      %p42 = por %p40, %p41
      %p43 = scmp.ne.s32.totalorder %s32, %s33
      %p44 = scmp.eq.s32.totalorder %s24, 0
      %p45 = por %p43, %p44
      %p46 = scmp.ne.s32.totalorder %s32, %s33
      %p47 = scmp.eq.s32.totalorder %s25, 1
      %p48 = por %p46, %p47
      %p50 = scmp.ne.s32.totalorder %s33, %s49
      %p51 = scmp.eq.s32.totalorder %s25, 0
      %p52 = por %p50, %p51
      %s54 = sadd.s32 %s53, 1
      %p57 = scmp.eq.s32.totalorder %s19, 1
      %p58 = scmp.ne.s32.totalorder %s53, %s55
      %p59 = scmp.eq.s32.totalorder %s19, 0
      %p60 = por %p58, %p59
      %p61 = scmp.ne.s32.totalorder %s53, %s55
      %p62 = scmp.eq.s32.totalorder %s24, 1
      %p63 = por %p61, %p62
      %p64 = scmp.ne.s32.totalorder %s55, %s56
      %p65 = scmp.eq.s32.totalorder %s24, 0
      %p66 = por %p64, %p65
      %p67 = scmp.ne.s32.totalorder %s55, %s56
      %p68 = scmp.eq.s32.totalorder %s25, 1
      %p69 = por %p67, %p68
      %p71 = scmp.ne.s32.totalorder %s56, %s70
      %p72 = scmp.eq.s32.totalorder %s25, 0
      %p73 = por %p71, %p72
      %s75 = sadd.s32 %s74, 1
      %p78 = scmp.eq.s32.totalorder %s19, 1
      %p79 = scmp.ne.s32.totalorder %s74, %s76
      %p80 = scmp.eq.s32.totalorder %s19, 0
      %p81 = por %p79, %p80
      %p82 = scmp.ne.s32.totalorder %s74, %s76
      %p83 = scmp.eq.s32.totalorder %s24, 1
      %p84 = por %p82, %p83
      %p85 = scmp.ne.s32.totalorder %s76, %s77
      %p86 = scmp.eq.s32.totalorder %s24, 0
      %p87 = por %p85, %p86
      %p88 = scmp.ne.s32.totalorder %s76, %s77
      %p89 = scmp.eq.s32.totalorder %s25, 1
      %p90 = por %p88, %p89
      %p92 = scmp.ne.s32.totalorder %s77, %s91
      %p93 = scmp.eq.s32.totalorder %s25, 0
      %p94 = por %p92, %p93
      %s96 = sadd.s32 %s95, 1
      %p99 = scmp.eq.s32.totalorder %s19, 1
      %p100 = scmp.ne.s32.totalorder %s95, %s97
      %p101 = scmp.eq.s32.totalorder %s19, 0
      %p102 = por %p100, %p101
      %p103 = scmp.ne.s32.totalorder %s95, %s97
      %p104 = scmp.eq.s32.totalorder %s24, 1
      %p105 = por %p103, %p104
      %p106 = scmp.ne.s32.totalorder %s97, %s98
      %p107 = scmp.eq.s32.totalorder %s24, 0
      %p108 = por %p106, %p107
      %p109 = scmp.ne.s32.totalorder %s97, %s98
      %p110 = scmp.eq.s32.totalorder %s25, 1
      %p111 = por %p109, %p110
      %p113 = scmp.ne.s32.totalorder %s98, %s112
      %p114 = scmp.eq.s32.totalorder %s25, 0
      %p115 = por %p113, %p114
      %s117 = sadd.s32 %s116, 1
      %p120 = scmp.eq.s32.totalorder %s19, 1
      %p121 = scmp.ne.s32.totalorder %s116, %s118
      %p122 = scmp.eq.s32.totalorder %s19, 0
      %p123 = por %p121, %p122
      %p124 = scmp.ne.s32.totalorder %s116, %s118
      %p125 = scmp.eq.s32.totalorder %s24, 1
      %p126 = por %p124, %p125
      %p127 = scmp.ne.s32.totalorder %s118, %s119
      %p128 = scmp.eq.s32.totalorder %s24, 0
      %p129 = por %p127, %p128
      %p130 = scmp.ne.s32.totalorder %s118, %s119
      %p131 = scmp.eq.s32.totalorder %s25, 1
      %p132 = por %p130, %p131
      %p134 = scmp.ne.s32.totalorder %s119, %s133
      %p135 = scmp.eq.s32.totalorder %s25, 0
      %p136 = por %p134, %p135
      %s138 = sadd.s32 %s137, 1
      %p141 = scmp.eq.s32.totalorder %s19, 1
      %p142 = scmp.ne.s32.totalorder %s137, %s139
      %p143 = scmp.eq.s32.totalorder %s19, 0
      %p144 = por %p142, %p143
      %p145 = scmp.ne.s32.totalorder %s137, %s139
      %p146 = scmp.eq.s32.totalorder %s24, 1
      %p147 = por %p145, %p146
      %p148 = scmp.ne.s32.totalorder %s139, %s140
      %p149 = scmp.eq.s32.totalorder %s24, 0
      %p150 = por %p148, %p149
      %p151 = scmp.ne.s32.totalorder %s139, %s140
      %p152 = scmp.eq.s32.totalorder %s25, 1
      %p153 = por %p151, %p152
      %p155 = scmp.ne.s32.totalorder %s140, %s154
      %p156 = scmp.eq.s32.totalorder %s25, 0
      %p157 = por %p155, %p156
      %s159 = sadd.s32 %s158, 1
      %p162 = scmp.eq.s32.totalorder %s19, 1
      %p163 = scmp.ne.s32.totalorder %s158, %s160
      %p164 = scmp.eq.s32.totalorder %s19, 0
      %p165 = por %p163, %p164
      %p166 = scmp.ne.s32.totalorder %s158, %s160
      %p167 = scmp.eq.s32.totalorder %s24, 1
      %p168 = por %p166, %p167
      %p169 = scmp.ne.s32.totalorder %s160, %s161
      %p170 = scmp.eq.s32.totalorder %s24, 0
      %p171 = por %p169, %p170
      %p172 = scmp.ne.s32.totalorder %s160, %s161
      %p173 = scmp.eq.s32.totalorder %s25, 1
      %p174 = por %p172, %p173
      %p176 = scmp.ne.s32.totalorder %s161, %s175
      %p177 = scmp.eq.s32.totalorder %s25, 0
      %p178 = por %p176, %p177
      %s179 = ssub.s32 %s19, %s26
      %p180 = scmp.eq.s32.totalorder %s179, 0
      %s182 = sadd.s32 %s181, 1
      %s183 = scalar_select %p180, %s181, %s182
      %p186 = pneg %p180
      %p187 = scmp.eq.s32.totalorder %s19, 1
      %p188 = por %p186, %p187
      %p189 = scmp.ne.s32.totalorder %s181, %s184
      %p190 = scmp.eq.s32.totalorder %s19, 0
      %p191 = por %p189, %p190
      %p192 = scmp.ne.s32.totalorder %s181, %s184
      %p193 = scmp.eq.s32.totalorder %s24, 1
      %p194 = por %p192, %p193
      %p195 = scmp.ne.s32.totalorder %s184, %s185
      %p196 = scmp.eq.s32.totalorder %s24, 0
      %p197 = por %p195, %p196
      %p198 = scmp.ne.s32.totalorder %s184, %s185
      %p199 = scmp.eq.s32.totalorder %s25, 1
      %p200 = por %p198, %p199
      %p202 = scmp.ne.s32.totalorder %s185, %s201
      %p203 = scmp.eq.s32.totalorder %s25, 0
      %p204 = por %p202, %p203
      %s205 = ssub.s32 %s19, %s26
      %p206 = scmp.eq.s32.totalorder %s205, 0
      %s208 = sadd.s32 %s207, 1
      %s209 = scalar_select %p206, %s207, %s208
      %p212 = pneg %p206
      %p213 = scmp.eq.s32.totalorder %s19, 1
      %p214 = por %p212, %p213
      %p215 = scmp.ne.s32.totalorder %s207, %s210
      %p216 = scmp.eq.s32.totalorder %s19, 0
      %p217 = por %p215, %p216
      %p218 = scmp.ne.s32.totalorder %s207, %s210
      %p219 = scmp.eq.s32.totalorder %s24, 1
      %p220 = por %p218, %p219
      %p221 = scmp.ne.s32.totalorder %s210, %s211
      %p222 = scmp.eq.s32.totalorder %s24, 0
      %p223 = por %p221, %p222
      %p224 = scmp.ne.s32.totalorder %s210, %s211
      %p225 = scmp.eq.s32.totalorder %s25, 1
      %p226 = por %p224, %p225
      %p228 = scmp.ne.s32.totalorder %s211, %s227
      %p229 = scmp.eq.s32.totalorder %s25, 0
      %p230 = por %p228, %p229
      %s231 = ssub.s32 %s19, %s26
      %p232 = scmp.eq.s32.totalorder %s231, 0
      %s234 = sadd.s32 %s233, 1
      %s235 = scalar_select %p232, %s233, %s234
      %p238 = pneg %p232
      %p239 = scmp.eq.s32.totalorder %s19, 1
      %p240 = por %p238, %p239
      %p241 = scmp.ne.s32.totalorder %s233, %s236
      %p242 = scmp.eq.s32.totalorder %s19, 0
      %p243 = por %p241, %p242
      %p244 = scmp.ne.s32.totalorder %s233, %s236
      %p245 = scmp.eq.s32.totalorder %s24, 1
      %p246 = por %p244, %p245
      %p247 = scmp.ne.s32.totalorder %s236, %s237
      %p248 = scmp.eq.s32.totalorder %s24, 0
      %p249 = por %p247, %p248
      %p250 = scmp.ne.s32.totalorder %s236, %s237
      %p251 = scmp.eq.s32.totalorder %s25, 1
      %p252 = por %p250, %p251
      %p254 = scmp.ne.s32.totalorder %s237, %s253
      %p255 = scmp.eq.s32.totalorder %s25, 0
      %p256 = por %p254, %p255
      %p257 = scmp.le.s32.totalorder 1, %s19
      %p258 = scmp.lt.s32.totalorder %s19, 3
      %p259 = pnand %p257, %p258
      %p260 = pneg %p259
      // Predicated region
      $region9: #{tpu_custom_call.1} parent=5 // pred_check
        _
      $region10: #{tpu_custom_call.1} parent=5 // pred_check_branch
        %262 = sbr.rel (%p259) target = $region12
      $region11: #{tpu_custom_call.1} parent=5 // pred_region
        %s263 = ssub.s32 %s19, 1
        // Predicated region
        $region13: #{tpu_custom_call.1} parent=11 // pred_check
          %p264 = pneg %p66
        $region14: #{tpu_custom_call.1} parent=11 // pred_check_branch
          %266 = sbr.rel (%p264) target = $region16
        $region15: #{tpu_custom_call.1} parent=11 // pred_region
          _
        $region16: #{tpu_custom_call.1} parent=11 // pred_fallthru
          _
        // Predicated region
        $region17: #{tpu_custom_call.1} parent=11 // pred_check
          %p267 = pneg %p87
        $region18: #{tpu_custom_call.1} parent=11 // pred_check_branch
          %269 = sbr.rel (%p267) target = $region20
        $region19: #{tpu_custom_call.1} parent=11 // pred_region
          _
        $region20: #{tpu_custom_call.1} parent=11 // pred_fallthru
          _
        // Predicated region
        $region21: #{tpu_custom_call.1} parent=11 // pred_check
          %p270 = pneg %p108
        $region22: #{tpu_custom_call.1} parent=11 // pred_check_branch
          %272 = sbr.rel (%p270) target = $region24
        $region23: #{tpu_custom_call.1} parent=11 // pred_region
          _
        $region24: #{tpu_custom_call.1} parent=11 // pred_fallthru
          _
        // Predicated region
        $region25: #{tpu_custom_call.1} parent=11 // pred_check
          %p273 = pneg %p129
        $region26: #{tpu_custom_call.1} parent=11 // pred_check_branch
          %275 = sbr.rel (%p273) target = $region28
        $region27: #{tpu_custom_call.1} parent=11 // pred_region
          _
        $region28: #{tpu_custom_call.1} parent=11 // pred_fallthru
          _
        // Predicated region
        $region29: #{tpu_custom_call.1} parent=11 // pred_check
          %p276 = pneg %p150
        $region30: #{tpu_custom_call.1} parent=11 // pred_check_branch
          %278 = sbr.rel (%p276) target = $region32
        $region31: #{tpu_custom_call.1} parent=11 // pred_region
          _
        $region32: #{tpu_custom_call.1} parent=11 // pred_fallthru
          _
        // Predicated region
        $region33: #{tpu_custom_call.1} parent=11 // pred_check
          %p279 = pneg %p171
        $region34: #{tpu_custom_call.1} parent=11 // pred_check_branch
          %281 = sbr.rel (%p279) target = $region36
        $region35: #{tpu_custom_call.1} parent=11 // pred_region
          _
        $region36: #{tpu_custom_call.1} parent=11 // pred_fallthru
          _
      $region12: #{tpu_custom_call.1} parent=5 // pred_fallthru
        _
      %p282 = scmp.lt.s32.totalorder %s19, 2
      // Predicated region
      $region37: #{tpu_custom_call.1} parent=5 // pred_check
        %p283 = pneg %p282
      $region38: #{tpu_custom_call.1} parent=5 // pred_check_branch
        %285 = sbr.rel (%p283) target = $region40
      $region39: #{tpu_custom_call.1} parent=5 // pred_region
        // Predicated region
        $region41: #{tpu_custom_call.1} parent=39 // pred_check
          %p286 = pneg %p39
        $region42: #{tpu_custom_call.1} parent=39 // pred_check_branch
          %288 = sbr.rel (%p286) target = $region44
        $region43: #{tpu_custom_call.1} parent=39 // pred_region
          %s289 = smul.u32 8, %s19
          %p290 = scmp.lt.s32.totalorder %s289, 15
          %s291 = scalar_select %p290, %s289, 15
          %s292 = smul.addr %s291, 2
          %s293 = smul.addr %s292, 8
          %s294 = scalar_lea.vmem %s0, %s293
          %s295 = smul.u32 8, %s19
        $region44: #{tpu_custom_call.1} parent=39 // pred_fallthru
          _
      $region40: #{tpu_custom_call.1} parent=5 // pred_fallthru
        _
      %p296 = scmp.le.s32.totalorder 1, %s19
      %p297 = scmp.lt.s32.totalorder %s19, 3
      %p298 = pnand %p296, %p297
      %p299 = pneg %p298
      // Predicated region
      $region45: #{tpu_custom_call.1} parent=5 // pred_check
        _
      $region46: #{tpu_custom_call.1} parent=5 // pred_check_branch
        %301 = sbr.rel (%p298) target = $region48
      $region47: #{tpu_custom_call.1} parent=5 // pred_region
        %s302 = ssub.s32 %s19, 1
        %s303 = smul.u32 8, %s24
        %p304 = scmp.lt.s32.totalorder %s303, 15
        %s305 = scalar_select %p304, %s303, 15
        %s306 = smul.addr %s305, 2
        %s307 = smul.addr %s306, 8
        %s308 = scalar_lea.vmem %s0, %s307
        %p309 = pneg %p45
        %p310 = pneg %p42
        %p311 = pneg %p66
        %p312 = pneg %p63
        %p313 = pneg %p87
        %p314 = pneg %p84
        %p315 = pneg %p108
        %p316 = pneg %p105
        %p317 = pneg %p129
        %p318 = pneg %p126
        %p319 = pneg %p150
        %p320 = pneg %p147
        %p321 = pneg %p171
        %p322 = pneg %p168
        %p323 = pneg %p197
        %p324 = pneg %p194
        %s325 = smul.u32 8, %s24
        %p326 = scmp.lt.s32.totalorder %s325, 15
        %s327 = scalar_select %p326, %s325, 15
        %s328 = smul.addr %s327, 4
        %s329 = scalar_lea.vmem %s7, %s328
        %p330 = pneg %p223
        %p331 = pneg %p220
        %s332 = sand.u32 %s210, 1
        %s333 = scalar_lea.sflag [#allocation5], %s332
        %s334 = sand.u32 %s210, 1
        %s335 = smul.addr %s334, 32
        %s336 = scalar_lea.vmem [#allocation4], %s335
        %p337 = pneg %p249
        %p338 = pneg %p246
        %s339 = smul.u32 8, %s24
        %p340 = scmp.lt.s32.totalorder %s339, 15
        %s341 = scalar_select %p340, %s339, 15
        %s342 = smul.addr %s341, 8
        %s343 = scalar_lea.vmem %s9, %s342
        %s344 = smul.u32 8, %s24
        %p345 = scmp.lt.s32.totalorder %s344, 15
        %s346 = scalar_select %p345, %s344, 15
        %s347 = smul.addr %s346, 2
        %s348 = smul.addr %s347, 8
        %s349 = scalar_lea.vmem %s0, %s348
        %s350 = smul.u32 8, %s24
        %s351 = smul.u32 8, %s24
        %p352 = scmp.lt.s32.totalorder %s351, 15
        %s353 = scalar_select %p352, %s351, 15
        %s354 = smul.addr %s353, 4
        %s355 = scalar_lea.vmem %s7, %s354
        %s356 = smul.u32 8, %s24
        %s357 = smul.u32 8, %s24
        %s358 = smul.u32 8, %s24
        %p359 = scmp.lt.s32.totalorder %s358, 15
        %s360 = scalar_select %p359, %s358, 15
        %s361 = smul.addr %s360, 8
        %s362 = scalar_lea.vmem %s9, %s361
        %s363 = smul.u32 8, %s24
        %v365 = vld [vmem:[%s349] sm:$0xff]
        %v366 = vld [vmem:[%s349 + $0x10] sm:$0xff]
        %v367 = vld [vmem:[%s349 + $0x20] sm:$0xff]
        %v368 = vld [vmem:[%s349 + $0x30] sm:$0xff]
        %v369 = vld [vmem:[%s349 + $0x40] sm:$0xff]
        %v370 = vld [vmem:[%s349 + $0x50] sm:$0xff]
        %v371 = vld [vmem:[%s349 + $0x60] sm:$0xff]
        %v372 = vld [vmem:[%s349 + $0x70] sm:$0xff]
        %v373 = vpack.c.bf16 %v366, %v365
        %v374 = vpack.c.bf16 %v368, %v367
        %v375 = vpack.c.bf16 %v370, %v369
        %v376 = vpack.c.bf16 %v372, %v371
        %v377 = vld [vmem:[%s1] sm:$0xf]
        %v378 = vld [vmem:[%s1 + $0x4] sm:$0x3]
        %v379 = vld [vmem:[%s349 + $0x1] sm:$0xff]
        %v380 = vld [vmem:[%s349 + $0x11] sm:$0xff]
        %v381 = vld [vmem:[%s349 + $0x21] sm:$0xff]
        %v382 = vld [vmem:[%s349 + $0x31] sm:$0xff]
        %v383 = vld [vmem:[%s349 + $0x41] sm:$0xff]
        %v384 = vld [vmem:[%s349 + $0x51] sm:$0xff]
        %v385 = vld [vmem:[%s349 + $0x61] sm:$0xff]
        %v386 = vld [vmem:[%s349 + $0x71] sm:$0xff]
        %v387 = vpack.c.bf16 %v380, %v379
        %v388 = vpack.c.bf16 %v382, %v381
        %v389 = vpack.c.bf16 %v384, %v383
        %v390 = vpack.c.bf16 %v386, %v385
        %s391 = scalar_lea.vmem %s1, 8
        %v392 = vld [vmem:[%s391] sm:$0xf]
        %v393 = vld [vmem:[%s391 + $0x4] sm:$0x3]
        %v396 = vunpack.c.l.b16 %v392
        %v397 = vunpack.c.l.b16 %v393
        %v398 = vpack.c.b16 %v397, %v396
        %vm399 = vcmask 97280
        %v401 = vsel %vm399, %v387, 0
        %v404 = vsel %vm399, %v388, 0
        %v407 = vsel %vm399, %v389, 0
        %v410 = vsel %vm399, %v390, 0
        %vm412 = vcmask 1045504
        %v414 = vsel %vm412, %v398, 0
        %416 = vmatprep.subr.bf16.mxu0 0
        %417 = vmatpush1.bf16.msra.mxu0 %v414
        %418 = vmatprep.subr.bf16.mxu0 0
        %419 = vmatpush1.bf16.msra.mxu0 0
        %420 = vmatprep.subr.bf16.mxu0 0
        %421 = vmatpush1.bf16.msra.mxu0 0
        %422 = vmatprep.subr.bf16.mxu0 0
        %423 = vmatpush1.bf16.msra.mxu0 0
        %424 = vmatprep.subr.bf16.mxu0 0
        %425 = vmatpush1.bf16.msra.mxu0 0
        %426 = vmatprep.subr.bf16.mxu0 0
        %427 = vmatpush1.bf16.msra.mxu0 0
        %428 = vmatprep.subr.bf16.mxu0 0
        %429 = vmatpush1.bf16.msra.mxu0 0
        %430 = vmatprep.subr.bf16.mxu0 0
        %431 = vmatpush1.bf16.msra.mxu0 0
        %432 = vmatprep.subr.bf16.mxu0 0
        %433 = vmatpush1.bf16.msra.mxu0 0
        %434 = vmatprep.subr.bf16.mxu0 0
        %435 = vmatpush1.bf16.msra.mxu0 0
        %436 = vmatprep.subr.bf16.mxu0 0
        %437 = vmatpush1.bf16.msra.mxu0 0
        %438 = vmatprep.subr.bf16.mxu0 0
        %439 = vmatpush1.bf16.msra.mxu0 0
        %440 = vmatprep.subr.bf16.mxu0 0
        %441 = vmatpush1.bf16.msra.mxu0 0
        %442 = vmatprep.subr.bf16.mxu0 0
        %443 = vmatpush1.bf16.msra.mxu0 0
        %444 = vmatprep.subr.bf16.mxu0 0
        %445 = vmatpush1.bf16.msra.mxu0 0
        %446 = vmatprep.subr.bf16.mxu0 0
        %447 = vmatpush1.bf16.msra.mxu0 0
        %448 = vmatprep.mubr.bf16.mxu0 0
        %449 = vmatmul.mubr.bf16.gmra.mrb[0].mxu0 %v401
        %v450 = vpop.f32.mrb[0].mxu0
        %v451 = vadd.f32 0.0, %v450
        %v452 = vpop.f32.mrb[0].mxu0
        %v453 = vpop.f32.mrb[0].mxu0
        %v454 = vadd.f32 0.0, %v453
        %v455 = vpop.f32.mrb[0].mxu0
        %456 = vmatprep.mubr.bf16.mxu0 0
        %457 = vmatmul.mubr.bf16.gmra.mrb[0].mxu0 %v404
        %v458 = vpop.f32.mrb[0].mxu0
        %v459 = vadd.f32 0.0, %v458
        %v460 = vpop.f32.mrb[0].mxu0
        %v461 = vpop.f32.mrb[0].mxu0
        %v462 = vadd.f32 0.0, %v461
        %v463 = vpop.f32.mrb[0].mxu0
        %464 = vmatprep.mubr.bf16.mxu0 0
        %465 = vmatmul.mubr.bf16.gmra.mrb[0].mxu0 %v407
        %v466 = vpop.f32.mrb[0].mxu0
        %v467 = vadd.f32 0.0, %v466
        %v468 = vpop.f32.mrb[0].mxu0
        %v469 = vpop.f32.mrb[0].mxu0
        %v470 = vadd.f32 0.0, %v469
        %v471 = vpop.f32.mrb[0].mxu0
        %472 = vmatprep.mubr.bf16.mxu0 0
        %473 = vmatmul.mubr.bf16.gmra.mrb[0].mxu0 %v410
        %v474 = vpop.f32.mrb[0].mxu0
        %v475 = vadd.f32 0.0, %v474
        %v476 = vpop.f32.mrb[0].mxu0
        %v477 = vpop.f32.mrb[0].mxu0
        %v478 = vadd.f32 0.0, %v477
        %v479 = vpop.f32.mrb[0].mxu0
        %480 = vdwg.mxu0
        %v483 = vunpack.c.l.b16 %v377
        %v484 = vunpack.c.l.b16 %v378
        %v485 = vpack.c.b16 %v484, %v483
        %v487 = vsel %vm399, %v373, 0
        %v490 = vsel %vm399, %v374, 0
        %v493 = vsel %vm399, %v375, 0
        %v496 = vsel %vm399, %v376, 0
        %v499 = vsel %vm412, %v485, 0
        %501 = vmatprep.subr.bf16.mxu0 0
        %502 = vmatpush1.bf16.msra.mxu0 %v499
        %503 = vmatprep.subr.bf16.mxu0 0
        %504 = vmatpush1.bf16.msra.mxu0 0
        %505 = vmatprep.subr.bf16.mxu0 0
        %506 = vmatpush1.bf16.msra.mxu0 0
        %507 = vmatprep.subr.bf16.mxu0 0
        %508 = vmatpush1.bf16.msra.mxu0 0
        %509 = vmatprep.subr.bf16.mxu0 0
        %510 = vmatpush1.bf16.msra.mxu0 0
        %511 = vmatprep.subr.bf16.mxu0 0
        %512 = vmatpush1.bf16.msra.mxu0 0
        %513 = vmatprep.subr.bf16.mxu0 0
        %514 = vmatpush1.bf16.msra.mxu0 0
        %515 = vmatprep.subr.bf16.mxu0 0
        %516 = vmatpush1.bf16.msra.mxu0 0
        %517 = vmatprep.subr.bf16.mxu0 0
        %518 = vmatpush1.bf16.msra.mxu0 0
        %519 = vmatprep.subr.bf16.mxu0 0
        %520 = vmatpush1.bf16.msra.mxu0 0
        %521 = vmatprep.subr.bf16.mxu0 0
        %522 = vmatpush1.bf16.msra.mxu0 0
        %523 = vmatprep.subr.bf16.mxu0 0
        %524 = vmatpush1.bf16.msra.mxu0 0
        %525 = vmatprep.subr.bf16.mxu0 0
        %526 = vmatpush1.bf16.msra.mxu0 0
        %527 = vmatprep.subr.bf16.mxu0 0
        %528 = vmatpush1.bf16.msra.mxu0 0
        %529 = vmatprep.subr.bf16.mxu0 0
        %530 = vmatpush1.bf16.msra.mxu0 0
        %531 = vmatprep.subr.bf16.mxu0 0
        %532 = vmatpush1.bf16.msra.mxu0 0
        %533 = vmatprep.mubr.bf16.mxu0 0
        %534 = vmatmul.mubr.bf16.gmra.mrb[0].mxu0 %v487
        %v535 = vpop.f32.mrb[0].mxu0
        %v536 = vadd.f32 %v451, %v535
        %v537 = vpop.f32.mrb[0].mxu0
        %v538 = vpop.f32.mrb[0].mxu0
        %v539 = vadd.f32 %v454, %v538
        %v540 = vpop.f32.mrb[0].mxu0
        %541 = vmatprep.mubr.bf16.mxu0 0
        %542 = vmatmul.mubr.bf16.gmra.mrb[0].mxu0 %v490
        %v543 = vpop.f32.mrb[0].mxu0
        %v544 = vadd.f32 %v459, %v543
        %v545 = vpop.f32.mrb[0].mxu0
        %v546 = vpop.f32.mrb[0].mxu0
        %v547 = vadd.f32 %v462, %v546
        %v548 = vpop.f32.mrb[0].mxu0
        %549 = vmatprep.mubr.bf16.mxu0 0
        %550 = vmatmul.mubr.bf16.gmra.mrb[0].mxu0 %v493
        %v551 = vpop.f32.mrb[0].mxu0
        %v552 = vadd.f32 %v467, %v551
        %v553 = vpop.f32.mrb[0].mxu0
        %v554 = vpop.f32.mrb[0].mxu0
        %v555 = vadd.f32 %v470, %v554
        %v556 = vpop.f32.mrb[0].mxu0
        %557 = vmatprep.mubr.bf16.mxu0 0
        %558 = vmatmul.mubr.bf16.gmra.mrb[0].mxu0 %v496
        %v559 = vpop.f32.mrb[0].mxu0
        %v560 = vadd.f32 %v475, %v559
        %v561 = vpop.f32.mrb[0].mxu0
        %v562 = vpop.f32.mrb[0].mxu0
        %v563 = vadd.f32 %v478, %v562
        %v564 = vpop.f32.mrb[0].mxu0
        %565 = vdwg.mxu0
        %v566 = vld [vmem:[%s2] sm:$0x1]
        %v568 = vlaneseq
        %v569 = vshrl.u32 %v568, 7
        %v570 = vsub.s32 0, %v569
        %v571 = vrot.slane %v566, %v570
        %v573 = vadd.f32 %v536, %v571
        %v574 = vadd.f32 %v539, %v571
        %v575 = vadd.f32 %v544, %v571
        %v576 = vadd.f32 %v547, %v571
        %v577 = vadd.f32 %v552, %v571
        %v578 = vadd.f32 %v555, %v571
        %v579 = vadd.f32 %v560, %v571
        %v580 = vadd.f32 %v563, %v571
        %vm581 = vcmp.ge.f32.partialorder %v573, 0.0
        %vm582 = vcmp.ge.f32.partialorder %v574, 0.0
        %vm583 = vcmp.ge.f32.partialorder %v575, 0.0
        %vm584 = vcmp.ge.f32.partialorder %v576, 0.0
        %vm585 = vcmp.ge.f32.partialorder %v577, 0.0
        %vm586 = vcmp.ge.f32.partialorder %v578, 0.0
        %vm587 = vcmp.ge.f32.partialorder %v579, 0.0
        %vm588 = vcmp.ge.f32.partialorder %v580, 0.0
        %v589 = vmul.f32 %v573, 0.1
        %v590 = vmul.f32 %v574, 0.1
        %v591 = vmul.f32 %v575, 0.1
        %v592 = vmul.f32 %v576, 0.1
        %v593 = vmul.f32 %v577, 0.1
        %v594 = vmul.f32 %v578, 0.1
        %v595 = vmul.f32 %v579, 0.1
        %v596 = vmul.f32 %v580, 0.1
        %v597 = vsel %vm581, %v573, %v589
        %v598 = vsel %vm582, %v574, %v590
        %v599 = vsel %vm583, %v575, %v591
        %v600 = vsel %vm584, %v576, %v592
        %v601 = vsel %vm585, %v577, %v593
        %v602 = vsel %vm586, %v578, %v594
        %v603 = vsel %vm587, %v579, %v595
        %v604 = vsel %vm588, %v580, %v596
        %v605 = vpack.c.bf16 %v597, %v597
        %v606 = vpack.c.bf16 %v598, %v598
        %v607 = vpack.c.bf16 %v599, %v599
        %v608 = vpack.c.bf16 %v600, %v600
        %v609 = vpack.c.bf16 %v601, %v601
        %v610 = vpack.c.bf16 %v602, %v602
        %v611 = vpack.c.bf16 %v603, %v603
        %v612 = vpack.c.bf16 %v604, %v604
        %vm613 = vcmask 60416
        %614 = vst.msk [vmem:[%s355] sm:$0xf] %vm613, %v605
        %615 = vst.msk [vmem:[%s355 + $0x4] sm:$0xf] %vm613, %v606
        %616 = vst.msk [vmem:[%s355 + $0x8] sm:$0xf] %vm613, %v607
        %617 = vst.msk [vmem:[%s355 + $0xc] sm:$0xf] %vm613, %v608
        %618 = vst.msk [vmem:[%s355 + $0x10] sm:$0xf] %vm613, %v609
        %619 = vst.msk [vmem:[%s355 + $0x14] sm:$0xf] %vm613, %v610
        %620 = vst.msk [vmem:[%s355 + $0x18] sm:$0xf] %vm613, %v611
        %621 = vst.msk [vmem:[%s355 + $0x1c] sm:$0xf] %vm613, %v612
        %vm622 = vcmask 58368
        %623 = vst.msk [vmem:[#allocation2] sm:$0x3] %vm622, 0.0
        %624 = vst.msk [vmem:[#allocation2 + $0x10] sm:$0x3] %vm622, 0.0
        %625 = vst.msk [vmem:[#allocation2 + $0x20] sm:$0x3] %vm622, 0.0
        %626 = vst.msk [vmem:[#allocation2 + $0x30] sm:$0x3] %vm622, 0.0
        %627 = vst.msk [vmem:[#allocation2 + $0x40] sm:$0x3] %vm622, 0.0
        %628 = vst.msk [vmem:[#allocation2 + $0x50] sm:$0x3] %vm622, 0.0
        %629 = vst.msk [vmem:[#allocation2 + $0x60] sm:$0x3] %vm622, 0.0
        %630 = vst.msk [vmem:[#allocation2 + $0x70] sm:$0x3] %vm622, 0.0
        %631 = vst.msk [vmem:[#allocation2 + $0xa] sm:$0x3] %vm622, 0.0
        %632 = vst.msk [vmem:[#allocation2 + $0x1a] sm:$0x3] %vm622, 0.0
        %633 = vst.msk [vmem:[#allocation2 + $0x2a] sm:$0x3] %vm622, 0.0
        %634 = vst.msk [vmem:[#allocation2 + $0x3a] sm:$0x3] %vm622, 0.0
        %635 = vst.msk [vmem:[#allocation2 + $0x4a] sm:$0x3] %vm622, 0.0
        %636 = vst.msk [vmem:[#allocation2 + $0x5a] sm:$0x3] %vm622, 0.0
        %637 = vst.msk [vmem:[#allocation2 + $0x6a] sm:$0x3] %vm622, 0.0
        %638 = vst.msk [vmem:[#allocation2 + $0x7a] sm:$0x3] %vm622, 0.0
        %vm639 = vcmask 64512
        %640 = vst.msk [vmem:[#allocation2 + $0x2] sm:$0xff] %vm639, %v597
        %641 = vst.msk [vmem:[#allocation2 + $0x12] sm:$0xff] %vm639, %v598
        %642 = vst.msk [vmem:[#allocation2 + $0x22] sm:$0xff] %vm639, %v599
        %643 = vst.msk [vmem:[#allocation2 + $0x32] sm:$0xff] %vm639, %v600
        %644 = vst.msk [vmem:[#allocation2 + $0x42] sm:$0xff] %vm639, %v601
        %645 = vst.msk [vmem:[#allocation2 + $0x52] sm:$0xff] %vm639, %v602
        %646 = vst.msk [vmem:[#allocation2 + $0x62] sm:$0xff] %vm639, %v603
        %647 = vst.msk [vmem:[#allocation2 + $0x72] sm:$0xff] %vm639, %v604
        %v648 = vld [vmem:[#allocation2] sm:$0xff]
        %v649 = vld [vmem:[#allocation2 + $0x10] sm:$0xff]
        %v650 = vld [vmem:[#allocation2 + $0x20] sm:$0xff]
        %v651 = vld [vmem:[#allocation2 + $0x30] sm:$0xff]
        %v652 = vld [vmem:[#allocation2 + $0x40] sm:$0xff]
        %v653 = vld [vmem:[#allocation2 + $0x50] sm:$0xff]
        %v654 = vld [vmem:[#allocation2 + $0x60] sm:$0xff]
        %v655 = vld [vmem:[#allocation2 + $0x70] sm:$0xff]
        %v656 = vpack.c.bf16 %v649, %v648
        %v657 = vpack.c.bf16 %v651, %v650
        %v658 = vpack.c.bf16 %v653, %v652
        %v659 = vpack.c.bf16 %v655, %v654
        %v660 = vld [vmem:[%s3] sm:$0xf]
        %v661 = vld [vmem:[#allocation2 + $0x1] sm:$0xff]
        %v662 = vld [vmem:[#allocation2 + $0x11] sm:$0xff]
        %v663 = vld [vmem:[#allocation2 + $0x21] sm:$0xff]
        %v664 = vld [vmem:[#allocation2 + $0x31] sm:$0xff]
        %v665 = vld [vmem:[#allocation2 + $0x41] sm:$0xff]
        %v666 = vld [vmem:[#allocation2 + $0x51] sm:$0xff]
        %v667 = vld [vmem:[#allocation2 + $0x61] sm:$0xff]
        %v668 = vld [vmem:[#allocation2 + $0x71] sm:$0xff]
        %v669 = vpack.c.bf16 %v662, %v661
        %v670 = vpack.c.bf16 %v664, %v663
        %v671 = vpack.c.bf16 %v666, %v665
        %v672 = vpack.c.bf16 %v668, %v667
        %s673 = scalar_lea.vmem %s3, 4
        %v674 = vld [vmem:[%s673] sm:$0xf]
        %v676 = vsel %vm639, %v669, 0
        %v679 = vsel %vm639, %v670, 0
        %v682 = vsel %vm639, %v671, 0
        %v685 = vsel %vm639, %v672, 0
        %vm687 = vcmask 1043456
        %v689 = vsel %vm687, %v674, 0
        %691 = vmatprep.subr.bf16.mxu0 0
        %692 = vmatpush1.bf16.msra.mxu0 %v689
        %693 = vmatprep.subr.bf16.mxu0 0
        %694 = vmatpush1.bf16.msra.mxu0 0
        %695 = vmatprep.subr.bf16.mxu0 0
        %696 = vmatpush1.bf16.msra.mxu0 0
        %697 = vmatprep.subr.bf16.mxu0 0
        %698 = vmatpush1.bf16.msra.mxu0 0
        %699 = vmatprep.subr.bf16.mxu0 0
        %700 = vmatpush1.bf16.msra.mxu0 0
        %701 = vmatprep.subr.bf16.mxu0 0
        %702 = vmatpush1.bf16.msra.mxu0 0
        %703 = vmatprep.subr.bf16.mxu0 0
        %704 = vmatpush1.bf16.msra.mxu0 0
        %705 = vmatprep.subr.bf16.mxu0 0
        %706 = vmatpush1.bf16.msra.mxu0 0
        %707 = vmatprep.subr.bf16.mxu0 0
        %708 = vmatpush1.bf16.msra.mxu0 0
        %709 = vmatprep.subr.bf16.mxu0 0
        %710 = vmatpush1.bf16.msra.mxu0 0
        %711 = vmatprep.subr.bf16.mxu0 0
        %712 = vmatpush1.bf16.msra.mxu0 0
        %713 = vmatprep.subr.bf16.mxu0 0
        %714 = vmatpush1.bf16.msra.mxu0 0
        %715 = vmatprep.subr.bf16.mxu0 0
        %716 = vmatpush1.bf16.msra.mxu0 0
        %717 = vmatprep.subr.bf16.mxu0 0
        %718 = vmatpush1.bf16.msra.mxu0 0
        %719 = vmatprep.subr.bf16.mxu0 0
        %720 = vmatpush1.bf16.msra.mxu0 0
        %721 = vmatprep.subr.bf16.mxu0 0
        %722 = vmatpush1.bf16.msra.mxu0 0
        %723 = vmatprep.mubr.bf16.mxu0 0
        %724 = vmatmul.mubr.bf16.gmra.mrb[0].mxu0 %v676
        %v725 = vpop.f32.mrb[0].mxu0
        %v726 = vadd.f32 0.0, %v725
        %v727 = vpop.f32.mrb[0].mxu0
        %v728 = vpop.f32.mrb[0].mxu0
        %v729 = vadd.f32 0.0, %v728
        %v730 = vpop.f32.mrb[0].mxu0
        %731 = vmatprep.mubr.bf16.mxu0 0
        %732 = vmatmul.mubr.bf16.gmra.mrb[0].mxu0 %v679
        %v733 = vpop.f32.mrb[0].mxu0
        %v734 = vadd.f32 0.0, %v733
        %v735 = vpop.f32.mrb[0].mxu0
        %v736 = vpop.f32.mrb[0].mxu0
        %v737 = vadd.f32 0.0, %v736
        %v738 = vpop.f32.mrb[0].mxu0
        %739 = vmatprep.mubr.bf16.mxu0 0
        %740 = vmatmul.mubr.bf16.gmra.mrb[0].mxu0 %v682
        %v741 = vpop.f32.mrb[0].mxu0
        %v742 = vadd.f32 0.0, %v741
        %v743 = vpop.f32.mrb[0].mxu0
        %v744 = vpop.f32.mrb[0].mxu0
        %v745 = vadd.f32 0.0, %v744
        %v746 = vpop.f32.mrb[0].mxu0
        %747 = vmatprep.mubr.bf16.mxu0 0
        %748 = vmatmul.mubr.bf16.gmra.mrb[0].mxu0 %v685
        %v749 = vpop.f32.mrb[0].mxu0
        %v750 = vadd.f32 0.0, %v749
        %v751 = vpop.f32.mrb[0].mxu0
        %v752 = vpop.f32.mrb[0].mxu0
        %v753 = vadd.f32 0.0, %v752
        %v754 = vpop.f32.mrb[0].mxu0
        %755 = vdwg.mxu0
        %v757 = vsel %vm639, %v656, 0
        %v760 = vsel %vm639, %v657, 0
        %v763 = vsel %vm639, %v658, 0
        %v766 = vsel %vm639, %v659, 0
        %v769 = vsel %vm687, %v660, 0
        %771 = vmatprep.subr.bf16.mxu0 0
        %772 = vmatpush1.bf16.msra.mxu0 %v769
        %773 = vmatprep.subr.bf16.mxu0 0
        %774 = vmatpush1.bf16.msra.mxu0 0
        %775 = vmatprep.subr.bf16.mxu0 0
        %776 = vmatpush1.bf16.msra.mxu0 0
        %777 = vmatprep.subr.bf16.mxu0 0
        %778 = vmatpush1.bf16.msra.mxu0 0
        %779 = vmatprep.subr.bf16.mxu0 0
        %780 = vmatpush1.bf16.msra.mxu0 0
        %781 = vmatprep.subr.bf16.mxu0 0
        %782 = vmatpush1.bf16.msra.mxu0 0
        %783 = vmatprep.subr.bf16.mxu0 0
        %784 = vmatpush1.bf16.msra.mxu0 0
        %785 = vmatprep.subr.bf16.mxu0 0
        %786 = vmatpush1.bf16.msra.mxu0 0
        %787 = vmatprep.subr.bf16.mxu0 0
        %788 = vmatpush1.bf16.msra.mxu0 0
        %789 = vmatprep.subr.bf16.mxu0 0
        %790 = vmatpush1.bf16.msra.mxu0 0
        %791 = vmatprep.subr.bf16.mxu0 0
        %792 = vmatpush1.bf16.msra.mxu0 0
        %793 = vmatprep.subr.bf16.mxu0 0
        %794 = vmatpush1.bf16.msra.mxu0 0
        %795 = vmatprep.subr.bf16.mxu0 0
        %796 = vmatpush1.bf16.msra.mxu0 0
        %797 = vmatprep.subr.bf16.mxu0 0
        %798 = vmatpush1.bf16.msra.mxu0 0
        %799 = vmatprep.subr.bf16.mxu0 0
        %800 = vmatpush1.bf16.msra.mxu0 0
        %801 = vmatprep.subr.bf16.mxu0 0
        %802 = vmatpush1.bf16.msra.mxu0 0
        %803 = vmatprep.mubr.bf16.mxu0 0
        %804 = vmatmul.mubr.bf16.gmra.mrb[0].mxu0 %v757
        %v805 = vpop.f32.mrb[0].mxu0
        %v806 = vadd.f32 %v726, %v805
        %v807 = vpop.f32.mrb[0].mxu0
        %v808 = vpop.f32.mrb[0].mxu0
        %v809 = vadd.f32 %v729, %v808
        %v810 = vpop.f32.mrb[0].mxu0
        %811 = vmatprep.mubr.bf16.mxu0 0
        %812 = vmatmul.mubr.bf16.gmra.mrb[0].mxu0 %v760
        %v813 = vpop.f32.mrb[0].mxu0
        %v814 = vadd.f32 %v734, %v813
        %v815 = vpop.f32.mrb[0].mxu0
        %v816 = vpop.f32.mrb[0].mxu0
        %v817 = vadd.f32 %v737, %v816
        %v818 = vpop.f32.mrb[0].mxu0
        %819 = vmatprep.mubr.bf16.mxu0 0
        %820 = vmatmul.mubr.bf16.gmra.mrb[0].mxu0 %v763
        %v821 = vpop.f32.mrb[0].mxu0
        %v822 = vadd.f32 %v742, %v821
        %v823 = vpop.f32.mrb[0].mxu0
        %v824 = vpop.f32.mrb[0].mxu0
        %v825 = vadd.f32 %v745, %v824
        %v826 = vpop.f32.mrb[0].mxu0
        %827 = vmatprep.mubr.bf16.mxu0 0
        %828 = vmatmul.mubr.bf16.gmra.mrb[0].mxu0 %v766
        %v829 = vpop.f32.mrb[0].mxu0
        %v830 = vadd.f32 %v750, %v829
        %v831 = vpop.f32.mrb[0].mxu0
        %v832 = vpop.f32.mrb[0].mxu0
        %v833 = vadd.f32 %v753, %v832
        %v834 = vpop.f32.mrb[0].mxu0
        %835 = vdwg.mxu0
        %v836 = vld [vmem:[#allocation2 + $0x2] sm:$0xff]
        %v837 = vld [vmem:[#allocation2 + $0x12] sm:$0xff]
        %v838 = vld [vmem:[#allocation2 + $0x22] sm:$0xff]
        %v839 = vld [vmem:[#allocation2 + $0x32] sm:$0xff]
        %v840 = vld [vmem:[#allocation2 + $0x42] sm:$0xff]
        %v841 = vld [vmem:[#allocation2 + $0x52] sm:$0xff]
        %v842 = vld [vmem:[#allocation2 + $0x62] sm:$0xff]
        %v843 = vld [vmem:[#allocation2 + $0x72] sm:$0xff]
        %v844 = vpack.c.bf16 %v837, %v836
        %v845 = vpack.c.bf16 %v839, %v838
        %v846 = vpack.c.bf16 %v841, %v840
        %v847 = vpack.c.bf16 %v843, %v842
        %s848 = scalar_lea.vmem %s3, 8
        %v849 = vld [vmem:[%s848] sm:$0xf]
        %v851 = vsel %vm639, %v844, 0
        %v854 = vsel %vm639, %v845, 0
        %v857 = vsel %vm639, %v846, 0
        %v860 = vsel %vm639, %v847, 0
        %v863 = vsel %vm687, %v849, 0
        %865 = vmatprep.subr.bf16.mxu0 0
        %866 = vmatpush1.bf16.msra.mxu0 %v863
        %867 = vmatprep.subr.bf16.mxu0 0
        %868 = vmatpush1.bf16.msra.mxu0 0
        %869 = vmatprep.subr.bf16.mxu0 0
        %870 = vmatpush1.bf16.msra.mxu0 0
        %871 = vmatprep.subr.bf16.mxu0 0
        %872 = vmatpush1.bf16.msra.mxu0 0
        %873 = vmatprep.subr.bf16.mxu0 0
        %874 = vmatpush1.bf16.msra.mxu0 0
        %875 = vmatprep.subr.bf16.mxu0 0
        %876 = vmatpush1.bf16.msra.mxu0 0
        %877 = vmatprep.subr.bf16.mxu0 0
        %878 = vmatpush1.bf16.msra.mxu0 0
        %879 = vmatprep.subr.bf16.mxu0 0
        %880 = vmatpush1.bf16.msra.mxu0 0
        %881 = vmatprep.subr.bf16.mxu0 0
        %882 = vmatpush1.bf16.msra.mxu0 0
        %883 = vmatprep.subr.bf16.mxu0 0
        %884 = vmatpush1.bf16.msra.mxu0 0
        %885 = vmatprep.subr.bf16.mxu0 0
        %886 = vmatpush1.bf16.msra.mxu0 0
        %887 = vmatprep.subr.bf16.mxu0 0
        %888 = vmatpush1.bf16.msra.mxu0 0
        %889 = vmatprep.subr.bf16.mxu0 0
        %890 = vmatpush1.bf16.msra.mxu0 0
        %891 = vmatprep.subr.bf16.mxu0 0
        %892 = vmatpush1.bf16.msra.mxu0 0
        %893 = vmatprep.subr.bf16.mxu0 0
        %894 = vmatpush1.bf16.msra.mxu0 0
        %895 = vmatprep.subr.bf16.mxu0 0
        %896 = vmatpush1.bf16.msra.mxu0 0
        %897 = vmatprep.mubr.bf16.mxu0 0
        %898 = vmatmul.mubr.bf16.gmra.mrb[0].mxu0 %v851
        %v899 = vpop.f32.mrb[0].mxu0
        %v900 = vadd.f32 0.0, %v899
        %v901 = vpop.f32.mrb[0].mxu0
        %v902 = vpop.f32.mrb[0].mxu0
        %v903 = vadd.f32 0.0, %v902
        %v904 = vpop.f32.mrb[0].mxu0
        %905 = vmatprep.mubr.bf16.mxu0 0
        %906 = vmatmul.mubr.bf16.gmra.mrb[0].mxu0 %v854
        %v907 = vpop.f32.mrb[0].mxu0
        %v908 = vadd.f32 0.0, %v907
        %v909 = vpop.f32.mrb[0].mxu0
        %v910 = vpop.f32.mrb[0].mxu0
        %v911 = vadd.f32 0.0, %v910
        %v912 = vpop.f32.mrb[0].mxu0
        %913 = vmatprep.mubr.bf16.mxu0 0
        %914 = vmatmul.mubr.bf16.gmra.mrb[0].mxu0 %v857
        %v915 = vpop.f32.mrb[0].mxu0
        %v916 = vadd.f32 0.0, %v915
        %v917 = vpop.f32.mrb[0].mxu0
        %v918 = vpop.f32.mrb[0].mxu0
        %v919 = vadd.f32 0.0, %v918
        %v920 = vpop.f32.mrb[0].mxu0
        %921 = vmatprep.mubr.bf16.mxu0 0
        %922 = vmatmul.mubr.bf16.gmra.mrb[0].mxu0 %v860
        %v923 = vpop.f32.mrb[0].mxu0
        %v924 = vadd.f32 0.0, %v923
        %v925 = vpop.f32.mrb[0].mxu0
        %v926 = vpop.f32.mrb[0].mxu0
        %v927 = vadd.f32 0.0, %v926
        %v928 = vpop.f32.mrb[0].mxu0
        %929 = vdwg.mxu0
        %v930 = vadd.f32 %v806, %v900
        %v931 = vadd.f32 %v809, %v903
        %v932 = vadd.f32 %v814, %v908
        %v933 = vadd.f32 %v817, %v911
        %v934 = vadd.f32 %v822, %v916
        %v935 = vadd.f32 %v825, %v919
        %v936 = vadd.f32 %v830, %v924
        %v937 = vadd.f32 %v833, %v927
        %v938 = vld [vmem:[#allocation2 + $0x3] sm:$0xff]
        %v939 = vld [vmem:[#allocation2 + $0x13] sm:$0xff]
        %v940 = vld [vmem:[#allocation2 + $0x23] sm:$0xff]
        %v941 = vld [vmem:[#allocation2 + $0x33] sm:$0xff]
        %v942 = vld [vmem:[#allocation2 + $0x43] sm:$0xff]
        %v943 = vld [vmem:[#allocation2 + $0x53] sm:$0xff]
        %v944 = vld [vmem:[#allocation2 + $0x63] sm:$0xff]
        %v945 = vld [vmem:[#allocation2 + $0x73] sm:$0xff]
        %v946 = vpack.c.bf16 %v939, %v938
        %v947 = vpack.c.bf16 %v941, %v940
        %v948 = vpack.c.bf16 %v943, %v942
        %v949 = vpack.c.bf16 %v945, %v944
        %s950 = scalar_lea.vmem %s3, 12
        %v951 = vld [vmem:[%s950] sm:$0xf]
        %v953 = vsel %vm639, %v946, 0
        %v956 = vsel %vm639, %v947, 0
        %v959 = vsel %vm639, %v948, 0
        %v962 = vsel %vm639, %v949, 0
        %v965 = vsel %vm687, %v951, 0
        %967 = vmatprep.subr.bf16.mxu0 0
        %968 = vmatpush1.bf16.msra.mxu0 %v965
        %969 = vmatprep.subr.bf16.mxu0 0
        %970 = vmatpush1.bf16.msra.mxu0 0
        %971 = vmatprep.subr.bf16.mxu0 0
        %972 = vmatpush1.bf16.msra.mxu0 0
        %973 = vmatprep.subr.bf16.mxu0 0
        %974 = vmatpush1.bf16.msra.mxu0 0
        %975 = vmatprep.subr.bf16.mxu0 0
        %976 = vmatpush1.bf16.msra.mxu0 0
        %977 = vmatprep.subr.bf16.mxu0 0
        %978 = vmatpush1.bf16.msra.mxu0 0
        %979 = vmatprep.subr.bf16.mxu0 0
        %980 = vmatpush1.bf16.msra.mxu0 0
        %981 = vmatprep.subr.bf16.mxu0 0
        %982 = vmatpush1.bf16.msra.mxu0 0
        %983 = vmatprep.subr.bf16.mxu0 0
        %984 = vmatpush1.bf16.msra.mxu0 0
        %985 = vmatprep.subr.bf16.mxu0 0
        %986 = vmatpush1.bf16.msra.mxu0 0
        %987 = vmatprep.subr.bf16.mxu0 0
        %988 = vmatpush1.bf16.msra.mxu0 0
        %989 = vmatprep.subr.bf16.mxu0 0
        %990 = vmatpush1.bf16.msra.mxu0 0
        %991 = vmatprep.subr.bf16.mxu0 0
        %992 = vmatpush1.bf16.msra.mxu0 0
        %993 = vmatprep.subr.bf16.mxu0 0
        %994 = vmatpush1.bf16.msra.mxu0 0
        %995 = vmatprep.subr.bf16.mxu0 0
        %996 = vmatpush1.bf16.msra.mxu0 0
        %997 = vmatprep.subr.bf16.mxu0 0
        %998 = vmatpush1.bf16.msra.mxu0 0
        %999 = vmatprep.mubr.bf16.mxu0 0
        %1000 = vmatmul.mubr.bf16.gmra.mrb[0].mxu0 %v953
        %v1001 = vpop.f32.mrb[0].mxu0
        %v1002 = vadd.f32 0.0, %v1001
        %v1003 = vpop.f32.mrb[0].mxu0
        %v1004 = vpop.f32.mrb[0].mxu0
        %v1005 = vadd.f32 0.0, %v1004
        %v1006 = vpop.f32.mrb[0].mxu0
        %1007 = vmatprep.mubr.bf16.mxu0 0
        %1008 = vmatmul.mubr.bf16.gmra.mrb[0].mxu0 %v956
        %v1009 = vpop.f32.mrb[0].mxu0
        %v1010 = vadd.f32 0.0, %v1009
        %v1011 = vpop.f32.mrb[0].mxu0
        %v1012 = vpop.f32.mrb[0].mxu0
        %v1013 = vadd.f32 0.0, %v1012
        %v1014 = vpop.f32.mrb[0].mxu0
        %1015 = vmatprep.mubr.bf16.mxu0 0
        %1016 = vmatmul.mubr.bf16.gmra.mrb[0].mxu0 %v959
        %v1017 = vpop.f32.mrb[0].mxu0
        %v1018 = vadd.f32 0.0, %v1017
        %v1019 = vpop.f32.mrb[0].mxu0
        %v1020 = vpop.f32.mrb[0].mxu0
        %v1021 = vadd.f32 0.0, %v1020
        %v1022 = vpop.f32.mrb[0].mxu0
        %1023 = vmatprep.mubr.bf16.mxu0 0
        %1024 = vmatmul.mubr.bf16.gmra.mrb[0].mxu0 %v962
        %v1025 = vpop.f32.mrb[0].mxu0
        %v1026 = vadd.f32 0.0, %v1025
        %v1027 = vpop.f32.mrb[0].mxu0
        %v1028 = vpop.f32.mrb[0].mxu0
        %v1029 = vadd.f32 0.0, %v1028
        %v1030 = vpop.f32.mrb[0].mxu0
        %1031 = vdwg.mxu0
        %v1032 = vadd.f32 %v930, %v1002
        %v1033 = vadd.f32 %v931, %v1005
        %v1034 = vadd.f32 %v932, %v1010
        %v1035 = vadd.f32 %v933, %v1013
        %v1036 = vadd.f32 %v934, %v1018
        %v1037 = vadd.f32 %v935, %v1021
        %v1038 = vadd.f32 %v936, %v1026
        %v1039 = vadd.f32 %v937, %v1029
        %v1040 = vld [vmem:[#allocation2 + $0x4] sm:$0xff]
        %v1041 = vld [vmem:[#allocation2 + $0x14] sm:$0xff]
        %v1042 = vld [vmem:[#allocation2 + $0x24] sm:$0xff]
        %v1043 = vld [vmem:[#allocation2 + $0x34] sm:$0xff]
        %v1044 = vld [vmem:[#allocation2 + $0x44] sm:$0xff]
        %v1045 = vld [vmem:[#allocation2 + $0x54] sm:$0xff]
        %v1046 = vld [vmem:[#allocation2 + $0x64] sm:$0xff]
        %v1047 = vld [vmem:[#allocation2 + $0x74] sm:$0xff]
        %v1048 = vpack.c.bf16 %v1041, %v1040
        %v1049 = vpack.c.bf16 %v1043, %v1042
        %v1050 = vpack.c.bf16 %v1045, %v1044
        %v1051 = vpack.c.bf16 %v1047, %v1046
        %s1052 = scalar_lea.vmem %s3, 16
        %v1053 = vld [vmem:[%s1052] sm:$0xf]
        %v1055 = vsel %vm639, %v1048, 0
        %v1058 = vsel %vm639, %v1049, 0
        %v1061 = vsel %vm639, %v1050, 0
        %v1064 = vsel %vm639, %v1051, 0
        %v1067 = vsel %vm687, %v1053, 0
        %1069 = vmatprep.subr.bf16.mxu0 0
        %1070 = vmatpush1.bf16.msra.mxu0 %v1067
        %1071 = vmatprep.subr.bf16.mxu0 0
        %1072 = vmatpush1.bf16.msra.mxu0 0
        %1073 = vmatprep.subr.bf16.mxu0 0
        %1074 = vmatpush1.bf16.msra.mxu0 0
        %1075 = vmatprep.subr.bf16.mxu0 0
        %1076 = vmatpush1.bf16.msra.mxu0 0
        %1077 = vmatprep.subr.bf16.mxu0 0
        %1078 = vmatpush1.bf16.msra.mxu0 0
        %1079 = vmatprep.subr.bf16.mxu0 0
        %1080 = vmatpush1.bf16.msra.mxu0 0
        %1081 = vmatprep.subr.bf16.mxu0 0
        %1082 = vmatpush1.bf16.msra.mxu0 0
        %1083 = vmatprep.subr.bf16.mxu0 0
        %1084 = vmatpush1.bf16.msra.mxu0 0
        %1085 = vmatprep.subr.bf16.mxu0 0
        %1086 = vmatpush1.bf16.msra.mxu0 0
        %1087 = vmatprep.subr.bf16.mxu0 0
        %1088 = vmatpush1.bf16.msra.mxu0 0
        %1089 = vmatprep.subr.bf16.mxu0 0
        %1090 = vmatpush1.bf16.msra.mxu0 0
        %1091 = vmatprep.subr.bf16.mxu0 0
        %1092 = vmatpush1.bf16.msra.mxu0 0
        %1093 = vmatprep.subr.bf16.mxu0 0
        %1094 = vmatpush1.bf16.msra.mxu0 0
        %1095 = vmatprep.subr.bf16.mxu0 0
        %1096 = vmatpush1.bf16.msra.mxu0 0
        %1097 = vmatprep.subr.bf16.mxu0 0
        %1098 = vmatpush1.bf16.msra.mxu0 0
        %1099 = vmatprep.subr.bf16.mxu0 0
        %1100 = vmatpush1.bf16.msra.mxu0 0
        %1101 = vmatprep.mubr.bf16.mxu0 0
        %1102 = vmatmul.mubr.bf16.gmra.mrb[0].mxu0 %v1055
        %v1103 = vpop.f32.mrb[0].mxu0
        %v1104 = vadd.f32 0.0, %v1103
        %v1105 = vpop.f32.mrb[0].mxu0
        %v1106 = vpop.f32.mrb[0].mxu0
        %v1107 = vadd.f32 0.0, %v1106
        %v1108 = vpop.f32.mrb[0].mxu0
        %1109 = vmatprep.mubr.bf16.mxu0 0
        %1110 = vmatmul.mubr.bf16.gmra.mrb[0].mxu0 %v1058
        %v1111 = vpop.f32.mrb[0].mxu0
        %v1112 = vadd.f32 0.0, %v1111
        %v1113 = vpop.f32.mrb[0].mxu0
        %v1114 = vpop.f32.mrb[0].mxu0
        %v1115 = vadd.f32 0.0, %v1114
        %v1116 = vpop.f32.mrb[0].mxu0
        %1117 = vmatprep.mubr.bf16.mxu0 0
        %1118 = vmatmul.mubr.bf16.gmra.mrb[0].mxu0 %v1061
        %v1119 = vpop.f32.mrb[0].mxu0
        %v1120 = vadd.f32 0.0, %v1119
        %v1121 = vpop.f32.mrb[0].mxu0
        %v1122 = vpop.f32.mrb[0].mxu0
        %v1123 = vadd.f32 0.0, %v1122
        %v1124 = vpop.f32.mrb[0].mxu0
        %1125 = vmatprep.mubr.bf16.mxu0 0
        %1126 = vmatmul.mubr.bf16.gmra.mrb[0].mxu0 %v1064
        %v1127 = vpop.f32.mrb[0].mxu0
        %v1128 = vadd.f32 0.0, %v1127
        %v1129 = vpop.f32.mrb[0].mxu0
        %v1130 = vpop.f32.mrb[0].mxu0
        %v1131 = vadd.f32 0.0, %v1130
        %v1132 = vpop.f32.mrb[0].mxu0
        %1133 = vdwg.mxu0
        %v1134 = vadd.f32 %v1032, %v1104
        %v1135 = vadd.f32 %v1033, %v1107
        %v1136 = vadd.f32 %v1034, %v1112
        %v1137 = vadd.f32 %v1035, %v1115
        %v1138 = vadd.f32 %v1036, %v1120
        %v1139 = vadd.f32 %v1037, %v1123
        %v1140 = vadd.f32 %v1038, %v1128
        %v1141 = vadd.f32 %v1039, %v1131
        %v1142 = vld [vmem:[%s4] sm:$0x1]
        %v1144 = vlaneseq
        %v1145 = vshrl.u32 %v1144, 7
        %v1146 = vsub.s32 0, %v1145
        %v1147 = vrot.slane %v1142, %v1146
        %v1149 = vadd.f32 %v1134, %v1147
        %v1150 = vadd.f32 %v1135, %v1147
        %v1151 = vadd.f32 %v1136, %v1147
        %v1152 = vadd.f32 %v1137, %v1147
        %v1153 = vadd.f32 %v1138, %v1147
        %v1154 = vadd.f32 %v1139, %v1147
        %v1155 = vadd.f32 %v1140, %v1147
        %v1156 = vadd.f32 %v1141, %v1147
        %vm1157 = vcmp.ge.f32.partialorder %v1149, 0.0
        %vm1158 = vcmp.ge.f32.partialorder %v1150, 0.0
        %vm1159 = vcmp.ge.f32.partialorder %v1151, 0.0
        %vm1160 = vcmp.ge.f32.partialorder %v1152, 0.0
        %vm1161 = vcmp.ge.f32.partialorder %v1153, 0.0
        %vm1162 = vcmp.ge.f32.partialorder %v1154, 0.0
        %vm1163 = vcmp.ge.f32.partialorder %v1155, 0.0
        %vm1164 = vcmp.ge.f32.partialorder %v1156, 0.0
        %v1165 = vmul.f32 %v1149, 0.1
        %v1166 = vmul.f32 %v1150, 0.1
        %v1167 = vmul.f32 %v1151, 0.1
        %v1168 = vmul.f32 %v1152, 0.1
        %v1169 = vmul.f32 %v1153, 0.1
        %v1170 = vmul.f32 %v1154, 0.1
        %v1171 = vmul.f32 %v1155, 0.1
        %v1172 = vmul.f32 %v1156, 0.1
        %v1173 = vsel %vm1157, %v1149, %v1165
        %v1174 = vsel %vm1158, %v1150, %v1166
        %v1175 = vsel %vm1159, %v1151, %v1167
        %v1176 = vsel %vm1160, %v1152, %v1168
        %v1177 = vsel %vm1161, %v1153, %v1169
        %v1178 = vsel %vm1162, %v1154, %v1170
        %v1179 = vsel %vm1163, %v1155, %v1171
        %v1180 = vsel %vm1164, %v1156, %v1172
        %v1181 = vpack.c.bf16 %v1173, %v1173
        %v1182 = vpack.c.bf16 %v1174, %v1174
        %v1183 = vpack.c.bf16 %v1175, %v1175
        %v1184 = vpack.c.bf16 %v1176, %v1176
        %v1185 = vpack.c.bf16 %v1177, %v1177
        %v1186 = vpack.c.bf16 %v1178, %v1178
        %v1187 = vpack.c.bf16 %v1179, %v1179
        %v1188 = vpack.c.bf16 %v1180, %v1180
        %vm1189 = vcmask 125952
        %1190 = vst.msk [vmem:[%s336] sm:$0xf] %vm1189, %v1181
        %1191 = vst.msk [vmem:[%s336 + $0x4] sm:$0xf] %vm1189, %v1182
        %1192 = vst.msk [vmem:[%s336 + $0x8] sm:$0xf] %vm1189, %v1183
        %1193 = vst.msk [vmem:[%s336 + $0xc] sm:$0xf] %vm1189, %v1184
        %1194 = vst.msk [vmem:[%s336 + $0x10] sm:$0xf] %vm1189, %v1185
        %1195 = vst.msk [vmem:[%s336 + $0x14] sm:$0xf] %vm1189, %v1186
        %1196 = vst.msk [vmem:[%s336 + $0x18] sm:$0xf] %vm1189, %v1187
        %1197 = vst.msk [vmem:[%s336 + $0x1c] sm:$0xf] %vm1189, %v1188
        %vm1198 = vcmask 122880
        %1199 = vst.msk [vmem:[#allocation3] sm:$0x1] %vm1198, 0.0
        %1200 = vst.msk [vmem:[#allocation3 + $0x10] sm:$0x1] %vm1198, 0.0
        %1201 = vst.msk [vmem:[#allocation3 + $0x20] sm:$0x1] %vm1198, 0.0
        %1202 = vst.msk [vmem:[#allocation3 + $0x30] sm:$0x1] %vm1198, 0.0
        %1203 = vst.msk [vmem:[#allocation3 + $0x40] sm:$0x1] %vm1198, 0.0
        %1204 = vst.msk [vmem:[#allocation3 + $0x50] sm:$0x1] %vm1198, 0.0
        %1205 = vst.msk [vmem:[#allocation3 + $0x60] sm:$0x1] %vm1198, 0.0
        %1206 = vst.msk [vmem:[#allocation3 + $0x70] sm:$0x1] %vm1198, 0.0
        %1207 = vst.msk [vmem:[#allocation3 + $0x9] sm:$0x1] %vm1198, 0.0
        %1208 = vst.msk [vmem:[#allocation3 + $0x19] sm:$0x1] %vm1198, 0.0
        %1209 = vst.msk [vmem:[#allocation3 + $0x29] sm:$0x1] %vm1198, 0.0
        %1210 = vst.msk [vmem:[#allocation3 + $0x39] sm:$0x1] %vm1198, 0.0
        %1211 = vst.msk [vmem:[#allocation3 + $0x49] sm:$0x1] %vm1198, 0.0
        %1212 = vst.msk [vmem:[#allocation3 + $0x59] sm:$0x1] %vm1198, 0.0
        %1213 = vst.msk [vmem:[#allocation3 + $0x69] sm:$0x1] %vm1198, 0.0
        %1214 = vst.msk [vmem:[#allocation3 + $0x79] sm:$0x1] %vm1198, 0.0
        %vm1215 = vcmask 130048
        %1216 = vst.msk [vmem:[#allocation3 + $0x1] sm:$0xff] %vm1215, %v1173
        %1217 = vst.msk [vmem:[#allocation3 + $0x11] sm:$0xff] %vm1215, %v1174
        %1218 = vst.msk [vmem:[#allocation3 + $0x21] sm:$0xff] %vm1215, %v1175
        %1219 = vst.msk [vmem:[#allocation3 + $0x31] sm:$0xff] %vm1215, %v1176
        %1220 = vst.msk [vmem:[#allocation3 + $0x41] sm:$0xff] %vm1215, %v1177
        %1221 = vst.msk [vmem:[#allocation3 + $0x51] sm:$0xff] %vm1215, %v1178
        %1222 = vst.msk [vmem:[#allocation3 + $0x61] sm:$0xff] %vm1215, %v1179
        %1223 = vst.msk [vmem:[#allocation3 + $0x71] sm:$0xff] %vm1215, %v1180
        %v1224 = vld [vmem:[#allocation3] sm:$0xff]
        %v1225 = vld [vmem:[#allocation3 + $0x10] sm:$0xff]
        %v1226 = vld [vmem:[#allocation3 + $0x20] sm:$0xff]
        %v1227 = vld [vmem:[#allocation3 + $0x30] sm:$0xff]
        %v1228 = vld [vmem:[#allocation3 + $0x40] sm:$0xff]
        %v1229 = vld [vmem:[#allocation3 + $0x50] sm:$0xff]
        %v1230 = vld [vmem:[#allocation3 + $0x60] sm:$0xff]
        %v1231 = vld [vmem:[#allocation3 + $0x70] sm:$0xff]
        %v1232 = vpack.c.bf16 %v1225, %v1224
        %v1233 = vpack.c.bf16 %v1227, %v1226
        %v1234 = vpack.c.bf16 %v1229, %v1228
        %v1235 = vpack.c.bf16 %v1231, %v1230
        %v1236 = vld [vmem:[%s5] sm:$0xf]
        %v1237 = vld [vmem:[%s5 + $0x4] sm:$0xf]
        %v1238 = vld [vmem:[#allocation3 + $0x1] sm:$0xff]
        %v1239 = vld [vmem:[#allocation3 + $0x11] sm:$0xff]
        %v1240 = vld [vmem:[#allocation3 + $0x21] sm:$0xff]
        %v1241 = vld [vmem:[#allocation3 + $0x31] sm:$0xff]
        %v1242 = vld [vmem:[#allocation3 + $0x41] sm:$0xff]
        %v1243 = vld [vmem:[#allocation3 + $0x51] sm:$0xff]
        %v1244 = vld [vmem:[#allocation3 + $0x61] sm:$0xff]
        %v1245 = vld [vmem:[#allocation3 + $0x71] sm:$0xff]
        %v1246 = vpack.c.bf16 %v1239, %v1238
        %v1247 = vpack.c.bf16 %v1241, %v1240
        %v1248 = vpack.c.bf16 %v1243, %v1242
        %v1249 = vpack.c.bf16 %v1245, %v1244
        %s1250 = scalar_lea.vmem %s5, 8
        %v1251 = vld [vmem:[%s1250] sm:$0xf]
        %v1252 = vld [vmem:[%s1250 + $0x4] sm:$0xf]
        %v1255 = vunpack.c.l.b16 %v1251
        %v1256 = vunpack.c.l.b16 %v1252
        %v1257 = vpack.c.b16 %v1256, %v1255
        %v1260 = vsel %vm1215, %v1246, 0
        %v1263 = vsel %vm1215, %v1247, 0
        %v1266 = vsel %vm1215, %v1248, 0
        %v1269 = vsel %vm1215, %v1249, 0
        %1271 = vmatprep.subr.bf16.mxu0 0
        %1272 = vmatpush1.bf16.msra.mxu0 %v1257
        %1273 = vmatprep.subr.bf16.mxu0 0
        %1274 = vmatpush1.bf16.msra.mxu0 0
        %1275 = vmatprep.subr.bf16.mxu0 0
        %1276 = vmatpush1.bf16.msra.mxu0 0
        %1277 = vmatprep.subr.bf16.mxu0 0
        %1278 = vmatpush1.bf16.msra.mxu0 0
        %1279 = vmatprep.subr.bf16.mxu0 0
        %1280 = vmatpush1.bf16.msra.mxu0 0
        %1281 = vmatprep.subr.bf16.mxu0 0
        %1282 = vmatpush1.bf16.msra.mxu0 0
        %1283 = vmatprep.subr.bf16.mxu0 0
        %1284 = vmatpush1.bf16.msra.mxu0 0
        %1285 = vmatprep.subr.bf16.mxu0 0
        %1286 = vmatpush1.bf16.msra.mxu0 0
        %1287 = vmatprep.subr.bf16.mxu0 0
        %1288 = vmatpush1.bf16.msra.mxu0 0
        %1289 = vmatprep.subr.bf16.mxu0 0
        %1290 = vmatpush1.bf16.msra.mxu0 0
        %1291 = vmatprep.subr.bf16.mxu0 0
        %1292 = vmatpush1.bf16.msra.mxu0 0
        %1293 = vmatprep.subr.bf16.mxu0 0
        %1294 = vmatpush1.bf16.msra.mxu0 0
        %1295 = vmatprep.subr.bf16.mxu0 0
        %1296 = vmatpush1.bf16.msra.mxu0 0
        %1297 = vmatprep.subr.bf16.mxu0 0
        %1298 = vmatpush1.bf16.msra.mxu0 0
        %1299 = vmatprep.subr.bf16.mxu0 0
        %1300 = vmatpush1.bf16.msra.mxu0 0
        %1301 = vmatprep.subr.bf16.mxu0 0
        %1302 = vmatpush1.bf16.msra.mxu0 0
        %1303 = vmatprep.mubr.bf16.mxu0 0
        %1304 = vmatmul.mubr.bf16.gmra.mrb[0].mxu0 %v1260
        %v1305 = vpop.f32.mrb[0].mxu0
        %v1306 = vadd.f32 0.0, %v1305
        %v1307 = vpop.f32.mrb[0].mxu0
        %v1308 = vpop.f32.mrb[0].mxu0
        %v1309 = vadd.f32 0.0, %v1308
        %v1310 = vpop.f32.mrb[0].mxu0
        %1311 = vmatprep.mubr.bf16.mxu0 0
        %1312 = vmatmul.mubr.bf16.gmra.mrb[0].mxu0 %v1263
        %v1313 = vpop.f32.mrb[0].mxu0
        %v1314 = vadd.f32 0.0, %v1313
        %v1315 = vpop.f32.mrb[0].mxu0
        %v1316 = vpop.f32.mrb[0].mxu0
        %v1317 = vadd.f32 0.0, %v1316
        %v1318 = vpop.f32.mrb[0].mxu0
        %1319 = vmatprep.mubr.bf16.mxu0 0
        %1320 = vmatmul.mubr.bf16.gmra.mrb[0].mxu0 %v1266
        %v1321 = vpop.f32.mrb[0].mxu0
        %v1322 = vadd.f32 0.0, %v1321
        %v1323 = vpop.f32.mrb[0].mxu0
        %v1324 = vpop.f32.mrb[0].mxu0
        %v1325 = vadd.f32 0.0, %v1324
        %v1326 = vpop.f32.mrb[0].mxu0
        %1327 = vmatprep.mubr.bf16.mxu0 0
        %1328 = vmatmul.mubr.bf16.gmra.mrb[0].mxu0 %v1269
        %v1329 = vpop.f32.mrb[0].mxu0
        %v1330 = vadd.f32 0.0, %v1329
        %v1331 = vpop.f32.mrb[0].mxu0
        %v1332 = vpop.f32.mrb[0].mxu0
        %v1333 = vadd.f32 0.0, %v1332
        %v1334 = vpop.f32.mrb[0].mxu0
        %1335 = vdwg.mxu0
        %v1338 = vunpack.c.l.b16 %v1236
        %v1339 = vunpack.c.l.b16 %v1237
        %v1340 = vpack.c.b16 %v1339, %v1338
        %v1343 = vsel %vm1215, %v1232, 0
        %v1346 = vsel %vm1215, %v1233, 0
        %v1349 = vsel %vm1215, %v1234, 0
        %v1352 = vsel %vm1215, %v1235, 0
        %1354 = vmatprep.subr.bf16.mxu0 0
        %1355 = vmatpush1.bf16.msra.mxu0 %v1340
        %1356 = vmatprep.subr.bf16.mxu0 0
        %1357 = vmatpush1.bf16.msra.mxu0 0
        %1358 = vmatprep.subr.bf16.mxu0 0
        %1359 = vmatpush1.bf16.msra.mxu0 0
        %1360 = vmatprep.subr.bf16.mxu0 0
        %1361 = vmatpush1.bf16.msra.mxu0 0
        %1362 = vmatprep.subr.bf16.mxu0 0
        %1363 = vmatpush1.bf16.msra.mxu0 0
        %1364 = vmatprep.subr.bf16.mxu0 0
        %1365 = vmatpush1.bf16.msra.mxu0 0
        %1366 = vmatprep.subr.bf16.mxu0 0
        %1367 = vmatpush1.bf16.msra.mxu0 0
        %1368 = vmatprep.subr.bf16.mxu0 0
        %1369 = vmatpush1.bf16.msra.mxu0 0
        %1370 = vmatprep.subr.bf16.mxu0 0
        %1371 = vmatpush1.bf16.msra.mxu0 0
        %1372 = vmatprep.subr.bf16.mxu0 0
        %1373 = vmatpush1.bf16.msra.mxu0 0
        %1374 = vmatprep.subr.bf16.mxu0 0
        %1375 = vmatpush1.bf16.msra.mxu0 0
        %1376 = vmatprep.subr.bf16.mxu0 0
        %1377 = vmatpush1.bf16.msra.mxu0 0
        %1378 = vmatprep.subr.bf16.mxu0 0
        %1379 = vmatpush1.bf16.msra.mxu0 0
        %1380 = vmatprep.subr.bf16.mxu0 0
        %1381 = vmatpush1.bf16.msra.mxu0 0
        %1382 = vmatprep.subr.bf16.mxu0 0
        %1383 = vmatpush1.bf16.msra.mxu0 0
        %1384 = vmatprep.subr.bf16.mxu0 0
        %1385 = vmatpush1.bf16.msra.mxu0 0
        %1386 = vmatprep.mubr.bf16.mxu0 0
        %1387 = vmatmul.mubr.bf16.gmra.mrb[0].mxu0 %v1343
        %v1388 = vpop.f32.mrb[0].mxu0
        %v1389 = vadd.f32 %v1306, %v1388
        %v1390 = vpop.f32.mrb[0].mxu0
        %v1391 = vpop.f32.mrb[0].mxu0
        %v1392 = vadd.f32 %v1309, %v1391
        %v1393 = vpop.f32.mrb[0].mxu0
        %1394 = vmatprep.mubr.bf16.mxu0 0
        %1395 = vmatmul.mubr.bf16.gmra.mrb[0].mxu0 %v1346
        %v1396 = vpop.f32.mrb[0].mxu0
        %v1397 = vadd.f32 %v1314, %v1396
        %v1398 = vpop.f32.mrb[0].mxu0
        %v1399 = vpop.f32.mrb[0].mxu0
        %v1400 = vadd.f32 %v1317, %v1399
        %v1401 = vpop.f32.mrb[0].mxu0
        %1402 = vmatprep.mubr.bf16.mxu0 0
        %1403 = vmatmul.mubr.bf16.gmra.mrb[0].mxu0 %v1349
        %v1404 = vpop.f32.mrb[0].mxu0
        %v1405 = vadd.f32 %v1322, %v1404
        %v1406 = vpop.f32.mrb[0].mxu0
        %v1407 = vpop.f32.mrb[0].mxu0
        %v1408 = vadd.f32 %v1325, %v1407
        %v1409 = vpop.f32.mrb[0].mxu0
        %1410 = vmatprep.mubr.bf16.mxu0 0
        %1411 = vmatmul.mubr.bf16.gmra.mrb[0].mxu0 %v1352
        %v1412 = vpop.f32.mrb[0].mxu0
        %v1413 = vadd.f32 %v1330, %v1412
        %v1414 = vpop.f32.mrb[0].mxu0
        %v1415 = vpop.f32.mrb[0].mxu0
        %v1416 = vadd.f32 %v1333, %v1415
        %v1417 = vpop.f32.mrb[0].mxu0
        %1418 = vdwg.mxu0
        %v1419 = vld [vmem:[#allocation3 + $0x2] sm:$0xff]
        %v1420 = vld [vmem:[#allocation3 + $0x12] sm:$0xff]
        %v1421 = vld [vmem:[#allocation3 + $0x22] sm:$0xff]
        %v1422 = vld [vmem:[#allocation3 + $0x32] sm:$0xff]
        %v1423 = vld [vmem:[#allocation3 + $0x42] sm:$0xff]
        %v1424 = vld [vmem:[#allocation3 + $0x52] sm:$0xff]
        %v1425 = vld [vmem:[#allocation3 + $0x62] sm:$0xff]
        %v1426 = vld [vmem:[#allocation3 + $0x72] sm:$0xff]
        %v1427 = vpack.c.bf16 %v1420, %v1419
        %v1428 = vpack.c.bf16 %v1422, %v1421
        %v1429 = vpack.c.bf16 %v1424, %v1423
        %v1430 = vpack.c.bf16 %v1426, %v1425
        %s1431 = scalar_lea.vmem %s5, 16
        %v1432 = vld [vmem:[%s1431] sm:$0xf]
        %v1433 = vld [vmem:[%s1431 + $0x4] sm:$0xf]
        %v1436 = vunpack.c.l.b16 %v1432
        %v1437 = vunpack.c.l.b16 %v1433
        %v1438 = vpack.c.b16 %v1437, %v1436
        %v1441 = vsel %vm1215, %v1427, 0
        %v1444 = vsel %vm1215, %v1428, 0
        %v1447 = vsel %vm1215, %v1429, 0
        %v1450 = vsel %vm1215, %v1430, 0
        %1452 = vmatprep.subr.bf16.mxu0 0
        %1453 = vmatpush1.bf16.msra.mxu0 %v1438
        %1454 = vmatprep.subr.bf16.mxu0 0
        %1455 = vmatpush1.bf16.msra.mxu0 0
        %1456 = vmatprep.subr.bf16.mxu0 0
        %1457 = vmatpush1.bf16.msra.mxu0 0
        %1458 = vmatprep.subr.bf16.mxu0 0
        %1459 = vmatpush1.bf16.msra.mxu0 0
        %1460 = vmatprep.subr.bf16.mxu0 0
        %1461 = vmatpush1.bf16.msra.mxu0 0
        %1462 = vmatprep.subr.bf16.mxu0 0
        %1463 = vmatpush1.bf16.msra.mxu0 0
        %1464 = vmatprep.subr.bf16.mxu0 0
        %1465 = vmatpush1.bf16.msra.mxu0 0
        %1466 = vmatprep.subr.bf16.mxu0 0
        %1467 = vmatpush1.bf16.msra.mxu0 0
        %1468 = vmatprep.subr.bf16.mxu0 0
        %1469 = vmatpush1.bf16.msra.mxu0 0
        %1470 = vmatprep.subr.bf16.mxu0 0
        %1471 = vmatpush1.bf16.msra.mxu0 0
        %1472 = vmatprep.subr.bf16.mxu0 0
        %1473 = vmatpush1.bf16.msra.mxu0 0
        %1474 = vmatprep.subr.bf16.mxu0 0
        %1475 = vmatpush1.bf16.msra.mxu0 0
        %1476 = vmatprep.subr.bf16.mxu0 0
        %1477 = vmatpush1.bf16.msra.mxu0 0
        %1478 = vmatprep.subr.bf16.mxu0 0
        %1479 = vmatpush1.bf16.msra.mxu0 0
        %1480 = vmatprep.subr.bf16.mxu0 0
        %1481 = vmatpush1.bf16.msra.mxu0 0
        %1482 = vmatprep.subr.bf16.mxu0 0
        %1483 = vmatpush1.bf16.msra.mxu0 0
        %1484 = vmatprep.mubr.bf16.mxu0 0
        %1485 = vmatmul.mubr.bf16.gmra.mrb[0].mxu0 %v1441
        %v1486 = vpop.f32.mrb[0].mxu0
        %v1487 = vadd.f32 0.0, %v1486
        %v1488 = vpop.f32.mrb[0].mxu0
        %v1489 = vpop.f32.mrb[0].mxu0
        %v1490 = vadd.f32 0.0, %v1489
        %v1491 = vpop.f32.mrb[0].mxu0
        %1492 = vmatprep.mubr.bf16.mxu0 0
        %1493 = vmatmul.mubr.bf16.gmra.mrb[0].mxu0 %v1444
        %v1494 = vpop.f32.mrb[0].mxu0
        %v1495 = vadd.f32 0.0, %v1494
        %v1496 = vpop.f32.mrb[0].mxu0
        %v1497 = vpop.f32.mrb[0].mxu0
        %v1498 = vadd.f32 0.0, %v1497
        %v1499 = vpop.f32.mrb[0].mxu0
        %1500 = vmatprep.mubr.bf16.mxu0 0
        %1501 = vmatmul.mubr.bf16.gmra.mrb[0].mxu0 %v1447
        %v1502 = vpop.f32.mrb[0].mxu0
        %v1503 = vadd.f32 0.0, %v1502
        %v1504 = vpop.f32.mrb[0].mxu0
        %v1505 = vpop.f32.mrb[0].mxu0
        %v1506 = vadd.f32 0.0, %v1505
        %v1507 = vpop.f32.mrb[0].mxu0
        %1508 = vmatprep.mubr.bf16.mxu0 0
        %1509 = vmatmul.mubr.bf16.gmra.mrb[0].mxu0 %v1450
        %v1510 = vpop.f32.mrb[0].mxu0
        %v1511 = vadd.f32 0.0, %v1510
        %v1512 = vpop.f32.mrb[0].mxu0
        %v1513 = vpop.f32.mrb[0].mxu0
        %v1514 = vadd.f32 0.0, %v1513
        %v1515 = vpop.f32.mrb[0].mxu0
        %1516 = vdwg.mxu0
        %v1517 = vadd.f32 %v1389, %v1487
        %v1518 = vadd.f32 %v1392, %v1490
        %v1519 = vadd.f32 %v1397, %v1495
        %v1520 = vadd.f32 %v1400, %v1498
        %v1521 = vadd.f32 %v1405, %v1503
        %v1522 = vadd.f32 %v1408, %v1506
        %v1523 = vadd.f32 %v1413, %v1511
        %v1524 = vadd.f32 %v1416, %v1514
        %v1525 = vld [vmem:[%s6] sm:$0x1]
        %v1527 = vlaneseq
        %v1528 = vshrl.u32 %v1527, 7
        %v1529 = vsub.s32 0, %v1528
        %v1530 = vrot.slane %v1525, %v1529
        %v1532 = vadd.f32 %v1517, %v1530
        %v1533 = vadd.f32 %v1518, %v1530
        %v1534 = vadd.f32 %v1519, %v1530
        %v1535 = vadd.f32 %v1520, %v1530
        %v1536 = vadd.f32 %v1521, %v1530
        %v1537 = vadd.f32 %v1522, %v1530
        %v1538 = vadd.f32 %v1523, %v1530
        %v1539 = vadd.f32 %v1524, %v1530
        %vm1540 = vcmask 31744
        %1541 = vst.msk [vmem:[%s362] sm:$0xff] %vm1540, %v1532
        %1542 = vst.msk [vmem:[%s362 + $0x8] sm:$0xff] %vm1540, %v1533
        %1543 = vst.msk [vmem:[%s362 + $0x10] sm:$0xff] %vm1540, %v1534
        %1544 = vst.msk [vmem:[%s362 + $0x18] sm:$0xff] %vm1540, %v1535
        %1545 = vst.msk [vmem:[%s362 + $0x20] sm:$0xff] %vm1540, %v1536
        %1546 = vst.msk [vmem:[%s362 + $0x28] sm:$0xff] %vm1540, %v1537
        %1547 = vst.msk [vmem:[%s362 + $0x30] sm:$0xff] %vm1540, %v1538
        %1548 = vst.msk [vmem:[%s362 + $0x38] sm:$0xff] %vm1540, %v1539
        %s1549 = smul.u32 8, %s24
        %p1550 = scmp.lt.s32.totalorder %s1549, 15
        %s1551 = scalar_select %p1550, %s1549, 15
        %s1552 = smul.addr %s1551, 4
        %s1553 = scalar_lea.vmem %s7, %s1552
        %s1554 = sand.u32 %s210, 1
        %s1555 = scalar_lea.sflag [#allocation5], %s1554
        %s1556 = sand.u32 %s210, 1
        %s1557 = smul.addr %s1556, 32
        %s1558 = scalar_lea.vmem [#allocation4], %s1557
        %s1559 = smul.u32 8, %s24
        %p1560 = scmp.lt.s32.totalorder %s1559, 15
        %s1561 = scalar_select %p1560, %s1559, 15
        %s1562 = smul.addr %s1561, 8
        %s1563 = scalar_lea.vmem %s9, %s1562
        // Predicated region
        $region49: #{tpu_custom_call.1} parent=47 // pred_check
          %p1564 = pneg %p194
        $region50: #{tpu_custom_call.1} parent=47 // pred_check_branch
          %1566 = sbr.rel (%p1564) target = $region52
        $region51: #{tpu_custom_call.1} parent=47 // pred_region
          %s1567 = smul.u32 8, %s24
        $region52: #{tpu_custom_call.1} parent=47 // pred_fallthru
          _
        // Predicated region
        $region53: #{tpu_custom_call.1} parent=47 // pred_check
          %p1568 = pneg %p220
        $region54: #{tpu_custom_call.1} parent=47 // pred_check_branch
          %1570 = sbr.rel (%p1568) target = $region56
        $region55: #{tpu_custom_call.1} parent=47 // pred_region
          %s1571 = smul.u32 8, %s24
          %s1573 = ssub.s32 512, 512
          %1574 = vsyncadd %s1555, %s1573
          %s1575 = smul.addr %s1571, 64
          %s1576 = scalar_lea.hbm %s8, %s1575
          %s1577 = sshll.u32 %s1558, 4
          %s1578 = int_to_ptr.vmem [resolvable:$true] %s1577
          %1583 = dma.vmem_to_hbm [thread:$0]  %s1578, 512, %s1576, %s1555, 64, 64, 4
        $region56: #{tpu_custom_call.1} parent=47 // pred_fallthru
          _
        // Predicated region
        $region57: #{tpu_custom_call.1} parent=47 // pred_check
          %p1584 = pneg %p246
        $region58: #{tpu_custom_call.1} parent=47 // pred_check_branch
          %1586 = sbr.rel (%p1584) target = $region60
        $region59: #{tpu_custom_call.1} parent=47 // pred_region
          %s1587 = smul.u32 8, %s24
        $region60: #{tpu_custom_call.1} parent=47 // pred_fallthru
          _
      $region48: #{tpu_custom_call.1} parent=5 // pred_fallthru
        _
      %p1588 = scmp.le.s32.totalorder 2, %s19
      // Predicated region
      $region61: #{tpu_custom_call.1} parent=5 // pred_check
        %p1589 = pneg %p1588
      $region62: #{tpu_custom_call.1} parent=5 // pred_check_branch
        %1591 = sbr.rel (%p1589) target = $region64
      $region63: #{tpu_custom_call.1} parent=5 // pred_region
        %s1592 = ssub.s32 %s19, 2
        // Predicated region
        $region65: #{tpu_custom_call.1} parent=63 // pred_check
          %p1593 = pneg %p200
        $region66: #{tpu_custom_call.1} parent=63 // pred_check_branch
          %1595 = sbr.rel (%p1593) target = $region68
        $region67: #{tpu_custom_call.1} parent=63 // pred_region
          %s1596 = smul.u32 8, %s25
          %p1597 = scmp.lt.s32.totalorder %s1596, 15
          %s1598 = scalar_select %p1597, %s1596, 15
          %s1599 = smul.addr %s1598, 4
          %s1600 = scalar_lea.vmem %s7, %s1599
        $region68: #{tpu_custom_call.1} parent=63 // pred_fallthru
          _
        // Predicated region
        $region69: #{tpu_custom_call.1} parent=63 // pred_check
          %p1601 = pneg %p226
        $region70: #{tpu_custom_call.1} parent=63 // pred_check_branch
          %1603 = sbr.rel (%p1601) target = $region72
        $region71: #{tpu_custom_call.1} parent=63 // pred_region
          %s1604 = sand.u32 %s211, 1
          %s1605 = scalar_lea.sflag [#allocation5], %s1604
          %s1606 = sand.u32 %s211, 1
          %s1607 = smul.addr %s1606, 32
          %s1608 = scalar_lea.vmem [#allocation4], %s1607
          %1609 = dma.done %s1605, 512
        $region72: #{tpu_custom_call.1} parent=63 // pred_fallthru
          _
        // Predicated region
        $region73: #{tpu_custom_call.1} parent=63 // pred_check
          %p1610 = pneg %p252
        $region74: #{tpu_custom_call.1} parent=63 // pred_check_branch
          %1612 = sbr.rel (%p1610) target = $region76
        $region75: #{tpu_custom_call.1} parent=63 // pred_region
          %s1613 = smul.u32 8, %s25
          %p1614 = scmp.lt.s32.totalorder %s1613, 15
          %s1615 = scalar_select %p1614, %s1613, 15
          %s1616 = smul.addr %s1615, 8
          %s1617 = scalar_lea.vmem %s9, %s1616
        $region76: #{tpu_custom_call.1} parent=63 // pred_fallthru
          _
      $region64: #{tpu_custom_call.1} parent=5 // pred_fallthru
        _
    $region6: #{tpu_custom_call.1} parent=1 // loop_footer
      %s23 = sadd.s32 1, %s19
    $region7: #{tpu_custom_call.1} parent=1 // loop_footer_branch
      %18 = sbr.rel target = $region3
    $region8: #{tpu_custom_call.1} parent=1 // loop_exit
      _
    %1618 = vsyncpa [#allocation5], 1
    %s1619 = scalar_lea.sflag [#allocation5], 1
    %1620 = vsyncpa %s1619, 1

</llo_original>
